<compile_context>
chip_gen: v5e
topology: v5e:2x2
jax: 0.10.0
libtpu: 0.0.40
codegen_flags: <defaults>
</compile_context>

<pallas_src>
import jax
import jax.numpy as jnp
from jax import lax
from jax.experimental import pallas as pl
from jax.experimental.pallas import tpu as pltpu


def _round_up(x, m):
    return (x + m - 1) // m * m


def _sigmoid1(x):
    # One EUP push instead of exp + divide.
    return 0.5 * jnp.tanh(0.5 * x) + 0.5


# ----------------------------------------------------------------------------
# Pallas kernel: single invocation, hoisted gate matmuls + per-layer loops.
# ----------------------------------------------------------------------------
def _joke_lstm_kernel(x_ref,                       # (T, Bp, E)   bf16 embeds, time-major
                      wih0_ref, whh0_ref, b0_ref,  # (E,4Hp) bf16, (Hp,4Hp) bf16, (1,4Hp) f32
                      wih1_ref, whh1_ref, b1_ref,  # (Hp,4Hp) bf16, (Hp,4Hp) bf16, (1,4Hp) f32
                      wout_ref, bout_ref,          # (Hp,Vp) bf16, (1,Vp) f32
                      out_ref,                     # (T*Bp, Vp)   f32 logits
                      gx_ref,                      # (T, Bp, 4Hp) f32 scratch (reused per layer)
                      hstack_ref):                 # (T, Bp, Hp)  bf16 scratch (reused per layer)
    T, Bp, E = x_ref.shape
    Hp = whh0_ref.shape[0]
    unroll = T if T <= 16 else 8

    def run_layer(w_hh):
        """Serial recurrence: only h @ w_hh remains inside the loop."""
        def step(t, carry):
            h, c = carry
            gates = gx_ref[t] + jnp.dot(h.astype(jnp.bfloat16), w_hh,
                                        preferred_element_type=jnp.float32)
            # PyTorch gate order i, f, g, o; lane-aligned slices (Hp = 128k).
            i = _sigmoid1(gates[:, 0 * Hp:1 * Hp])
            f = _sigmoid1(gates[:, 1 * Hp:2 * Hp])
            g = jnp.tanh(gates[:, 2 * Hp:3 * Hp])
            o = _sigmoid1(gates[:, 3 * Hp:4 * Hp])
            c_new = f * c + i * g
            h_new = o * jnp.tanh(c_new)
            hstack_ref[t] = h_new.astype(jnp.bfloat16)
            return h_new, c_new

        z = jnp.zeros((Bp, Hp), jnp.float32)
        lax.fori_loop(0, T, step, (z, z), unroll=unroll)

    # ---- Layer 0: hoisted input gates (bias folded in), then recurrence ----
    x2d = x_ref[...].reshape(T * Bp, E)                                   # bf16
    gx0 = (jnp.dot(x2d, wih0_ref[...], preferred_element_type=jnp.float32)
           + b0_ref[...])
    gx_ref[...] = gx0.reshape(T, Bp, 4 * Hp)
    run_layer(whh0_ref[...])                                              # h0 -> hstack_ref

    # ---- Layer 1: hoisted input gates from stacked h0, then recurrence ----
    hs0 = hstack_ref[...].reshape(T * Bp, Hp)                             # bf16
    gx1 = (jnp.dot(hs0, wih1_ref[...], preferred_element_type=jnp.float32)
           + b1_ref[...])
    gx_ref[...] = gx1.reshape(T, Bp, 4 * Hp)
    run_layer(whh1_ref[...])                                              # h1 -> hstack_ref

    # ---- Output projection over all time steps: one lane-dense slab store --
    hs1 = hstack_ref[...].reshape(T * Bp, Hp)
    logits = (jnp.dot(hs1, wout_ref[...], preferred_element_type=jnp.float32)
              + bout_ref[...])
    out_ref[...] = logits.astype(out_ref.dtype)


# ----------------------------------------------------------------------------
# Wrapper: embedding gather (glue), padding to TPU-friendly shapes, kernel call.
# ----------------------------------------------------------------------------
def _pad_gate_cols(w, H, Hp):
    """(in, 4*H) with gate blocks [i|f|g|o] -> (in, 4*Hp), each gate zero-padded."""
    n = w.shape[0]
    w4 = w.reshape(n, 4, H)
    w4 = jnp.pad(w4, ((0, 0), (0, 0), (0, Hp - H)))
    return w4.reshape(n, 4 * Hp)


@jax.jit
def joke_model_pallas(x_tokens, params):
    """x_tokens: int32 (B, T). Returns logits (B, T, V) like the PyTorch model."""
    emb_table = params["embedding"]               # (V, E)
    B, T = x_tokens.shape
    V, E = emb_table.shape
    H = params["w_hh0"].shape[0]

    Bp = _round_up(B, 8)      # sublane width
    Hp = _round_up(H, 128)    # lane-aligned hidden / gate blocks
    Vp = _round_up(V, 128)    # lane-dense output store

    # Embedding gather directly in time-major order: transpose only the tiny
    # int token matrix, never the activation tensor.  Pad batch to sublanes.
    embeds = jnp.take(emb_table, jnp.transpose(x_tokens), axis=0)    # (T, B, E)
    embeds = jnp.pad(embeds, ((0, 0), (0, Bp - B), (0, 0))).astype(jnp.bfloat16)

    bf16 = jnp.bfloat16
    # Layer 0 (zero-padded gates; padded lanes stay inert: i=f=o=0.5, g=0 -> h,c stay 0)
    w_ih0 = _pad_gate_cols(params["w_ih0"], H, Hp).astype(bf16)                # (E, 4Hp)
    w_hh0 = jnp.pad(_pad_gate_cols(params["w_hh0"], H, Hp),
                    ((0, Hp - H), (0, 0))).astype(bf16)                        # (Hp, 4Hp)
    b0 = _pad_gate_cols(params["b0"], H, Hp)                                   # (1, 4Hp) f32
    # Layer 1
    w_ih1 = jnp.pad(_pad_gate_cols(params["w_ih1"], H, Hp),
                    ((0, Hp - H), (0, 0))).astype(bf16)                        # (Hp, 4Hp)
    w_hh1 = jnp.pad(_pad_gate_cols(params["w_hh1"], H, Hp),
                    ((0, Hp - H), (0, 0))).astype(bf16)                        # (Hp, 4Hp)
    b1 = _pad_gate_cols(params["b1"], H, Hp)                                   # (1, 4Hp) f32
    # Output projection
    w_out = jnp.pad(params["w_out"], ((0, Hp - H), (0, Vp - V))).astype(bf16)  # (Hp, Vp)
    b_out = jnp.pad(params["b_out"], ((0, 0), (0, Vp - V)))                    # (1, Vp) f32

    # Explicit VMEM budget: everything is resident (no streaming), so size the
    # scoped limit from actual usage; cap at 64 MiB so it also fits v7x.
    bytes_in = (embeds.size * 2
                + (w_ih0.size + w_hh0.size + w_ih1.size + w_hh1.size + w_out.size) * 2
                + (b0.size + b1.size + b_out.size) * 4)
    bytes_scratch = T * Bp * 4 * Hp * 4 + T * Bp * Hp * 2
    bytes_out = T * Bp * Vp * 4
    vmem_limit = int(min(64 << 20, max(16 << 20, 2 * (bytes_in + bytes_scratch + bytes_out))))

    out = pl.pallas_call(
        _joke_lstm_kernel,
        out_shape=jax.ShapeDtypeStruct((T * Bp, Vp), jnp.float32),
        scratch_shapes=[pltpu.VMEM((T, Bp, 4 * Hp), jnp.float32),   # gx slab (reused per layer)
                        pltpu.VMEM((T, Bp, Hp), jnp.bfloat16)],     # stacked hidden states
        compiler_params=pltpu.CompilerParams(vmem_limit_bytes=vmem_limit),
    )(embeds, w_ih0, w_hh0, b0, w_ih1, w_hh1, b1, w_out, b_out)

    # (T*Bp, Vp) -> (B, T, V).  The reshape is metadata-only; the final
    # transpose only touches the tiny unpadded (T, B, V) result.
    logits = out.reshape(T, Bp, Vp)[:, :B, :V]
    return jnp.transpose(logits, (1, 0, 2))


# ----------------------------------------------------------------------------
# Pure-JAX reference (same math, full f32) for correctness checking.
# ----------------------------------------------------------------------------
def joke_model_ref(x_tokens, params):
    emb = jnp.take(params["embedding"], x_tokens, axis=0)    # (B, T, E)
    B, T, _ = emb.shape
    H = params["w_hh0"].shape[0]

    def run_layer(x_seq, w_ih, w_hh, b):
        def step(carry, x_t):
            h, c = carry
            gates = x_t @ w_ih + h @ w_hh + b
            i = jax.nn.sigmoid(gates[:, :H])
            f = jax.nn.sigmoid(gates[:, H:2 * H])
            g = jnp.tanh(gates[:, 2 * H:3 * H])
            o = jax.nn.sigmoid(gates[:, 3 * H:])
            c = f * c + i * g
            h = o * jnp.tanh(c)
            return (h, c), h
        init = (jnp.zeros((B, H), jnp.float32), jnp.zeros((B, H), jnp.float32))
        _, ys = jax.lax.scan(step, init, jnp.transpose(x_seq, (1, 0, 2)))
        return jnp.transpose(ys, (1, 0, 2))

    y0 = run_layer(emb, params["w_ih0"], params["w_hh0"], params["b0"])
    y1 = run_layer(y0, params["w_ih1"], params["w_hh1"], params["b1"])
    return y1 @ params["w_out"] + params["b_out"]


# ----------------------------------------------------------------------------
# Deterministic parameter construction (PyTorch-style init).
# ----------------------------------------------------------------------------
def make_params(key, vocab_size, embedding_dim, hidden_dim):
    ks = jax.random.split(key, 12)
    k = 1.0 / jnp.sqrt(hidden_dim)
    u = lambda kk, shape: jax.random.uniform(kk, shape, jnp.float32, -k, k)

    return {
        "embedding": jax.random.normal(ks[0], (vocab_size, embedding_dim), jnp.float32),
        # Stored transposed (in_features, 4H) so kernels do x @ W directly.
        "w_ih0": u(ks[1], (embedding_dim, 4 * hidden_dim)),
        "w_hh0": u(ks[2], (hidden_dim, 4 * hidden_dim)),
        "b0":   (u(ks[3], (1, 4 * hidden_dim)) + u(ks[4], (1, 4 * hidden_dim))),  # b_ih + b_hh
        "w_ih1": u(ks[5], (hidden_dim, 4 * hidden_dim)),
        "w_hh1": u(ks[6], (hidden_dim, 4 * hidden_dim)),
        "b1":   (u(ks[7], (1, 4 * hidden_dim)) + u(ks[8], (1, 4 * hidden_dim))),
        "w_out": u(ks[9], (hidden_dim, vocab_size)),
        "b_out": u(ks[10], (1, vocab_size)),
    }


if __name__ == "__main__":
    VOCAB, EMBED, HIDDEN = 64, 32, 32
    B, T = 2, 8

    key = jax.random.PRNGKey(0)
    k_param, k_tok = jax.random.split(key)
    params = make_params(k_param, VOCAB, EMBED, HIDDEN)
    tokens = jax.random.randint(k_tok, (B, T), 0, VOCAB, dtype=jnp.int32)

    logits = jax.block_until_ready(joke_model_pallas(tokens, params))
    ref = jax.block_until_ready(joke_model_ref(tokens, params))

    assert logits.shape == (B, T, VOCAB), logits.shape
    # bf16 matmul operands with f32 accumulation -> modest tolerance vs f32 ref.
    assert jnp.allclose(logits, ref, rtol=5e-2, atol=5e-2), \
        float(jnp.max(jnp.abs(logits - ref)))

    print("KERNEL_OK")
</pallas_src>

<mosaic_0001>
module attributes {stable_mosaic.version = 11 : i64} {
  func.func @_joke_lstm_kernel(%arg0: memref<8x8x32xbf16, #tpu.memory_space<vmem>>, %arg1: memref<32x512xbf16, #tpu.memory_space<vmem>>, %arg2: memref<128x512xbf16, #tpu.memory_space<vmem>>, %arg3: memref<1x512xf32, #tpu.memory_space<vmem>>, %arg4: memref<128x512xbf16, #tpu.memory_space<vmem>>, %arg5: memref<128x512xbf16, #tpu.memory_space<vmem>>, %arg6: memref<1x512xf32, #tpu.memory_space<vmem>>, %arg7: memref<128x128xbf16, #tpu.memory_space<vmem>>, %arg8: memref<1x128xf32, #tpu.memory_space<vmem>>, %arg9: memref<64x128xf32, #tpu.memory_space<vmem>>, %arg10: memref<8x8x512xf32, #tpu.memory_space<vmem>>, %arg11: memref<8x8x128xbf16, #tpu.memory_space<vmem>>) attributes {dimension_semantics = [], scalar_prefetch = 0 : i64, scratch_operands = 2 : i64, tpu.core_type = #tpu.core_type<tc>} {
    %c0 = arith.constant 0 : index
    %c0_0 = arith.constant 0 : index
    %c0_1 = arith.constant 0 : index
    %0 = vector.load %arg0[%c0, %c0_0, %c0_1] : memref<8x8x32xbf16, #tpu.memory_space<vmem>>, vector<8x8x32xbf16>
    %1 = vector.shape_cast %0 : vector<8x8x32xbf16> to vector<64x32xbf16>
    %c0_2 = arith.constant 0 : index
    %c0_3 = arith.constant 0 : index
    %2 = vector.load %arg1[%c0_2, %c0_3] : memref<32x512xbf16, #tpu.memory_space<vmem>>, vector<32x512xbf16>
    %cst = arith.constant dense<0.000000e+00> : vector<64x512xf32>
    %3 = tpu.matmul %1, %2, %cst {dimension_numbers = #tpu.dot_dimension_numbers<[1], [0], [0], [1], [0, 0, 1, 1], [], []>} : vector<64x32xbf16>, vector<32x512xbf16>, vector<64x512xf32> -> vector<64x512xf32>
    %c0_4 = arith.constant 0 : index
    %c0_5 = arith.constant 0 : index
    %4 = vector.load %arg3[%c0_4, %c0_5] : memref<1x512xf32, #tpu.memory_space<vmem>>, vector<1x512xf32>
    %5 = vector.broadcast %4 : vector<1x512xf32> to vector<64x512xf32>
    %6 = arith.addf %3, %5 : vector<64x512xf32>
    %7 = vector.shape_cast %6 : vector<64x512xf32> to vector<8x8x512xf32>
    %c0_6 = arith.constant 0 : index
    %c0_7 = arith.constant 0 : index
    %c0_8 = arith.constant 0 : index
    %8 = vector.load %arg10[%c0_6, %c0_7, %c0_8] : memref<8x8x512xf32, #tpu.memory_space<vmem>>, vector<8x8x512xf32>
    tpu.vector_store %arg10[%c0_6, %c0_7, %c0_8], %7 {strides = array<i32>} : memref<8x8x512xf32, #tpu.memory_space<vmem>>, vector<8x8x512xf32>,
    %c0_9 = arith.constant 0 : index
    %c0_10 = arith.constant 0 : index
    %9 = vector.load %arg2[%c0_9, %c0_10] : memref<128x512xbf16, #tpu.memory_space<vmem>>, vector<128x512xbf16>
    %cst_11 = arith.constant 0.000000e+00 : f32
    %10 = vector.broadcast %cst_11 : f32 to vector<8x128xf32>
    %c0_i32 = arith.constant 0 : i32
    %11 = arith.index_cast %c0_i32 : i32 to index
    %c0_12 = arith.constant 0 : index
    %c0_13 = arith.constant 0 : index
    %12 = vector.load %arg10[%11, %c0_12, %c0_13] : memref<8x8x512xf32, #tpu.memory_space<vmem>>, vector<1x8x512xf32>
    %13 = vector.shape_cast %12 : vector<1x8x512xf32> to vector<8x512xf32>
    %14 = arith.truncf %10 : vector<8x128xf32> to vector<8x128xbf16>
    %cst_14 = arith.constant dense<0.000000e+00> : vector<8x512xf32>
    %15 = tpu.matmul %14, %9, %cst_14 {dimension_numbers = #tpu.dot_dimension_numbers<[1], [0], [0], [1], [0, 0, 1, 1], [], []>} : vector<8x128xbf16>, vector<128x512xbf16>, vector<8x512xf32> -> vector<8x512xf32>
    %16 = arith.addf %13, %15 : vector<8x512xf32>
    %17 = vector.extract_strided_slice %16 {offsets = [0, 0], sizes = [8, 128], strides = [1, 1]} : vector<8x512xf32> to vector<8x128xf32>
    %cst_15 = arith.constant 5.000000e-01 : f32
    %18 = vector.broadcast %cst_15 : f32 to vector<8x128xf32>
    %19 = arith.mulf %18, %17 : vector<8x128xf32>
    %20 = math.tanh %19 : vector<8x128xf32>
    %cst_16 = arith.constant 5.000000e-01 : f32
    %21 = vector.broadcast %cst_16 : f32 to vector<8x128xf32>
    %22 = arith.mulf %21, %20 : vector<8x128xf32>
    %cst_17 = arith.constant 5.000000e-01 : f32
    %23 = vector.broadcast %cst_17 : f32 to vector<8x128xf32>
    %24 = arith.addf %22, %23 : vector<8x128xf32>
    %25 = vector.extract_strided_slice %16 {offsets = [0, 128], sizes = [8, 128], strides = [1, 1]} : vector<8x512xf32> to vector<8x128xf32>
    %cst_18 = arith.constant 5.000000e-01 : f32
    %26 = vector.broadcast %cst_18 : f32 to vector<8x128xf32>
    %27 = arith.mulf %26, %25 : vector<8x128xf32>
    %28 = math.tanh %27 : vector<8x128xf32>
    %cst_19 = arith.constant 5.000000e-01 : f32
    %29 = vector.broadcast %cst_19 : f32 to vector<8x128xf32>
    %30 = arith.mulf %29, %28 : vector<8x128xf32>
    %cst_20 = arith.constant 5.000000e-01 : f32
    %31 = vector.broadcast %cst_20 : f32 to vector<8x128xf32>
    %32 = arith.addf %30, %31 : vector<8x128xf32>
    %33 = vector.extract_strided_slice %16 {offsets = [0, 256], sizes = [8, 128], strides = [1, 1]} : vector<8x512xf32> to vector<8x128xf32>
    %34 = math.tanh %33 : vector<8x128xf32>
    %35 = vector.extract_strided_slice %16 {offsets = [0, 384], sizes = [8, 128], strides = [1, 1]} : vector<8x512xf32> to vector<8x128xf32>
    %cst_21 = arith.constant 5.000000e-01 : f32
    %36 = vector.broadcast %cst_21 : f32 to vector<8x128xf32>
    %37 = arith.mulf %36, %35 : vector<8x128xf32>
    %38 = math.tanh %37 : vector<8x128xf32>
    %cst_22 = arith.constant 5.000000e-01 : f32
    %39 = vector.broadcast %cst_22 : f32 to vector<8x128xf32>
    %40 = arith.mulf %39, %38 : vector<8x128xf32>
    %cst_23 = arith.constant 5.000000e-01 : f32
    %41 = vector.broadcast %cst_23 : f32 to vector<8x128xf32>
    %42 = arith.addf %40, %41 : vector<8x128xf32>
    %43 = arith.mulf %32, %10 : vector<8x128xf32>
    %44 = arith.mulf %24, %34 : vector<8x128xf32>
    %45 = arith.addf %43, %44 : vector<8x128xf32>
    %46 = math.tanh %45 : vector<8x128xf32>
    %47 = arith.mulf %42, %46 : vector<8x128xf32>
    %48 = arith.truncf %47 : vector<8x128xf32> to vector<8x128xbf16>
    %49 = arith.index_cast %c0_i32 : i32 to index
    %c0_24 = arith.constant 0 : index
    %c0_25 = arith.constant 0 : index
    %50 = vector.load %arg11[%49, %c0_24, %c0_25] : memref<8x8x128xbf16, #tpu.memory_space<vmem>>, vector<1x8x128xbf16>
    %51 = vector.shape_cast %50 : vector<1x8x128xbf16> to vector<8x128xbf16>
    %52 = vector.shape_cast %48 : vector<8x128xbf16> to vector<1x8x128xbf16>
    tpu.vector_store %arg11[%49, %c0_24, %c0_25], %52 {strides = array<i32>} : memref<8x8x128xbf16, #tpu.memory_space<vmem>>, vector<1x8x128xbf16>,
    %c1_i32 = arith.constant 1 : i32
    %53 = arith.index_cast %c1_i32 : i32 to index
    %c0_26 = arith.constant 0 : index
    %c0_27 = arith.constant 0 : index
    %54 = vector.load %arg10[%53, %c0_26, %c0_27] : memref<8x8x512xf32, #tpu.memory_space<vmem>>, vector<1x8x512xf32>
    %55 = vector.shape_cast %54 : vector<1x8x512xf32> to vector<8x512xf32>
    %56 = arith.truncf %47 : vector<8x128xf32> to vector<8x128xbf16>
    %cst_28 = arith.constant dense<0.000000e+00> : vector<8x512xf32>
    %57 = tpu.matmul %56, %9, %cst_28 {dimension_numbers = #tpu.dot_dimension_numbers<[1], [0], [0], [1], [0, 0, 1, 1], [], []>} : vector<8x128xbf16>, vector<128x512xbf16>, vector<8x512xf32> -> vector<8x512xf32>
    %58 = arith.addf %55, %57 : vector<8x512xf32>
    %59 = vector.extract_strided_slice %58 {offsets = [0, 0], sizes = [8, 128], strides = [1, 1]} : vector<8x512xf32> to vector<8x128xf32>
    %cst_29 = arith.constant 5.000000e-01 : f32
    %60 = vector.broadcast %cst_29 : f32 to vector<8x128xf32>
    %61 = arith.mulf %60, %59 : vector<8x128xf32>
    %62 = math.tanh %61 : vector<8x128xf32>
    %cst_30 = arith.constant 5.000000e-01 : f32
    %63 = vector.broadcast %cst_30 : f32 to vector<8x128xf32>
    %64 = arith.mulf %63, %62 : vector<8x128xf32>
    %cst_31 = arith.constant 5.000000e-01 : f32
    %65 = vector.broadcast %cst_31 : f32 to vector<8x128xf32>
    %66 = arith.addf %64, %65 : vector<8x128xf32>
    %67 = vector.extract_strided_slice %58 {offsets = [0, 128], sizes = [8, 128], strides = [1, 1]} : vector<8x512xf32> to vector<8x128xf32>
    %cst_32 = arith.constant 5.000000e-01 : f32
    %68 = vector.broadcast %cst_32 : f32 to vector<8x128xf32>
    %69 = arith.mulf %68, %67 : vector<8x128xf32>
    %70 = math.tanh %69 : vector<8x128xf32>
    %cst_33 = arith.constant 5.000000e-01 : f32
    %71 = vector.broadcast %cst_33 : f32 to vector<8x128xf32>
    %72 = arith.mulf %71, %70 : vector<8x128xf32>
    %cst_34 = arith.constant 5.000000e-01 : f32
    %73 = vector.broadcast %cst_34 : f32 to vector<8x128xf32>
    %74 = arith.addf %72, %73 : vector<8x128xf32>
    %75 = vector.extract_strided_slice %58 {offsets = [0, 256], sizes = [8, 128], strides = [1, 1]} : vector<8x512xf32> to vector<8x128xf32>
    %76 = math.tanh %75 : vector<8x128xf32>
    %77 = vector.extract_strided_slice %58 {offsets = [0, 384], sizes = [8, 128], strides = [1, 1]} : vector<8x512xf32> to vector<8x128xf32>
    %cst_35 = arith.constant 5.000000e-01 : f32
    %78 = vector.broadcast %cst_35 : f32 to vector<8x128xf32>
    %79 = arith.mulf %78, %77 : vector<8x128xf32>
    %80 = math.tanh %79 : vector<8x128xf32>
    %cst_36 = arith.constant 5.000000e-01 : f32
    %81 = vector.broadcast %cst_36 : f32 to vector<8x128xf32>
    %82 = arith.mulf %81, %80 : vector<8x128xf32>
    %cst_37 = arith.constant 5.000000e-01 : f32
    %83 = vector.broadcast %cst_37 : f32 to vector<8x128xf32>
    %84 = arith.addf %82, %83 : vector<8x128xf32>
    %85 = arith.mulf %74, %45 : vector<8x128xf32>
    %86 = arith.mulf %66, %76 : vector<8x128xf32>
    %87 = arith.addf %85, %86 : vector<8x128xf32>
    %88 = math.tanh %87 : vector<8x128xf32>
    %89 = arith.mulf %84, %88 : vector<8x128xf32>
    %90 = arith.truncf %89 : vector<8x128xf32> to vector<8x128xbf16>
    %91 = arith.index_cast %c1_i32 : i32 to index
    %c0_38 = arith.constant 0 : index
    %c0_39 = arith.constant 0 : index
    %92 = vector.load %arg11[%91, %c0_38, %c0_39] : memref<8x8x128xbf16, #tpu.memory_space<vmem>>, vector<1x8x128xbf16>
    %93 = vector.shape_cast %92 : vector<1x8x128xbf16> to vector<8x128xbf16>
    %94 = vector.shape_cast %90 : vector<8x128xbf16> to vector<1x8x128xbf16>
    tpu.vector_store %arg11[%91, %c0_38, %c0_39], %94 {strides = array<i32>} : memref<8x8x128xbf16, #tpu.memory_space<vmem>>, vector<1x8x128xbf16>,
    %c2_i32 = arith.constant 2 : i32
    %95 = arith.index_cast %c2_i32 : i32 to index
    %c0_40 = arith.constant 0 : index
    %c0_41 = arith.constant 0 : index
    %96 = vector.load %arg10[%95, %c0_40, %c0_41] : memref<8x8x512xf32, #tpu.memory_space<vmem>>, vector<1x8x512xf32>
    %97 = vector.shape_cast %96 : vector<1x8x512xf32> to vector<8x512xf32>
    %98 = arith.truncf %89 : vector<8x128xf32> to vector<8x128xbf16>
    %cst_42 = arith.constant dense<0.000000e+00> : vector<8x512xf32>
    %99 = tpu.matmul %98, %9, %cst_42 {dimension_numbers = #tpu.dot_dimension_numbers<[1], [0], [0], [1], [0, 0, 1, 1], [], []>} : vector<8x128xbf16>, vector<128x512xbf16>, vector<8x512xf32> -> vector<8x512xf32>
    %100 = arith.addf %97, %99 : vector<8x512xf32>
    %101 = vector.extract_strided_slice %100 {offsets = [0, 0], sizes = [8, 128], strides = [1, 1]} : vector<8x512xf32> to vector<8x128xf32>
    %cst_43 = arith.constant 5.000000e-01 : f32
    %102 = vector.broadcast %cst_43 : f32 to vector<8x128xf32>
    %103 = arith.mulf %102, %101 : vector<8x128xf32>
    %104 = math.tanh %103 : vector<8x128xf32>
    %cst_44 = arith.constant 5.000000e-01 : f32
    %105 = vector.broadcast %cst_44 : f32 to vector<8x128xf32>
    %106 = arith.mulf %105, %104 : vector<8x128xf32>
    %cst_45 = arith.constant 5.000000e-01 : f32
    %107 = vector.broadcast %cst_45 : f32 to vector<8x128xf32>
    %108 = arith.addf %106, %107 : vector<8x128xf32>
    %109 = vector.extract_strided_slice %100 {offsets = [0, 128], sizes = [8, 128], strides = [1, 1]} : vector<8x512xf32> to vector<8x128xf32>
    %cst_46 = arith.constant 5.000000e-01 : f32
    %110 = vector.broadcast %cst_46 : f32 to vector<8x128xf32>
    %111 = arith.mulf %110, %109 : vector<8x128xf32>
    %112 = math.tanh %111 : vector<8x128xf32>
    %cst_47 = arith.constant 5.000000e-01 : f32
    %113 = vector.broadcast %cst_47 : f32 to vector<8x128xf32>
    %114 = arith.mulf %113, %112 : vector<8x128xf32>
    %cst_48 = arith.constant 5.000000e-01 : f32
    %115 = vector.broadcast %cst_48 : f32 to vector<8x128xf32>
    %116 = arith.addf %114, %115 : vector<8x128xf32>
    %117 = vector.extract_strided_slice %100 {offsets = [0, 256], sizes = [8, 128], strides = [1, 1]} : vector<8x512xf32> to vector<8x128xf32>
    %118 = math.tanh %117 : vector<8x128xf32>
    %119 = vector.extract_strided_slice %100 {offsets = [0, 384], sizes = [8, 128], strides = [1, 1]} : vector<8x512xf32> to vector<8x128xf32>
    %cst_49 = arith.constant 5.000000e-01 : f32
    %120 = vector.broadcast %cst_49 : f32 to vector<8x128xf32>
    %121 = arith.mulf %120, %119 : vector<8x128xf32>
    %122 = math.tanh %121 : vector<8x128xf32>
    %cst_50 = arith.constant 5.000000e-01 : f32
    %123 = vector.broadcast %cst_50 : f32 to vector<8x128xf32>
    %124 = arith.mulf %123, %122 : vector<8x128xf32>
    %cst_51 = arith.constant 5.000000e-01 : f32
    %125 = vector.broadcast %cst_51 : f32 to vector<8x128xf32>
    %126 = arith.addf %124, %125 : vector<8x128xf32>
    %127 = arith.mulf %116, %87 : vector<8x128xf32>
    %128 = arith.mulf %108, %118 : vector<8x128xf32>
    %129 = arith.addf %127, %128 : vector<8x128xf32>
    %130 = math.tanh %129 : vector<8x128xf32>
    %131 = arith.mulf %126, %130 : vector<8x128xf32>
    %132 = arith.truncf %131 : vector<8x128xf32> to vector<8x128xbf16>
    %133 = arith.index_cast %c2_i32 : i32 to index
    %c0_52 = arith.constant 0 : index
    %c0_53 = arith.constant 0 : index
    %134 = vector.load %arg11[%133, %c0_52, %c0_53] : memref<8x8x128xbf16, #tpu.memory_space<vmem>>, vector<1x8x128xbf16>
    %135 = vector.shape_cast %134 : vector<1x8x128xbf16> to vector<8x128xbf16>
    %136 = vector.shape_cast %132 : vector<8x128xbf16> to vector<1x8x128xbf16>
    tpu.vector_store %arg11[%133, %c0_52, %c0_53], %136 {strides = array<i32>} : memref<8x8x128xbf16, #tpu.memory_space<vmem>>, vector<1x8x128xbf16>,
    %c3_i32 = arith.constant 3 : i32
    %137 = arith.index_cast %c3_i32 : i32 to index
    %c0_54 = arith.constant 0 : index
    %c0_55 = arith.constant 0 : index
    %138 = vector.load %arg10[%137, %c0_54, %c0_55] : memref<8x8x512xf32, #tpu.memory_space<vmem>>, vector<1x8x512xf32>
    %139 = vector.shape_cast %138 : vector<1x8x512xf32> to vector<8x512xf32>
    %140 = arith.truncf %131 : vector<8x128xf32> to vector<8x128xbf16>
    %cst_56 = arith.constant dense<0.000000e+00> : vector<8x512xf32>
    %141 = tpu.matmul %140, %9, %cst_56 {dimension_numbers = #tpu.dot_dimension_numbers<[1], [0], [0], [1], [0, 0, 1, 1], [], []>} : vector<8x128xbf16>, vector<128x512xbf16>, vector<8x512xf32> -> vector<8x512xf32>
    %142 = arith.addf %139, %141 : vector<8x512xf32>
    %143 = vector.extract_strided_slice %142 {offsets = [0, 0], sizes = [8, 128], strides = [1, 1]} : vector<8x512xf32> to vector<8x128xf32>
    %cst_57 = arith.constant 5.000000e-01 : f32
    %144 = vector.broadcast %cst_57 : f32 to vector<8x128xf32>
    %145 = arith.mulf %144, %143 : vector<8x128xf32>
    %146 = math.tanh %145 : vector<8x128xf32>
    %cst_58 = arith.constant 5.000000e-01 : f32
    %147 = vector.broadcast %cst_58 : f32 to vector<8x128xf32>
    %148 = arith.mulf %147, %146 : vector<8x128xf32>
    %cst_59 = arith.constant 5.000000e-01 : f32
    %149 = vector.broadcast %cst_59 : f32 to vector<8x128xf32>
    %150 = arith.addf %148, %149 : vector<8x128xf32>
    %151 = vector.extract_strided_slice %142 {offsets = [0, 128], sizes = [8, 128], strides = [1, 1]} : vector<8x512xf32> to vector<8x128xf32>
    %cst_60 = arith.constant 5.000000e-01 : f32
    %152 = vector.broadcast %cst_60 : f32 to vector<8x128xf32>
    %153 = arith.mulf %152, %151 : vector<8x128xf32>
    %154 = math.tanh %153 : vector<8x128xf32>
    %cst_61 = arith.constant 5.000000e-01 : f32
    %155 = vector.broadcast %cst_61 : f32 to vector<8x128xf32>
    %156 = arith.mulf %155, %154 : vector<8x128xf32>
    %cst_62 = arith.constant 5.000000e-01 : f32
    %157 = vector.broadcast %cst_62 : f32 to vector<8x128xf32>
    %158 = arith.addf %156, %157 : vector<8x128xf32>
    %159 = vector.extract_strided_slice %142 {offsets = [0, 256], sizes = [8, 128], strides = [1, 1]} : vector<8x512xf32> to vector<8x128xf32>
    %160 = math.tanh %159 : vector<8x128xf32>
    %161 = vector.extract_strided_slice %142 {offsets = [0, 384], sizes = [8, 128], strides = [1, 1]} : vector<8x512xf32> to vector<8x128xf32>
    %cst_63 = arith.constant 5.000000e-01 : f32
    %162 = vector.broadcast %cst_63 : f32 to vector<8x128xf32>
    %163 = arith.mulf %162, %161 : vector<8x128xf32>
    %164 = math.tanh %163 : vector<8x128xf32>
    %cst_64 = arith.constant 5.000000e-01 : f32
    %165 = vector.broadcast %cst_64 : f32 to vector<8x128xf32>
    %166 = arith.mulf %165, %164 : vector<8x128xf32>
    %cst_65 = arith.constant 5.000000e-01 : f32
    %167 = vector.broadcast %cst_65 : f32 to vector<8x128xf32>
    %168 = arith.addf %166, %167 : vector<8x128xf32>
    %169 = arith.mulf %158, %129 : vector<8x128xf32>
    %170 = arith.mulf %150, %160 : vector<8x128xf32>
    %171 = arith.addf %169, %170 : vector<8x128xf32>
    %172 = math.tanh %171 : vector<8x128xf32>
    %173 = arith.mulf %168, %172 : vector<8x128xf32>
    %174 = arith.truncf %173 : vector<8x128xf32> to vector<8x128xbf16>
    %175 = arith.index_cast %c3_i32 : i32 to index
    %c0_66 = arith.constant 0 : index
    %c0_67 = arith.constant 0 : index
    %176 = vector.load %arg11[%175, %c0_66, %c0_67] : memref<8x8x128xbf16, #tpu.memory_space<vmem>>, vector<1x8x128xbf16>
    %177 = vector.shape_cast %176 : vector<1x8x128xbf16> to vector<8x128xbf16>
    %178 = vector.shape_cast %174 : vector<8x128xbf16> to vector<1x8x128xbf16>
    tpu.vector_store %arg11[%175, %c0_66, %c0_67], %178 {strides = array<i32>} : memref<8x8x128xbf16, #tpu.memory_space<vmem>>, vector<1x8x128xbf16>,
    %c4_i32 = arith.constant 4 : i32
    %179 = arith.index_cast %c4_i32 : i32 to index
    %c0_68 = arith.constant 0 : index
    %c0_69 = arith.constant 0 : index
    %180 = vector.load %arg10[%179, %c0_68, %c0_69] : memref<8x8x512xf32, #tpu.memory_space<vmem>>, vector<1x8x512xf32>
    %181 = vector.shape_cast %180 : vector<1x8x512xf32> to vector<8x512xf32>
    %182 = arith.truncf %173 : vector<8x128xf32> to vector<8x128xbf16>
    %cst_70 = arith.constant dense<0.000000e+00> : vector<8x512xf32>
    %183 = tpu.matmul %182, %9, %cst_70 {dimension_numbers = #tpu.dot_dimension_numbers<[1], [0], [0], [1], [0, 0, 1, 1], [], []>} : vector<8x128xbf16>, vector<128x512xbf16>, vector<8x512xf32> -> vector<8x512xf32>
    %184 = arith.addf %181, %183 : vector<8x512xf32>
    %185 = vector.extract_strided_slice %184 {offsets = [0, 0], sizes = [8, 128], strides = [1, 1]} : vector<8x512xf32> to vector<8x128xf32>
    %cst_71 = arith.constant 5.000000e-01 : f32
    %186 = vector.broadcast %cst_71 : f32 to vector<8x128xf32>
    %187 = arith.mulf %186, %185 : vector<8x128xf32>
    %188 = math.tanh %187 : vector<8x128xf32>
    %cst_72 = arith.constant 5.000000e-01 : f32
    %189 = vector.broadcast %cst_72 : f32 to vector<8x128xf32>
    %190 = arith.mulf %189, %188 : vector<8x128xf32>
    %cst_73 = arith.constant 5.000000e-01 : f32
    %191 = vector.broadcast %cst_73 : f32 to vector<8x128xf32>
    %192 = arith.addf %190, %191 : vector<8x128xf32>
    %193 = vector.extract_strided_slice %184 {offsets = [0, 128], sizes = [8, 128], strides = [1, 1]} : vector<8x512xf32> to vector<8x128xf32>
    %cst_74 = arith.constant 5.000000e-01 : f32
    %194 = vector.broadcast %cst_74 : f32 to vector<8x128xf32>
    %195 = arith.mulf %194, %193 : vector<8x128xf32>
    %196 = math.tanh %195 : vector<8x128xf32>
    %cst_75 = arith.constant 5.000000e-01 : f32
    %197 = vector.broadcast %cst_75 : f32 to vector<8x128xf32>
    %198 = arith.mulf %197, %196 : vector<8x128xf32>
    %cst_76 = arith.constant 5.000000e-01 : f32
    %199 = vector.broadcast %cst_76 : f32 to vector<8x128xf32>
    %200 = arith.addf %198, %199 : vector<8x128xf32>
    %201 = vector.extract_strided_slice %184 {offsets = [0, 256], sizes = [8, 128], strides = [1, 1]} : vector<8x512xf32> to vector<8x128xf32>
    %202 = math.tanh %201 : vector<8x128xf32>
    %203 = vector.extract_strided_slice %184 {offsets = [0, 384], sizes = [8, 128], strides = [1, 1]} : vector<8x512xf32> to vector<8x128xf32>
    %cst_77 = arith.constant 5.000000e-01 : f32
    %204 = vector.broadcast %cst_77 : f32 to vector<8x128xf32>
    %205 = arith.mulf %204, %203 : vector<8x128xf32>
    %206 = math.tanh %205 : vector<8x128xf32>
    %cst_78 = arith.constant 5.000000e-01 : f32
    %207 = vector.broadcast %cst_78 : f32 to vector<8x128xf32>
    %208 = arith.mulf %207, %206 : vector<8x128xf32>
    %cst_79 = arith.constant 5.000000e-01 : f32
    %209 = vector.broadcast %cst_79 : f32 to vector<8x128xf32>
    %210 = arith.addf %208, %209 : vector<8x128xf32>
    %211 = arith.mulf %200, %171 : vector<8x128xf32>
    %212 = arith.mulf %192, %202 : vector<8x128xf32>
    %213 = arith.addf %211, %212 : vector<8x128xf32>
    %214 = math.tanh %213 : vector<8x128xf32>
    %215 = arith.mulf %210, %214 : vector<8x128xf32>
    %216 = arith.truncf %215 : vector<8x128xf32> to vector<8x128xbf16>
    %217 = arith.index_cast %c4_i32 : i32 to index
    %c0_80 = arith.constant 0 : index
    %c0_81 = arith.constant 0 : index
    %218 = vector.load %arg11[%217, %c0_80, %c0_81] : memref<8x8x128xbf16, #tpu.memory_space<vmem>>, vector<1x8x128xbf16>
    %219 = vector.shape_cast %218 : vector<1x8x128xbf16> to vector<8x128xbf16>
    %220 = vector.shape_cast %216 : vector<8x128xbf16> to vector<1x8x128xbf16>
    tpu.vector_store %arg11[%217, %c0_80, %c0_81], %220 {strides = array<i32>} : memref<8x8x128xbf16, #tpu.memory_space<vmem>>, vector<1x8x128xbf16>,
    %c5_i32 = arith.constant 5 : i32
    %221 = arith.index_cast %c5_i32 : i32 to index
    %c0_82 = arith.constant 0 : index
    %c0_83 = arith.constant 0 : index
    %222 = vector.load %arg10[%221, %c0_82, %c0_83] : memref<8x8x512xf32, #tpu.memory_space<vmem>>, vector<1x8x512xf32>
    %223 = vector.shape_cast %222 : vector<1x8x512xf32> to vector<8x512xf32>
    %224 = arith.truncf %215 : vector<8x128xf32> to vector<8x128xbf16>
    %cst_84 = arith.constant dense<0.000000e+00> : vector<8x512xf32>
    %225 = tpu.matmul %224, %9, %cst_84 {dimension_numbers = #tpu.dot_dimension_numbers<[1], [0], [0], [1], [0, 0, 1, 1], [], []>} : vector<8x128xbf16>, vector<128x512xbf16>, vector<8x512xf32> -> vector<8x512xf32>
    %226 = arith.addf %223, %225 : vector<8x512xf32>
    %227 = vector.extract_strided_slice %226 {offsets = [0, 0], sizes = [8, 128], strides = [1, 1]} : vector<8x512xf32> to vector<8x128xf32>
    %cst_85 = arith.constant 5.000000e-01 : f32
    %228 = vector.broadcast %cst_85 : f32 to vector<8x128xf32>
    %229 = arith.mulf %228, %227 : vector<8x128xf32>
    %230 = math.tanh %229 : vector<8x128xf32>
    %cst_86 = arith.constant 5.000000e-01 : f32
    %231 = vector.broadcast %cst_86 : f32 to vector<8x128xf32>
    %232 = arith.mulf %231, %230 : vector<8x128xf32>
    %cst_87 = arith.constant 5.000000e-01 : f32
    %233 = vector.broadcast %cst_87 : f32 to vector<8x128xf32>
    %234 = arith.addf %232, %233 : vector<8x128xf32>
    %235 = vector.extract_strided_slice %226 {offsets = [0, 128], sizes = [8, 128], strides = [1, 1]} : vector<8x512xf32> to vector<8x128xf32>
    %cst_88 = arith.constant 5.000000e-01 : f32
    %236 = vector.broadcast %cst_88 : f32 to vector<8x128xf32>
    %237 = arith.mulf %236, %235 : vector<8x128xf32>
    %238 = math.tanh %237 : vector<8x128xf32>
    %cst_89 = arith.constant 5.000000e-01 : f32
    %239 = vector.broadcast %cst_89 : f32 to vector<8x128xf32>
    %240 = arith.mulf %239, %238 : vector<8x128xf32>
    %cst_90 = arith.constant 5.000000e-01 : f32
    %241 = vector.broadcast %cst_90 : f32 to vector<8x128xf32>
    %242 = arith.addf %240, %241 : vector<8x128xf32>
    %243 = vector.extract_strided_slice %226 {offsets = [0, 256], sizes = [8, 128], strides = [1, 1]} : vector<8x512xf32> to vector<8x128xf32>
    %244 = math.tanh %243 : vector<8x128xf32>
    %245 = vector.extract_strided_slice %226 {offsets = [0, 384], sizes = [8, 128], strides = [1, 1]} : vector<8x512xf32> to vector<8x128xf32>
    %cst_91 = arith.constant 5.000000e-01 : f32
    %246 = vector.broadcast %cst_91 : f32 to vector<8x128xf32>
    %247 = arith.mulf %246, %245 : vector<8x128xf32>
    %248 = math.tanh %247 : vector<8x128xf32>
    %cst_92 = arith.constant 5.000000e-01 : f32
    %249 = vector.broadcast %cst_92 : f32 to vector<8x128xf32>
    %250 = arith.mulf %249, %248 : vector<8x128xf32>
    %cst_93 = arith.constant 5.000000e-01 : f32
    %251 = vector.broadcast %cst_93 : f32 to vector<8x128xf32>
    %252 = arith.addf %250, %251 : vector<8x128xf32>
    %253 = arith.mulf %242, %213 : vector<8x128xf32>
    %254 = arith.mulf %234, %244 : vector<8x128xf32>
    %255 = arith.addf %253, %254 : vector<8x128xf32>
    %256 = math.tanh %255 : vector<8x128xf32>
    %257 = arith.mulf %252, %256 : vector<8x128xf32>
    %258 = arith.truncf %257 : vector<8x128xf32> to vector<8x128xbf16>
    %259 = arith.index_cast %c5_i32 : i32 to index
    %c0_94 = arith.constant 0 : index
    %c0_95 = arith.constant 0 : index
    %260 = vector.load %arg11[%259, %c0_94, %c0_95] : memref<8x8x128xbf16, #tpu.memory_space<vmem>>, vector<1x8x128xbf16>
    %261 = vector.shape_cast %260 : vector<1x8x128xbf16> to vector<8x128xbf16>
    %262 = vector.shape_cast %258 : vector<8x128xbf16> to vector<1x8x128xbf16>
    tpu.vector_store %arg11[%259, %c0_94, %c0_95], %262 {strides = array<i32>} : memref<8x8x128xbf16, #tpu.memory_space<vmem>>, vector<1x8x128xbf16>,
    %c6_i32 = arith.constant 6 : i32
    %263 = arith.index_cast %c6_i32 : i32 to index
    %c0_96 = arith.constant 0 : index
    %c0_97 = arith.constant 0 : index
    %264 = vector.load %arg10[%263, %c0_96, %c0_97] : memref<8x8x512xf32, #tpu.memory_space<vmem>>, vector<1x8x512xf32>
    %265 = vector.shape_cast %264 : vector<1x8x512xf32> to vector<8x512xf32>
    %266 = arith.truncf %257 : vector<8x128xf32> to vector<8x128xbf16>
    %cst_98 = arith.constant dense<0.000000e+00> : vector<8x512xf32>
    %267 = tpu.matmul %266, %9, %cst_98 {dimension_numbers = #tpu.dot_dimension_numbers<[1], [0], [0], [1], [0, 0, 1, 1], [], []>} : vector<8x128xbf16>, vector<128x512xbf16>, vector<8x512xf32> -> vector<8x512xf32>
    %268 = arith.addf %265, %267 : vector<8x512xf32>
    %269 = vector.extract_strided_slice %268 {offsets = [0, 0], sizes = [8, 128], strides = [1, 1]} : vector<8x512xf32> to vector<8x128xf32>
    %cst_99 = arith.constant 5.000000e-01 : f32
    %270 = vector.broadcast %cst_99 : f32 to vector<8x128xf32>
    %271 = arith.mulf %270, %269 : vector<8x128xf32>
    %272 = math.tanh %271 : vector<8x128xf32>
    %cst_100 = arith.constant 5.000000e-01 : f32
    %273 = vector.broadcast %cst_100 : f32 to vector<8x128xf32>
    %274 = arith.mulf %273, %272 : vector<8x128xf32>
    %cst_101 = arith.constant 5.000000e-01 : f32
    %275 = vector.broadcast %cst_101 : f32 to vector<8x128xf32>
    %276 = arith.addf %274, %275 : vector<8x128xf32>
    %277 = vector.extract_strided_slice %268 {offsets = [0, 128], sizes = [8, 128], strides = [1, 1]} : vector<8x512xf32> to vector<8x128xf32>
    %cst_102 = arith.constant 5.000000e-01 : f32
    %278 = vector.broadcast %cst_102 : f32 to vector<8x128xf32>
    %279 = arith.mulf %278, %277 : vector<8x128xf32>
    %280 = math.tanh %279 : vector<8x128xf32>
    %cst_103 = arith.constant 5.000000e-01 : f32
    %281 = vector.broadcast %cst_103 : f32 to vector<8x128xf32>
    %282 = arith.mulf %281, %280 : vector<8x128xf32>
    %cst_104 = arith.constant 5.000000e-01 : f32
    %283 = vector.broadcast %cst_104 : f32 to vector<8x128xf32>
    %284 = arith.addf %282, %283 : vector<8x128xf32>
    %285 = vector.extract_strided_slice %268 {offsets = [0, 256], sizes = [8, 128], strides = [1, 1]} : vector<8x512xf32> to vector<8x128xf32>
    %286 = math.tanh %285 : vector<8x128xf32>
    %287 = vector.extract_strided_slice %268 {offsets = [0, 384], sizes = [8, 128], strides = [1, 1]} : vector<8x512xf32> to vector<8x128xf32>
    %cst_105 = arith.constant 5.000000e-01 : f32
    %288 = vector.broadcast %cst_105 : f32 to vector<8x128xf32>
    %289 = arith.mulf %288, %287 : vector<8x128xf32>
    %290 = math.tanh %289 : vector<8x128xf32>
    %cst_106 = arith.constant 5.000000e-01 : f32
    %291 = vector.broadcast %cst_106 : f32 to vector<8x128xf32>
    %292 = arith.mulf %291, %290 : vector<8x128xf32>
    %cst_107 = arith.constant 5.000000e-01 : f32
    %293 = vector.broadcast %cst_107 : f32 to vector<8x128xf32>
    %294 = arith.addf %292, %293 : vector<8x128xf32>
    %295 = arith.mulf %284, %255 : vector<8x128xf32>
    %296 = arith.mulf %276, %286 : vector<8x128xf32>
    %297 = arith.addf %295, %296 : vector<8x128xf32>
    %298 = math.tanh %297 : vector<8x128xf32>
    %299 = arith.mulf %294, %298 : vector<8x128xf32>
    %300 = arith.truncf %299 : vector<8x128xf32> to vector<8x128xbf16>
    %301 = arith.index_cast %c6_i32 : i32 to index
    %c0_108 = arith.constant 0 : index
    %c0_109 = arith.constant 0 : index
    %302 = vector.load %arg11[%301, %c0_108, %c0_109] : memref<8x8x128xbf16, #tpu.memory_space<vmem>>, vector<1x8x128xbf16>
    %303 = vector.shape_cast %302 : vector<1x8x128xbf16> to vector<8x128xbf16>
    %304 = vector.shape_cast %300 : vector<8x128xbf16> to vector<1x8x128xbf16>
    tpu.vector_store %arg11[%301, %c0_108, %c0_109], %304 {strides = array<i32>} : memref<8x8x128xbf16, #tpu.memory_space<vmem>>, vector<1x8x128xbf16>,
    %c7_i32 = arith.constant 7 : i32
    %305 = arith.index_cast %c7_i32 : i32 to index
    %c0_110 = arith.constant 0 : index
    %c0_111 = arith.constant 0 : index
    %306 = vector.load %arg10[%305, %c0_110, %c0_111] : memref<8x8x512xf32, #tpu.memory_space<vmem>>, vector<1x8x512xf32>
    %307 = vector.shape_cast %306 : vector<1x8x512xf32> to vector<8x512xf32>
    %308 = arith.truncf %299 : vector<8x128xf32> to vector<8x128xbf16>
    %cst_112 = arith.constant dense<0.000000e+00> : vector<8x512xf32>
    %309 = tpu.matmul %308, %9, %cst_112 {dimension_numbers = #tpu.dot_dimension_numbers<[1], [0], [0], [1], [0, 0, 1, 1], [], []>} : vector<8x128xbf16>, vector<128x512xbf16>, vector<8x512xf32> -> vector<8x512xf32>
    %310 = arith.addf %307, %309 : vector<8x512xf32>
    %311 = vector.extract_strided_slice %310 {offsets = [0, 0], sizes = [8, 128], strides = [1, 1]} : vector<8x512xf32> to vector<8x128xf32>
    %cst_113 = arith.constant 5.000000e-01 : f32
    %312 = vector.broadcast %cst_113 : f32 to vector<8x128xf32>
    %313 = arith.mulf %312, %311 : vector<8x128xf32>
    %314 = math.tanh %313 : vector<8x128xf32>
    %cst_114 = arith.constant 5.000000e-01 : f32
    %315 = vector.broadcast %cst_114 : f32 to vector<8x128xf32>
    %316 = arith.mulf %315, %314 : vector<8x128xf32>
    %cst_115 = arith.constant 5.000000e-01 : f32
    %317 = vector.broadcast %cst_115 : f32 to vector<8x128xf32>
    %318 = arith.addf %316, %317 : vector<8x128xf32>
    %319 = vector.extract_strided_slice %310 {offsets = [0, 128], sizes = [8, 128], strides = [1, 1]} : vector<8x512xf32> to vector<8x128xf32>
    %cst_116 = arith.constant 5.000000e-01 : f32
    %320 = vector.broadcast %cst_116 : f32 to vector<8x128xf32>
    %321 = arith.mulf %320, %319 : vector<8x128xf32>
    %322 = math.tanh %321 : vector<8x128xf32>
    %cst_117 = arith.constant 5.000000e-01 : f32
    %323 = vector.broadcast %cst_117 : f32 to vector<8x128xf32>
    %324 = arith.mulf %323, %322 : vector<8x128xf32>
    %cst_118 = arith.constant 5.000000e-01 : f32
    %325 = vector.broadcast %cst_118 : f32 to vector<8x128xf32>
    %326 = arith.addf %324, %325 : vector<8x128xf32>
    %327 = vector.extract_strided_slice %310 {offsets = [0, 256], sizes = [8, 128], strides = [1, 1]} : vector<8x512xf32> to vector<8x128xf32>
    %328 = math.tanh %327 : vector<8x128xf32>
    %329 = vector.extract_strided_slice %310 {offsets = [0, 384], sizes = [8, 128], strides = [1, 1]} : vector<8x512xf32> to vector<8x128xf32>
    %cst_119 = arith.constant 5.000000e-01 : f32
    %330 = vector.broadcast %cst_119 : f32 to vector<8x128xf32>
    %331 = arith.mulf %330, %329 : vector<8x128xf32>
    %332 = math.tanh %331 : vector<8x128xf32>
    %cst_120 = arith.constant 5.000000e-01 : f32
    %333 = vector.broadcast %cst_120 : f32 to vector<8x128xf32>
    %334 = arith.mulf %333, %332 : vector<8x128xf32>
    %cst_121 = arith.constant 5.000000e-01 : f32
    %335 = vector.broadcast %cst_121 : f32 to vector<8x128xf32>
    %336 = arith.addf %334, %335 : vector<8x128xf32>
    %337 = arith.mulf %326, %297 : vector<8x128xf32>
    %338 = arith.mulf %318, %328 : vector<8x128xf32>
    %339 = arith.addf %337, %338 : vector<8x128xf32>
    %340 = math.tanh %339 : vector<8x128xf32>
    %341 = arith.mulf %336, %340 : vector<8x128xf32>
    %342 = arith.truncf %341 : vector<8x128xf32> to vector<8x128xbf16>
    %343 = arith.index_cast %c7_i32 : i32 to index
    %c0_122 = arith.constant 0 : index
    %c0_123 = arith.constant 0 : index
    %344 = vector.load %arg11[%343, %c0_122, %c0_123] : memref<8x8x128xbf16, #tpu.memory_space<vmem>>, vector<1x8x128xbf16>
    %345 = vector.shape_cast %344 : vector<1x8x128xbf16> to vector<8x128xbf16>
    %346 = vector.shape_cast %342 : vector<8x128xbf16> to vector<1x8x128xbf16>
    tpu.vector_store %arg11[%343, %c0_122, %c0_123], %346 {strides = array<i32>} : memref<8x8x128xbf16, #tpu.memory_space<vmem>>, vector<1x8x128xbf16>,
    %c8_i32 = arith.constant 8 : i32
    %c0_124 = arith.constant 0 : index
    %c0_125 = arith.constant 0 : index
    %c0_126 = arith.constant 0 : index
    %347 = vector.load %arg11[%c0_124, %c0_125, %c0_126] : memref<8x8x128xbf16, #tpu.memory_space<vmem>>, vector<8x8x128xbf16>
    %348 = vector.shape_cast %347 : vector<8x8x128xbf16> to vector<64x128xbf16>
    %c0_127 = arith.constant 0 : index
    %c0_128 = arith.constant 0 : index
    %349 = vector.load %arg4[%c0_127, %c0_128] : memref<128x512xbf16, #tpu.memory_space<vmem>>, vector<128x512xbf16>
    %cst_129 = arith.constant dense<0.000000e+00> : vector<64x512xf32>
    %350 = tpu.matmul %348, %349, %cst_129 {dimension_numbers = #tpu.dot_dimension_numbers<[1], [0], [0], [1], [0, 0, 1, 1], [], []>} : vector<64x128xbf16>, vector<128x512xbf16>, vector<64x512xf32> -> vector<64x512xf32>
    %c0_130 = arith.constant 0 : index
    %c0_131 = arith.constant 0 : index
    %351 = vector.load %arg6[%c0_130, %c0_131] : memref<1x512xf32, #tpu.memory_space<vmem>>, vector<1x512xf32>
    %352 = vector.broadcast %351 : vector<1x512xf32> to vector<64x512xf32>
    %353 = arith.addf %350, %352 : vector<64x512xf32>
    %354 = vector.shape_cast %353 : vector<64x512xf32> to vector<8x8x512xf32>
    %c0_132 = arith.constant 0 : index
    %c0_133 = arith.constant 0 : index
    %c0_134 = arith.constant 0 : index
    %355 = vector.load %arg10[%c0_132, %c0_133, %c0_134] : memref<8x8x512xf32, #tpu.memory_space<vmem>>, vector<8x8x512xf32>
    tpu.vector_store %arg10[%c0_132, %c0_133, %c0_134], %354 {strides = array<i32>} : memref<8x8x512xf32, #tpu.memory_space<vmem>>, vector<8x8x512xf32>,
    %c0_135 = arith.constant 0 : index
    %c0_136 = arith.constant 0 : index
    %356 = vector.load %arg5[%c0_135, %c0_136] : memref<128x512xbf16, #tpu.memory_space<vmem>>, vector<128x512xbf16>
    %cst_137 = arith.constant 0.000000e+00 : f32
    %357 = vector.broadcast %cst_137 : f32 to vector<8x128xf32>
    %c0_i32_138 = arith.constant 0 : i32
    %358 = arith.index_cast %c0_i32_138 : i32 to index
    %c0_139 = arith.constant 0 : index
    %c0_140 = arith.constant 0 : index
    %359 = vector.load %arg10[%358, %c0_139, %c0_140] : memref<8x8x512xf32, #tpu.memory_space<vmem>>, vector<1x8x512xf32>
    %360 = vector.shape_cast %359 : vector<1x8x512xf32> to vector<8x512xf32>
    %361 = arith.truncf %357 : vector<8x128xf32> to vector<8x128xbf16>
    %cst_141 = arith.constant dense<0.000000e+00> : vector<8x512xf32>
    %362 = tpu.matmul %361, %356, %cst_141 {dimension_numbers = #tpu.dot_dimension_numbers<[1], [0], [0], [1], [0, 0, 1, 1], [], []>} : vector<8x128xbf16>, vector<128x512xbf16>, vector<8x512xf32> -> vector<8x512xf32>
    %363 = arith.addf %360, %362 : vector<8x512xf32>
    %364 = vector.extract_strided_slice %363 {offsets = [0, 0], sizes = [8, 128], strides = [1, 1]} : vector<8x512xf32> to vector<8x128xf32>
    %cst_142 = arith.constant 5.000000e-01 : f32
    %365 = vector.broadcast %cst_142 : f32 to vector<8x128xf32>
    %366 = arith.mulf %365, %364 : vector<8x128xf32>
    %367 = math.tanh %366 : vector<8x128xf32>
    %cst_143 = arith.constant 5.000000e-01 : f32
    %368 = vector.broadcast %cst_143 : f32 to vector<8x128xf32>
    %369 = arith.mulf %368, %367 : vector<8x128xf32>
    %cst_144 = arith.constant 5.000000e-01 : f32
    %370 = vector.broadcast %cst_144 : f32 to vector<8x128xf32>
    %371 = arith.addf %369, %370 : vector<8x128xf32>
    %372 = vector.extract_strided_slice %363 {offsets = [0, 128], sizes = [8, 128], strides = [1, 1]} : vector<8x512xf32> to vector<8x128xf32>
    %cst_145 = arith.constant 5.000000e-01 : f32
    %373 = vector.broadcast %cst_145 : f32 to vector<8x128xf32>
    %374 = arith.mulf %373, %372 : vector<8x128xf32>
    %375 = math.tanh %374 : vector<8x128xf32>
    %cst_146 = arith.constant 5.000000e-01 : f32
    %376 = vector.broadcast %cst_146 : f32 to vector<8x128xf32>
    %377 = arith.mulf %376, %375 : vector<8x128xf32>
    %cst_147 = arith.constant 5.000000e-01 : f32
    %378 = vector.broadcast %cst_147 : f32 to vector<8x128xf32>
    %379 = arith.addf %377, %378 : vector<8x128xf32>
    %380 = vector.extract_strided_slice %363 {offsets = [0, 256], sizes = [8, 128], strides = [1, 1]} : vector<8x512xf32> to vector<8x128xf32>
    %381 = math.tanh %380 : vector<8x128xf32>
    %382 = vector.extract_strided_slice %363 {offsets = [0, 384], sizes = [8, 128], strides = [1, 1]} : vector<8x512xf32> to vector<8x128xf32>
    %cst_148 = arith.constant 5.000000e-01 : f32
    %383 = vector.broadcast %cst_148 : f32 to vector<8x128xf32>
    %384 = arith.mulf %383, %382 : vector<8x128xf32>
    %385 = math.tanh %384 : vector<8x128xf32>
    %cst_149 = arith.constant 5.000000e-01 : f32
    %386 = vector.broadcast %cst_149 : f32 to vector<8x128xf32>
    %387 = arith.mulf %386, %385 : vector<8x128xf32>
    %cst_150 = arith.constant 5.000000e-01 : f32
    %388 = vector.broadcast %cst_150 : f32 to vector<8x128xf32>
    %389 = arith.addf %387, %388 : vector<8x128xf32>
    %390 = arith.mulf %379, %357 : vector<8x128xf32>
    %391 = arith.mulf %371, %381 : vector<8x128xf32>
    %392 = arith.addf %390, %391 : vector<8x128xf32>
    %393 = math.tanh %392 : vector<8x128xf32>
    %394 = arith.mulf %389, %393 : vector<8x128xf32>
    %395 = arith.truncf %394 : vector<8x128xf32> to vector<8x128xbf16>
    %396 = arith.index_cast %c0_i32_138 : i32 to index
    %c0_151 = arith.constant 0 : index
    %c0_152 = arith.constant 0 : index
    %397 = vector.load %arg11[%396, %c0_151, %c0_152] : memref<8x8x128xbf16, #tpu.memory_space<vmem>>, vector<1x8x128xbf16>
    %398 = vector.shape_cast %397 : vector<1x8x128xbf16> to vector<8x128xbf16>
    %399 = vector.shape_cast %395 : vector<8x128xbf16> to vector<1x8x128xbf16>
    tpu.vector_store %arg11[%396, %c0_151, %c0_152], %399 {strides = array<i32>} : memref<8x8x128xbf16, #tpu.memory_space<vmem>>, vector<1x8x128xbf16>,
    %c1_i32_153 = arith.constant 1 : i32
    %400 = arith.index_cast %c1_i32_153 : i32 to index
    %c0_154 = arith.constant 0 : index
    %c0_155 = arith.constant 0 : index
    %401 = vector.load %arg10[%400, %c0_154, %c0_155] : memref<8x8x512xf32, #tpu.memory_space<vmem>>, vector<1x8x512xf32>
    %402 = vector.shape_cast %401 : vector<1x8x512xf32> to vector<8x512xf32>
    %403 = arith.truncf %394 : vector<8x128xf32> to vector<8x128xbf16>
    %cst_156 = arith.constant dense<0.000000e+00> : vector<8x512xf32>
    %404 = tpu.matmul %403, %356, %cst_156 {dimension_numbers = #tpu.dot_dimension_numbers<[1], [0], [0], [1], [0, 0, 1, 1], [], []>} : vector<8x128xbf16>, vector<128x512xbf16>, vector<8x512xf32> -> vector<8x512xf32>
    %405 = arith.addf %402, %404 : vector<8x512xf32>
    %406 = vector.extract_strided_slice %405 {offsets = [0, 0], sizes = [8, 128], strides = [1, 1]} : vector<8x512xf32> to vector<8x128xf32>
    %cst_157 = arith.constant 5.000000e-01 : f32
    %407 = vector.broadcast %cst_157 : f32 to vector<8x128xf32>
    %408 = arith.mulf %407, %406 : vector<8x128xf32>
    %409 = math.tanh %408 : vector<8x128xf32>
    %cst_158 = arith.constant 5.000000e-01 : f32
    %410 = vector.broadcast %cst_158 : f32 to vector<8x128xf32>
    %411 = arith.mulf %410, %409 : vector<8x128xf32>
    %cst_159 = arith.constant 5.000000e-01 : f32
    %412 = vector.broadcast %cst_159 : f32 to vector<8x128xf32>
    %413 = arith.addf %411, %412 : vector<8x128xf32>
    %414 = vector.extract_strided_slice %405 {offsets = [0, 128], sizes = [8, 128], strides = [1, 1]} : vector<8x512xf32> to vector<8x128xf32>
    %cst_160 = arith.constant 5.000000e-01 : f32
    %415 = vector.broadcast %cst_160 : f32 to vector<8x128xf32>
    %416 = arith.mulf %415, %414 : vector<8x128xf32>
    %417 = math.tanh %416 : vector<8x128xf32>
    %cst_161 = arith.constant 5.000000e-01 : f32
    %418 = vector.broadcast %cst_161 : f32 to vector<8x128xf32>
    %419 = arith.mulf %418, %417 : vector<8x128xf32>
    %cst_162 = arith.constant 5.000000e-01 : f32
    %420 = vector.broadcast %cst_162 : f32 to vector<8x128xf32>
    %421 = arith.addf %419, %420 : vector<8x128xf32>
    %422 = vector.extract_strided_slice %405 {offsets = [0, 256], sizes = [8, 128], strides = [1, 1]} : vector<8x512xf32> to vector<8x128xf32>
    %423 = math.tanh %422 : vector<8x128xf32>
    %424 = vector.extract_strided_slice %405 {offsets = [0, 384], sizes = [8, 128], strides = [1, 1]} : vector<8x512xf32> to vector<8x128xf32>
    %cst_163 = arith.constant 5.000000e-01 : f32
    %425 = vector.broadcast %cst_163 : f32 to vector<8x128xf32>
    %426 = arith.mulf %425, %424 : vector<8x128xf32>
    %427 = math.tanh %426 : vector<8x128xf32>
    %cst_164 = arith.constant 5.000000e-01 : f32
    %428 = vector.broadcast %cst_164 : f32 to vector<8x128xf32>
    %429 = arith.mulf %428, %427 : vector<8x128xf32>
    %cst_165 = arith.constant 5.000000e-01 : f32
    %430 = vector.broadcast %cst_165 : f32 to vector<8x128xf32>
    %431 = arith.addf %429, %430 : vector<8x128xf32>
    %432 = arith.mulf %421, %392 : vector<8x128xf32>
    %433 = arith.mulf %413, %423 : vector<8x128xf32>
    %434 = arith.addf %432, %433 : vector<8x128xf32>
    %435 = math.tanh %434 : vector<8x128xf32>
    %436 = arith.mulf %431, %435 : vector<8x128xf32>
    %437 = arith.truncf %436 : vector<8x128xf32> to vector<8x128xbf16>
    %438 = arith.index_cast %c1_i32_153 : i32 to index
    %c0_166 = arith.constant 0 : index
    %c0_167 = arith.constant 0 : index
    %439 = vector.load %arg11[%438, %c0_166, %c0_167] : memref<8x8x128xbf16, #tpu.memory_space<vmem>>, vector<1x8x128xbf16>
    %440 = vector.shape_cast %439 : vector<1x8x128xbf16> to vector<8x128xbf16>
    %441 = vector.shape_cast %437 : vector<8x128xbf16> to vector<1x8x128xbf16>
    tpu.vector_store %arg11[%438, %c0_166, %c0_167], %441 {strides = array<i32>} : memref<8x8x128xbf16, #tpu.memory_space<vmem>>, vector<1x8x128xbf16>,
    %c2_i32_168 = arith.constant 2 : i32
    %442 = arith.index_cast %c2_i32_168 : i32 to index
    %c0_169 = arith.constant 0 : index
    %c0_170 = arith.constant 0 : index
    %443 = vector.load %arg10[%442, %c0_169, %c0_170] : memref<8x8x512xf32, #tpu.memory_space<vmem>>, vector<1x8x512xf32>
    %444 = vector.shape_cast %443 : vector<1x8x512xf32> to vector<8x512xf32>
    %445 = arith.truncf %436 : vector<8x128xf32> to vector<8x128xbf16>
    %cst_171 = arith.constant dense<0.000000e+00> : vector<8x512xf32>
    %446 = tpu.matmul %445, %356, %cst_171 {dimension_numbers = #tpu.dot_dimension_numbers<[1], [0], [0], [1], [0, 0, 1, 1], [], []>} : vector<8x128xbf16>, vector<128x512xbf16>, vector<8x512xf32> -> vector<8x512xf32>
    %447 = arith.addf %444, %446 : vector<8x512xf32>
    %448 = vector.extract_strided_slice %447 {offsets = [0, 0], sizes = [8, 128], strides = [1, 1]} : vector<8x512xf32> to vector<8x128xf32>
    %cst_172 = arith.constant 5.000000e-01 : f32
    %449 = vector.broadcast %cst_172 : f32 to vector<8x128xf32>
    %450 = arith.mulf %449, %448 : vector<8x128xf32>
    %451 = math.tanh %450 : vector<8x128xf32>
    %cst_173 = arith.constant 5.000000e-01 : f32
    %452 = vector.broadcast %cst_173 : f32 to vector<8x128xf32>
    %453 = arith.mulf %452, %451 : vector<8x128xf32>
    %cst_174 = arith.constant 5.000000e-01 : f32
    %454 = vector.broadcast %cst_174 : f32 to vector<8x128xf32>
    %455 = arith.addf %453, %454 : vector<8x128xf32>
    %456 = vector.extract_strided_slice %447 {offsets = [0, 128], sizes = [8, 128], strides = [1, 1]} : vector<8x512xf32> to vector<8x128xf32>
    %cst_175 = arith.constant 5.000000e-01 : f32
    %457 = vector.broadcast %cst_175 : f32 to vector<8x128xf32>
    %458 = arith.mulf %457, %456 : vector<8x128xf32>
    %459 = math.tanh %458 : vector<8x128xf32>
    %cst_176 = arith.constant 5.000000e-01 : f32
    %460 = vector.broadcast %cst_176 : f32 to vector<8x128xf32>
    %461 = arith.mulf %460, %459 : vector<8x128xf32>
    %cst_177 = arith.constant 5.000000e-01 : f32
    %462 = vector.broadcast %cst_177 : f32 to vector<8x128xf32>
    %463 = arith.addf %461, %462 : vector<8x128xf32>
    %464 = vector.extract_strided_slice %447 {offsets = [0, 256], sizes = [8, 128], strides = [1, 1]} : vector<8x512xf32> to vector<8x128xf32>
    %465 = math.tanh %464 : vector<8x128xf32>
    %466 = vector.extract_strided_slice %447 {offsets = [0, 384], sizes = [8, 128], strides = [1, 1]} : vector<8x512xf32> to vector<8x128xf32>
    %cst_178 = arith.constant 5.000000e-01 : f32
    %467 = vector.broadcast %cst_178 : f32 to vector<8x128xf32>
    %468 = arith.mulf %467, %466 : vector<8x128xf32>
    %469 = math.tanh %468 : vector<8x128xf32>
    %cst_179 = arith.constant 5.000000e-01 : f32
    %470 = vector.broadcast %cst_179 : f32 to vector<8x128xf32>
    %471 = arith.mulf %470, %469 : vector<8x128xf32>
    %cst_180 = arith.constant 5.000000e-01 : f32
    %472 = vector.broadcast %cst_180 : f32 to vector<8x128xf32>
    %473 = arith.addf %471, %472 : vector<8x128xf32>
    %474 = arith.mulf %463, %434 : vector<8x128xf32>
    %475 = arith.mulf %455, %465 : vector<8x128xf32>
    %476 = arith.addf %474, %475 : vector<8x128xf32>
    %477 = math.tanh %476 : vector<8x128xf32>
    %478 = arith.mulf %473, %477 : vector<8x128xf32>
    %479 = arith.truncf %478 : vector<8x128xf32> to vector<8x128xbf16>
    %480 = arith.index_cast %c2_i32_168 : i32 to index
    %c0_181 = arith.constant 0 : index
    %c0_182 = arith.constant 0 : index
    %481 = vector.load %arg11[%480, %c0_181, %c0_182] : memref<8x8x128xbf16, #tpu.memory_space<vmem>>, vector<1x8x128xbf16>
    %482 = vector.shape_cast %481 : vector<1x8x128xbf16> to vector<8x128xbf16>
    %483 = vector.shape_cast %479 : vector<8x128xbf16> to vector<1x8x128xbf16>
    tpu.vector_store %arg11[%480, %c0_181, %c0_182], %483 {strides = array<i32>} : memref<8x8x128xbf16, #tpu.memory_space<vmem>>, vector<1x8x128xbf16>,
    %c3_i32_183 = arith.constant 3 : i32
    %484 = arith.index_cast %c3_i32_183 : i32 to index
    %c0_184 = arith.constant 0 : index
    %c0_185 = arith.constant 0 : index
    %485 = vector.load %arg10[%484, %c0_184, %c0_185] : memref<8x8x512xf32, #tpu.memory_space<vmem>>, vector<1x8x512xf32>
    %486 = vector.shape_cast %485 : vector<1x8x512xf32> to vector<8x512xf32>
    %487 = arith.truncf %478 : vector<8x128xf32> to vector<8x128xbf16>
    %cst_186 = arith.constant dense<0.000000e+00> : vector<8x512xf32>
    %488 = tpu.matmul %487, %356, %cst_186 {dimension_numbers = #tpu.dot_dimension_numbers<[1], [0], [0], [1], [0, 0, 1, 1], [], []>} : vector<8x128xbf16>, vector<128x512xbf16>, vector<8x512xf32> -> vector<8x512xf32>
    %489 = arith.addf %486, %488 : vector<8x512xf32>
    %490 = vector.extract_strided_slice %489 {offsets = [0, 0], sizes = [8, 128], strides = [1, 1]} : vector<8x512xf32> to vector<8x128xf32>
    %cst_187 = arith.constant 5.000000e-01 : f32
    %491 = vector.broadcast %cst_187 : f32 to vector<8x128xf32>
    %492 = arith.mulf %491, %490 : vector<8x128xf32>
    %493 = math.tanh %492 : vector<8x128xf32>
    %cst_188 = arith.constant 5.000000e-01 : f32
    %494 = vector.broadcast %cst_188 : f32 to vector<8x128xf32>
    %495 = arith.mulf %494, %493 : vector<8x128xf32>
    %cst_189 = arith.constant 5.000000e-01 : f32
    %496 = vector.broadcast %cst_189 : f32 to vector<8x128xf32>
    %497 = arith.addf %495, %496 : vector<8x128xf32>
    %498 = vector.extract_strided_slice %489 {offsets = [0, 128], sizes = [8, 128], strides = [1, 1]} : vector<8x512xf32> to vector<8x128xf32>
    %cst_190 = arith.constant 5.000000e-01 : f32
    %499 = vector.broadcast %cst_190 : f32 to vector<8x128xf32>
    %500 = arith.mulf %499, %498 : vector<8x128xf32>
    %501 = math.tanh %500 : vector<8x128xf32>
    %cst_191 = arith.constant 5.000000e-01 : f32
    %502 = vector.broadcast %cst_191 : f32 to vector<8x128xf32>
    %503 = arith.mulf %502, %501 : vector<8x128xf32>
    %cst_192 = arith.constant 5.000000e-01 : f32
    %504 = vector.broadcast %cst_192 : f32 to vector<8x128xf32>
    %505 = arith.addf %503, %504 : vector<8x128xf32>
    %506 = vector.extract_strided_slice %489 {offsets = [0, 256], sizes = [8, 128], strides = [1, 1]} : vector<8x512xf32> to vector<8x128xf32>
    %507 = math.tanh %506 : vector<8x128xf32>
    %508 = vector.extract_strided_slice %489 {offsets = [0, 384], sizes = [8, 128], strides = [1, 1]} : vector<8x512xf32> to vector<8x128xf32>
    %cst_193 = arith.constant 5.000000e-01 : f32
    %509 = vector.broadcast %cst_193 : f32 to vector<8x128xf32>
    %510 = arith.mulf %509, %508 : vector<8x128xf32>
    %511 = math.tanh %510 : vector<8x128xf32>
    %cst_194 = arith.constant 5.000000e-01 : f32
    %512 = vector.broadcast %cst_194 : f32 to vector<8x128xf32>
    %513 = arith.mulf %512, %511 : vector<8x128xf32>
    %cst_195 = arith.constant 5.000000e-01 : f32
    %514 = vector.broadcast %cst_195 : f32 to vector<8x128xf32>
    %515 = arith.addf %513, %514 : vector<8x128xf32>
    %516 = arith.mulf %505, %476 : vector<8x128xf32>
    %517 = arith.mulf %497, %507 : vector<8x128xf32>
    %518 = arith.addf %516, %517 : vector<8x128xf32>
    %519 = math.tanh %518 : vector<8x128xf32>
    %520 = arith.mulf %515, %519 : vector<8x128xf32>
    %521 = arith.truncf %520 : vector<8x128xf32> to vector<8x128xbf16>
    %522 = arith.index_cast %c3_i32_183 : i32 to index
    %c0_196 = arith.constant 0 : index
    %c0_197 = arith.constant 0 : index
    %523 = vector.load %arg11[%522, %c0_196, %c0_197] : memref<8x8x128xbf16, #tpu.memory_space<vmem>>, vector<1x8x128xbf16>
    %524 = vector.shape_cast %523 : vector<1x8x128xbf16> to vector<8x128xbf16>
    %525 = vector.shape_cast %521 : vector<8x128xbf16> to vector<1x8x128xbf16>
    tpu.vector_store %arg11[%522, %c0_196, %c0_197], %525 {strides = array<i32>} : memref<8x8x128xbf16, #tpu.memory_space<vmem>>, vector<1x8x128xbf16>,
    %c4_i32_198 = arith.constant 4 : i32
    %526 = arith.index_cast %c4_i32_198 : i32 to index
    %c0_199 = arith.constant 0 : index
    %c0_200 = arith.constant 0 : index
    %527 = vector.load %arg10[%526, %c0_199, %c0_200] : memref<8x8x512xf32, #tpu.memory_space<vmem>>, vector<1x8x512xf32>
    %528 = vector.shape_cast %527 : vector<1x8x512xf32> to vector<8x512xf32>
    %529 = arith.truncf %520 : vector<8x128xf32> to vector<8x128xbf16>
    %cst_201 = arith.constant dense<0.000000e+00> : vector<8x512xf32>
    %530 = tpu.matmul %529, %356, %cst_201 {dimension_numbers = #tpu.dot_dimension_numbers<[1], [0], [0], [1], [0, 0, 1, 1], [], []>} : vector<8x128xbf16>, vector<128x512xbf16>, vector<8x512xf32> -> vector<8x512xf32>
    %531 = arith.addf %528, %530 : vector<8x512xf32>
    %532 = vector.extract_strided_slice %531 {offsets = [0, 0], sizes = [8, 128], strides = [1, 1]} : vector<8x512xf32> to vector<8x128xf32>
    %cst_202 = arith.constant 5.000000e-01 : f32
    %533 = vector.broadcast %cst_202 : f32 to vector<8x128xf32>
    %534 = arith.mulf %533, %532 : vector<8x128xf32>
    %535 = math.tanh %534 : vector<8x128xf32>
    %cst_203 = arith.constant 5.000000e-01 : f32
    %536 = vector.broadcast %cst_203 : f32 to vector<8x128xf32>
    %537 = arith.mulf %536, %535 : vector<8x128xf32>
    %cst_204 = arith.constant 5.000000e-01 : f32
    %538 = vector.broadcast %cst_204 : f32 to vector<8x128xf32>
    %539 = arith.addf %537, %538 : vector<8x128xf32>
    %540 = vector.extract_strided_slice %531 {offsets = [0, 128], sizes = [8, 128], strides = [1, 1]} : vector<8x512xf32> to vector<8x128xf32>
    %cst_205 = arith.constant 5.000000e-01 : f32
    %541 = vector.broadcast %cst_205 : f32 to vector<8x128xf32>
    %542 = arith.mulf %541, %540 : vector<8x128xf32>
    %543 = math.tanh %542 : vector<8x128xf32>
    %cst_206 = arith.constant 5.000000e-01 : f32
    %544 = vector.broadcast %cst_206 : f32 to vector<8x128xf32>
    %545 = arith.mulf %544, %543 : vector<8x128xf32>
    %cst_207 = arith.constant 5.000000e-01 : f32
    %546 = vector.broadcast %cst_207 : f32 to vector<8x128xf32>
    %547 = arith.addf %545, %546 : vector<8x128xf32>
    %548 = vector.extract_strided_slice %531 {offsets = [0, 256], sizes = [8, 128], strides = [1, 1]} : vector<8x512xf32> to vector<8x128xf32>
    %549 = math.tanh %548 : vector<8x128xf32>
    %550 = vector.extract_strided_slice %531 {offsets = [0, 384], sizes = [8, 128], strides = [1, 1]} : vector<8x512xf32> to vector<8x128xf32>
    %cst_208 = arith.constant 5.000000e-01 : f32
    %551 = vector.broadcast %cst_208 : f32 to vector<8x128xf32>
    %552 = arith.mulf %551, %550 : vector<8x128xf32>
    %553 = math.tanh %552 : vector<8x128xf32>
    %cst_209 = arith.constant 5.000000e-01 : f32
    %554 = vector.broadcast %cst_209 : f32 to vector<8x128xf32>
    %555 = arith.mulf %554, %553 : vector<8x128xf32>
    %cst_210 = arith.constant 5.000000e-01 : f32
    %556 = vector.broadcast %cst_210 : f32 to vector<8x128xf32>
    %557 = arith.addf %555, %556 : vector<8x128xf32>
    %558 = arith.mulf %547, %518 : vector<8x128xf32>
    %559 = arith.mulf %539, %549 : vector<8x128xf32>
    %560 = arith.addf %558, %559 : vector<8x128xf32>
    %561 = math.tanh %560 : vector<8x128xf32>
    %562 = arith.mulf %557, %561 : vector<8x128xf32>
    %563 = arith.truncf %562 : vector<8x128xf32> to vector<8x128xbf16>
    %564 = arith.index_cast %c4_i32_198 : i32 to index
    %c0_211 = arith.constant 0 : index
    %c0_212 = arith.constant 0 : index
    %565 = vector.load %arg11[%564, %c0_211, %c0_212] : memref<8x8x128xbf16, #tpu.memory_space<vmem>>, vector<1x8x128xbf16>
    %566 = vector.shape_cast %565 : vector<1x8x128xbf16> to vector<8x128xbf16>
    %567 = vector.shape_cast %563 : vector<8x128xbf16> to vector<1x8x128xbf16>
    tpu.vector_store %arg11[%564, %c0_211, %c0_212], %567 {strides = array<i32>} : memref<8x8x128xbf16, #tpu.memory_space<vmem>>, vector<1x8x128xbf16>,
    %c5_i32_213 = arith.constant 5 : i32
    %568 = arith.index_cast %c5_i32_213 : i32 to index
    %c0_214 = arith.constant 0 : index
    %c0_215 = arith.constant 0 : index
    %569 = vector.load %arg10[%568, %c0_214, %c0_215] : memref<8x8x512xf32, #tpu.memory_space<vmem>>, vector<1x8x512xf32>
    %570 = vector.shape_cast %569 : vector<1x8x512xf32> to vector<8x512xf32>
    %571 = arith.truncf %562 : vector<8x128xf32> to vector<8x128xbf16>
    %cst_216 = arith.constant dense<0.000000e+00> : vector<8x512xf32>
    %572 = tpu.matmul %571, %356, %cst_216 {dimension_numbers = #tpu.dot_dimension_numbers<[1], [0], [0], [1], [0, 0, 1, 1], [], []>} : vector<8x128xbf16>, vector<128x512xbf16>, vector<8x512xf32> -> vector<8x512xf32>
    %573 = arith.addf %570, %572 : vector<8x512xf32>
    %574 = vector.extract_strided_slice %573 {offsets = [0, 0], sizes = [8, 128], strides = [1, 1]} : vector<8x512xf32> to vector<8x128xf32>
    %cst_217 = arith.constant 5.000000e-01 : f32
    %575 = vector.broadcast %cst_217 : f32 to vector<8x128xf32>
    %576 = arith.mulf %575, %574 : vector<8x128xf32>
    %577 = math.tanh %576 : vector<8x128xf32>
    %cst_218 = arith.constant 5.000000e-01 : f32
    %578 = vector.broadcast %cst_218 : f32 to vector<8x128xf32>
    %579 = arith.mulf %578, %577 : vector<8x128xf32>
    %cst_219 = arith.constant 5.000000e-01 : f32
    %580 = vector.broadcast %cst_219 : f32 to vector<8x128xf32>
    %581 = arith.addf %579, %580 : vector<8x128xf32>
    %582 = vector.extract_strided_slice %573 {offsets = [0, 128], sizes = [8, 128], strides = [1, 1]} : vector<8x512xf32> to vector<8x128xf32>
    %cst_220 = arith.constant 5.000000e-01 : f32
    %583 = vector.broadcast %cst_220 : f32 to vector<8x128xf32>
    %584 = arith.mulf %583, %582 : vector<8x128xf32>
    %585 = math.tanh %584 : vector<8x128xf32>
    %cst_221 = arith.constant 5.000000e-01 : f32
    %586 = vector.broadcast %cst_221 : f32 to vector<8x128xf32>
    %587 = arith.mulf %586, %585 : vector<8x128xf32>
    %cst_222 = arith.constant 5.000000e-01 : f32
    %588 = vector.broadcast %cst_222 : f32 to vector<8x128xf32>
    %589 = arith.addf %587, %588 : vector<8x128xf32>
    %590 = vector.extract_strided_slice %573 {offsets = [0, 256], sizes = [8, 128], strides = [1, 1]} : vector<8x512xf32> to vector<8x128xf32>
    %591 = math.tanh %590 : vector<8x128xf32>
    %592 = vector.extract_strided_slice %573 {offsets = [0, 384], sizes = [8, 128], strides = [1, 1]} : vector<8x512xf32> to vector<8x128xf32>
    %cst_223 = arith.constant 5.000000e-01 : f32
    %593 = vector.broadcast %cst_223 : f32 to vector<8x128xf32>
    %594 = arith.mulf %593, %592 : vector<8x128xf32>
    %595 = math.tanh %594 : vector<8x128xf32>
    %cst_224 = arith.constant 5.000000e-01 : f32
    %596 = vector.broadcast %cst_224 : f32 to vector<8x128xf32>
    %597 = arith.mulf %596, %595 : vector<8x128xf32>
    %cst_225 = arith.constant 5.000000e-01 : f32
    %598 = vector.broadcast %cst_225 : f32 to vector<8x128xf32>
    %599 = arith.addf %597, %598 : vector<8x128xf32>
    %600 = arith.mulf %589, %560 : vector<8x128xf32>
    %601 = arith.mulf %581, %591 : vector<8x128xf32>
    %602 = arith.addf %600, %601 : vector<8x128xf32>
    %603 = math.tanh %602 : vector<8x128xf32>
    %604 = arith.mulf %599, %603 : vector<8x128xf32>
    %605 = arith.truncf %604 : vector<8x128xf32> to vector<8x128xbf16>
    %606 = arith.index_cast %c5_i32_213 : i32 to index
    %c0_226 = arith.constant 0 : index
    %c0_227 = arith.constant 0 : index
    %607 = vector.load %arg11[%606, %c0_226, %c0_227] : memref<8x8x128xbf16, #tpu.memory_space<vmem>>, vector<1x8x128xbf16>
    %608 = vector.shape_cast %607 : vector<1x8x128xbf16> to vector<8x128xbf16>
    %609 = vector.shape_cast %605 : vector<8x128xbf16> to vector<1x8x128xbf16>
    tpu.vector_store %arg11[%606, %c0_226, %c0_227], %609 {strides = array<i32>} : memref<8x8x128xbf16, #tpu.memory_space<vmem>>, vector<1x8x128xbf16>,
    %c6_i32_228 = arith.constant 6 : i32
    %610 = arith.index_cast %c6_i32_228 : i32 to index
    %c0_229 = arith.constant 0 : index
    %c0_230 = arith.constant 0 : index
    %611 = vector.load %arg10[%610, %c0_229, %c0_230] : memref<8x8x512xf32, #tpu.memory_space<vmem>>, vector<1x8x512xf32>
    %612 = vector.shape_cast %611 : vector<1x8x512xf32> to vector<8x512xf32>
    %613 = arith.truncf %604 : vector<8x128xf32> to vector<8x128xbf16>
    %cst_231 = arith.constant dense<0.000000e+00> : vector<8x512xf32>
    %614 = tpu.matmul %613, %356, %cst_231 {dimension_numbers = #tpu.dot_dimension_numbers<[1], [0], [0], [1], [0, 0, 1, 1], [], []>} : vector<8x128xbf16>, vector<128x512xbf16>, vector<8x512xf32> -> vector<8x512xf32>
    %615 = arith.addf %612, %614 : vector<8x512xf32>
    %616 = vector.extract_strided_slice %615 {offsets = [0, 0], sizes = [8, 128], strides = [1, 1]} : vector<8x512xf32> to vector<8x128xf32>
    %cst_232 = arith.constant 5.000000e-01 : f32
    %617 = vector.broadcast %cst_232 : f32 to vector<8x128xf32>
    %618 = arith.mulf %617, %616 : vector<8x128xf32>
    %619 = math.tanh %618 : vector<8x128xf32>
    %cst_233 = arith.constant 5.000000e-01 : f32
    %620 = vector.broadcast %cst_233 : f32 to vector<8x128xf32>
    %621 = arith.mulf %620, %619 : vector<8x128xf32>
    %cst_234 = arith.constant 5.000000e-01 : f32
    %622 = vector.broadcast %cst_234 : f32 to vector<8x128xf32>
    %623 = arith.addf %621, %622 : vector<8x128xf32>
    %624 = vector.extract_strided_slice %615 {offsets = [0, 128], sizes = [8, 128], strides = [1, 1]} : vector<8x512xf32> to vector<8x128xf32>
    %cst_235 = arith.constant 5.000000e-01 : f32
    %625 = vector.broadcast %cst_235 : f32 to vector<8x128xf32>
    %626 = arith.mulf %625, %624 : vector<8x128xf32>
    %627 = math.tanh %626 : vector<8x128xf32>
    %cst_236 = arith.constant 5.000000e-01 : f32
    %628 = vector.broadcast %cst_236 : f32 to vector<8x128xf32>
    %629 = arith.mulf %628, %627 : vector<8x128xf32>
    %cst_237 = arith.constant 5.000000e-01 : f32
    %630 = vector.broadcast %cst_237 : f32 to vector<8x128xf32>
    %631 = arith.addf %629, %630 : vector<8x128xf32>
    %632 = vector.extract_strided_slice %615 {offsets = [0, 256], sizes = [8, 128], strides = [1, 1]} : vector<8x512xf32> to vector<8x128xf32>
    %633 = math.tanh %632 : vector<8x128xf32>
    %634 = vector.extract_strided_slice %615 {offsets = [0, 384], sizes = [8, 128], strides = [1, 1]} : vector<8x512xf32> to vector<8x128xf32>
    %cst_238 = arith.constant 5.000000e-01 : f32
    %635 = vector.broadcast %cst_238 : f32 to vector<8x128xf32>
    %636 = arith.mulf %635, %634 : vector<8x128xf32>
    %637 = math.tanh %636 : vector<8x128xf32>
    %cst_239 = arith.constant 5.000000e-01 : f32
    %638 = vector.broadcast %cst_239 : f32 to vector<8x128xf32>
    %639 = arith.mulf %638, %637 : vector<8x128xf32>
    %cst_240 = arith.constant 5.000000e-01 : f32
    %640 = vector.broadcast %cst_240 : f32 to vector<8x128xf32>
    %641 = arith.addf %639, %640 : vector<8x128xf32>
    %642 = arith.mulf %631, %602 : vector<8x128xf32>
    %643 = arith.mulf %623, %633 : vector<8x128xf32>
    %644 = arith.addf %642, %643 : vector<8x128xf32>
    %645 = math.tanh %644 : vector<8x128xf32>
    %646 = arith.mulf %641, %645 : vector<8x128xf32>
    %647 = arith.truncf %646 : vector<8x128xf32> to vector<8x128xbf16>
    %648 = arith.index_cast %c6_i32_228 : i32 to index
    %c0_241 = arith.constant 0 : index
    %c0_242 = arith.constant 0 : index
    %649 = vector.load %arg11[%648, %c0_241, %c0_242] : memref<8x8x128xbf16, #tpu.memory_space<vmem>>, vector<1x8x128xbf16>
    %650 = vector.shape_cast %649 : vector<1x8x128xbf16> to vector<8x128xbf16>
    %651 = vector.shape_cast %647 : vector<8x128xbf16> to vector<1x8x128xbf16>
    tpu.vector_store %arg11[%648, %c0_241, %c0_242], %651 {strides = array<i32>} : memref<8x8x128xbf16, #tpu.memory_space<vmem>>, vector<1x8x128xbf16>,
    %c7_i32_243 = arith.constant 7 : i32
    %652 = arith.index_cast %c7_i32_243 : i32 to index
    %c0_244 = arith.constant 0 : index
    %c0_245 = arith.constant 0 : index
    %653 = vector.load %arg10[%652, %c0_244, %c0_245] : memref<8x8x512xf32, #tpu.memory_space<vmem>>, vector<1x8x512xf32>
    %654 = vector.shape_cast %653 : vector<1x8x512xf32> to vector<8x512xf32>
    %655 = arith.truncf %646 : vector<8x128xf32> to vector<8x128xbf16>
    %cst_246 = arith.constant dense<0.000000e+00> : vector<8x512xf32>
    %656 = tpu.matmul %655, %356, %cst_246 {dimension_numbers = #tpu.dot_dimension_numbers<[1], [0], [0], [1], [0, 0, 1, 1], [], []>} : vector<8x128xbf16>, vector<128x512xbf16>, vector<8x512xf32> -> vector<8x512xf32>
    %657 = arith.addf %654, %656 : vector<8x512xf32>
    %658 = vector.extract_strided_slice %657 {offsets = [0, 0], sizes = [8, 128], strides = [1, 1]} : vector<8x512xf32> to vector<8x128xf32>
    %cst_247 = arith.constant 5.000000e-01 : f32
    %659 = vector.broadcast %cst_247 : f32 to vector<8x128xf32>
    %660 = arith.mulf %659, %658 : vector<8x128xf32>
    %661 = math.tanh %660 : vector<8x128xf32>
    %cst_248 = arith.constant 5.000000e-01 : f32
    %662 = vector.broadcast %cst_248 : f32 to vector<8x128xf32>
    %663 = arith.mulf %662, %661 : vector<8x128xf32>
    %cst_249 = arith.constant 5.000000e-01 : f32
    %664 = vector.broadcast %cst_249 : f32 to vector<8x128xf32>
    %665 = arith.addf %663, %664 : vector<8x128xf32>
    %666 = vector.extract_strided_slice %657 {offsets = [0, 128], sizes = [8, 128], strides = [1, 1]} : vector<8x512xf32> to vector<8x128xf32>
    %cst_250 = arith.constant 5.000000e-01 : f32
    %667 = vector.broadcast %cst_250 : f32 to vector<8x128xf32>
    %668 = arith.mulf %667, %666 : vector<8x128xf32>
    %669 = math.tanh %668 : vector<8x128xf32>
    %cst_251 = arith.constant 5.000000e-01 : f32
    %670 = vector.broadcast %cst_251 : f32 to vector<8x128xf32>
    %671 = arith.mulf %670, %669 : vector<8x128xf32>
    %cst_252 = arith.constant 5.000000e-01 : f32
    %672 = vector.broadcast %cst_252 : f32 to vector<8x128xf32>
    %673 = arith.addf %671, %672 : vector<8x128xf32>
    %674 = vector.extract_strided_slice %657 {offsets = [0, 256], sizes = [8, 128], strides = [1, 1]} : vector<8x512xf32> to vector<8x128xf32>
    %675 = math.tanh %674 : vector<8x128xf32>
    %676 = vector.extract_strided_slice %657 {offsets = [0, 384], sizes = [8, 128], strides = [1, 1]} : vector<8x512xf32> to vector<8x128xf32>
    %cst_253 = arith.constant 5.000000e-01 : f32
    %677 = vector.broadcast %cst_253 : f32 to vector<8x128xf32>
    %678 = arith.mulf %677, %676 : vector<8x128xf32>
    %679 = math.tanh %678 : vector<8x128xf32>
    %cst_254 = arith.constant 5.000000e-01 : f32
    %680 = vector.broadcast %cst_254 : f32 to vector<8x128xf32>
    %681 = arith.mulf %680, %679 : vector<8x128xf32>
    %cst_255 = arith.constant 5.000000e-01 : f32
    %682 = vector.broadcast %cst_255 : f32 to vector<8x128xf32>
    %683 = arith.addf %681, %682 : vector<8x128xf32>
    %684 = arith.mulf %673, %644 : vector<8x128xf32>
    %685 = arith.mulf %665, %675 : vector<8x128xf32>
    %686 = arith.addf %684, %685 : vector<8x128xf32>
    %687 = math.tanh %686 : vector<8x128xf32>
    %688 = arith.mulf %683, %687 : vector<8x128xf32>
    %689 = arith.truncf %688 : vector<8x128xf32> to vector<8x128xbf16>
    %690 = arith.index_cast %c7_i32_243 : i32 to index
    %c0_256 = arith.constant 0 : index
    %c0_257 = arith.constant 0 : index
    %691 = vector.load %arg11[%690, %c0_256, %c0_257] : memref<8x8x128xbf16, #tpu.memory_space<vmem>>, vector<1x8x128xbf16>
    %692 = vector.shape_cast %691 : vector<1x8x128xbf16> to vector<8x128xbf16>
    %693 = vector.shape_cast %689 : vector<8x128xbf16> to vector<1x8x128xbf16>
    tpu.vector_store %arg11[%690, %c0_256, %c0_257], %693 {strides = array<i32>} : memref<8x8x128xbf16, #tpu.memory_space<vmem>>, vector<1x8x128xbf16>,
    %c8_i32_258 = arith.constant 8 : i32
    %c0_259 = arith.constant 0 : index
    %c0_260 = arith.constant 0 : index
    %c0_261 = arith.constant 0 : index
    %694 = vector.load %arg11[%c0_259, %c0_260, %c0_261] : memref<8x8x128xbf16, #tpu.memory_space<vmem>>, vector<8x8x128xbf16>
    %695 = vector.shape_cast %694 : vector<8x8x128xbf16> to vector<64x128xbf16>
    %c0_262 = arith.constant 0 : index
    %c0_263 = arith.constant 0 : index
    %696 = vector.load %arg7[%c0_262, %c0_263] : memref<128x128xbf16, #tpu.memory_space<vmem>>, vector<128x128xbf16>
    %cst_264 = arith.constant dense<0.000000e+00> : vector<64x128xf32>
    %697 = tpu.matmul %695, %696, %cst_264 {dimension_numbers = #tpu.dot_dimension_numbers<[1], [0], [0], [1], [0, 0, 1, 1], [], []>} : vector<64x128xbf16>, vector<128x128xbf16>, vector<64x128xf32> -> vector<64x128xf32>
    %c0_265 = arith.constant 0 : index
    %c0_266 = arith.constant 0 : index
    %698 = vector.load %arg8[%c0_265, %c0_266] : memref<1x128xf32, #tpu.memory_space<vmem>>, vector<1x128xf32>
    %699 = vector.broadcast %698 : vector<1x128xf32> to vector<64x128xf32>
    %700 = arith.addf %697, %699 : vector<64x128xf32>
    %c0_267 = arith.constant 0 : index
    %c0_268 = arith.constant 0 : index
    %701 = vector.load %arg9[%c0_267, %c0_268] : memref<64x128xf32, #tpu.memory_space<vmem>>, vector<64x128xf32>
    tpu.vector_store %arg9[%c0_267, %c0_268], %700 {strides = array<i32>} : memref<64x128xf32, #tpu.memory_space<vmem>>, vector<64x128xf32>,
    return
  }
}

</mosaic_0001>

<llo_original>
// kernel: joke_model_pallas.1
$region0: #{joke_model_pallas.1}
  #allocation0 [shape = 'u32[]', space=smem, size = 0x4, offset = 0x4, fixed_abs, tag = 'smem constant byte address 0x4 - core index']
  #allocation1 [shape = 'u32[72,128]{1,0:T(1,128)}', space=vmem, size = 0x9000, scoped, tag = 'internal scratch']
  #allocation2 [shape = 'f32[8,8,512]{2,1,0:T(8,128)}', space=vmem, size = 0x20000, scoped, tag = 'scratch operand']
  #allocation3 [shape = 'bf16[8,8,128]{2,1,0:T(8,128)(2,1)}', space=vmem, size = 0x4000, scoped, tag = 'scratch operand']
  %s0 = inlined_call_operand.vmem [shape: bf16[8,8,32], index: 0, kind: input, shape index: {}]
  %s1 = inlined_call_operand.vmem [shape: bf16[32,512], index: 1, kind: input, shape index: {}]
  %s2 = inlined_call_operand.vmem [shape: bf16[128,512], index: 2, kind: input, shape index: {}]
  %s3 = inlined_call_operand.vmem [shape: f32[1,512], index: 3, kind: input, shape index: {}]
  %s4 = inlined_call_operand.vmem [shape: bf16[128,512], index: 4, kind: input, shape index: {}]
  %s5 = inlined_call_operand.vmem [shape: bf16[128,512], index: 5, kind: input, shape index: {}]
  %s6 = inlined_call_operand.vmem [shape: f32[1,512], index: 6, kind: input, shape index: {}]
  %s7 = inlined_call_operand.vmem [shape: bf16[128,128], index: 7, kind: input, shape index: {}]
  %s8 = inlined_call_operand.vmem [shape: f32[1,128], index: 8, kind: input, shape index: {}]
  %s9 = inlined_call_operand.vmem [shape: f32[64,128], index: 9, kind: output, shape index: {}]
  %s10 = sld [smem:[#allocation0]]
  $region46: #{joke_model_pallas.1} parent=0
    _
  %s12 = ssub.s32 1, %s10
  %s13 = scalar_select 0, %s12, %s10
  // Predicated region
  $region2: #{joke_model_pallas.1} parent=0 // pred_check
    _
  $region3: #{joke_model_pallas.1} parent=0 // pred_check_branch
    %15 = sbr.rel (0) target = $region5
  $region4: #{joke_model_pallas.1} parent=0 // pred_region
    _
  $region5: #{joke_model_pallas.1} parent=0 // pred_fallthru
    _
  // Predicated region
  $region6: #{joke_model_pallas.1} parent=0 // pred_check
    _
  $region7: #{joke_model_pallas.1} parent=0 // pred_check_branch
    %17 = sbr.rel (0) target = $region9
  $region8: #{joke_model_pallas.1} parent=0 // pred_region
    _
  $region9: #{joke_model_pallas.1} parent=0 // pred_fallthru
    _
  // Predicated region
  $region10: #{joke_model_pallas.1} parent=0 // pred_check
    _
  $region11: #{joke_model_pallas.1} parent=0 // pred_check_branch
    %19 = sbr.rel (0) target = $region13
  $region12: #{joke_model_pallas.1} parent=0 // pred_region
    _
  $region13: #{joke_model_pallas.1} parent=0 // pred_fallthru
    _
  // Predicated region
  $region14: #{joke_model_pallas.1} parent=0 // pred_check
    _
  $region15: #{joke_model_pallas.1} parent=0 // pred_check_branch
    %21 = sbr.rel (0) target = $region17
  $region16: #{joke_model_pallas.1} parent=0 // pred_region
    _
  $region17: #{joke_model_pallas.1} parent=0 // pred_fallthru
    _
  // Predicated region
  $region18: #{joke_model_pallas.1} parent=0 // pred_check
    _
  $region19: #{joke_model_pallas.1} parent=0 // pred_check_branch
    %23 = sbr.rel (0) target = $region21
  $region20: #{joke_model_pallas.1} parent=0 // pred_region
    _
  $region21: #{joke_model_pallas.1} parent=0 // pred_fallthru
    _
  // Predicated region
  $region22: #{joke_model_pallas.1} parent=0 // pred_check
    _
  $region23: #{joke_model_pallas.1} parent=0 // pred_check_branch
    %25 = sbr.rel (0) target = $region25
  $region24: #{joke_model_pallas.1} parent=0 // pred_region
    _
  $region25: #{joke_model_pallas.1} parent=0 // pred_fallthru
    _
  // Predicated region
  $region26: #{joke_model_pallas.1} parent=0 // pred_check
    _
  $region27: #{joke_model_pallas.1} parent=0 // pred_check_branch
    %27 = sbr.rel (0) target = $region29
  $region28: #{joke_model_pallas.1} parent=0 // pred_region
    _
  $region29: #{joke_model_pallas.1} parent=0 // pred_fallthru
    _
  // Predicated region
  $region30: #{joke_model_pallas.1} parent=0 // pred_check
    _
  $region31: #{joke_model_pallas.1} parent=0 // pred_check_branch
    %29 = sbr.rel (0) target = $region33
  $region32: #{joke_model_pallas.1} parent=0 // pred_region
    _
  $region33: #{joke_model_pallas.1} parent=0 // pred_fallthru
    _
  // Predicated region
  $region34: #{joke_model_pallas.1} parent=0 // pred_check
    _
  $region35: #{joke_model_pallas.1} parent=0 // pred_check_branch
    %31 = sbr.rel (0) target = $region37
  $region36: #{joke_model_pallas.1} parent=0 // pred_region
    _
  $region37: #{joke_model_pallas.1} parent=0 // pred_fallthru
    _
  %v33 = vld [vmem:[%s0] sm:$0xf]
  %v34 = vld [vmem:[%s0 + $0x4] sm:$0xf]
  %v35 = vld [vmem:[%s0 + $0x8] sm:$0xf]
  %v36 = vld [vmem:[%s0 + $0xc] sm:$0xf]
  %v37 = vld [vmem:[%s0 + $0x10] sm:$0xf]
  %v38 = vld [vmem:[%s0 + $0x14] sm:$0xf]
  %v39 = vld [vmem:[%s0 + $0x18] sm:$0xf]
  %v40 = vld [vmem:[%s0 + $0x1c] sm:$0xf]
  %v41 = vld [vmem:[%s1] sm:$0xff]
  %v42 = vld [vmem:[%s1 + $0x8] sm:$0xff]
  %v43 = vld [vmem:[%s1 + $0x10] sm:$0xff]
  %v44 = vld [vmem:[%s1 + $0x18] sm:$0xff]
  %v45 = vld [vmem:[%s1 + $0x20] sm:$0xff]
  %v46 = vld [vmem:[%s1 + $0x28] sm:$0xff]
  %v47 = vld [vmem:[%s1 + $0x30] sm:$0xff]
  %v48 = vld [vmem:[%s1 + $0x38] sm:$0xff]
  %v49 = vld [vmem:[%s3] sm:$0xf]
  %v51 = vperm.slane %v49, 0
  %v52 = vperm.slane %v49, 1
  %v53 = vperm.slane %v49, 2
  %v54 = vperm.slane %v49, 3
  %v67 = vunpack.c.l.b16 %v33
  %v68 = vunpack.c.l.b16 %v34
  %v69 = vunpack.c.l.b16 %v35
  %v70 = vunpack.c.l.b16 %v36
  %v71 = vunpack.c.l.b16 %v37
  %v72 = vunpack.c.l.b16 %v38
  %v73 = vunpack.c.l.b16 %v39
  %v74 = vunpack.c.l.b16 %v40
  %v75 = vpack.c.b16 %v68, %v67
  %v76 = vpack.c.b16 %v70, %v69
  %v77 = vpack.c.b16 %v72, %v71
  %v78 = vpack.c.b16 %v74, %v73
  %v87 = vunpack.c.l.b16 %v41
  %v88 = vunpack.c.h.b16 %v41
  %v89 = vunpack.c.l.b16 %v42
  %v90 = vunpack.c.h.b16 %v42
  %v91 = vunpack.c.l.b16 %v43
  %v92 = vunpack.c.h.b16 %v43
  %v93 = vunpack.c.l.b16 %v44
  %v94 = vunpack.c.h.b16 %v44
  %v95 = vunpack.c.l.b16 %v45
  %v96 = vunpack.c.h.b16 %v45
  %v97 = vunpack.c.l.b16 %v46
  %v98 = vunpack.c.h.b16 %v46
  %v99 = vunpack.c.l.b16 %v47
  %v100 = vunpack.c.h.b16 %v47
  %v101 = vunpack.c.l.b16 %v48
  %v102 = vunpack.c.h.b16 %v48
  %v103 = vpack.c.b16 %v91, %v87
  %v104 = vpack.c.b16 %v92, %v88
  %v105 = vpack.c.b16 %v93, %v89
  %v106 = vpack.c.b16 %v94, %v90
  %v107 = vpack.c.b16 %v99, %v95
  %v108 = vpack.c.b16 %v100, %v96
  %v109 = vpack.c.b16 %v101, %v97
  %v110 = vpack.c.b16 %v102, %v98
  %vm119 = vcmask 261120
  %v121 = vsel %vm119, %v75, 0
  %v124 = vsel %vm119, %v76, 0
  %v127 = vsel %vm119, %v77, 0
  %v130 = vsel %vm119, %v78, 0
  %132 = vmatpush.bf16.msra.mxu0 0
  %133 = vmatpush.bf16.msra.mxu0 0
  %134 = vmatpush.bf16.msra.mxu0 0
  %135 = vmatpush.bf16.msra.mxu0 0
  %136 = vmatpush.bf16.msra.mxu0 0
  %137 = vmatpush.bf16.msra.mxu0 0
  %138 = vmatpush.bf16.msra.mxu0 %v107
  %139 = vmatpush.bf16.msra.mxu0 %v103
  %140 = vmatmul.bf16.gmra.mxu0 %v121
  %v141 = vpop.f32.mrf.mxu0
  %v142 = vadd.f32 %v51, %v141
  %v143 = vpop.f32.mrf.mxu0
  %v144 = vadd.f32 %v51, %v143
  %145 = vmatmul.bf16.gmra.mxu0 %v124
  %v146 = vpop.f32.mrf.mxu0
  %v147 = vadd.f32 %v51, %v146
  %v148 = vpop.f32.mrf.mxu0
  %v149 = vadd.f32 %v51, %v148
  %150 = vmatmul.bf16.gmra.mxu0 %v127
  %v151 = vpop.f32.mrf.mxu0
  %v152 = vadd.f32 %v51, %v151
  %v153 = vpop.f32.mrf.mxu0
  %v154 = vadd.f32 %v51, %v153
  %155 = vmatmul.bf16.gmra.mxu0 %v130
  %v156 = vpop.f32.mrf.mxu0
  %v157 = vadd.f32 %v51, %v156
  %v158 = vpop.f32.mrf.mxu0
  %v159 = vadd.f32 %v51, %v158
  %160 = vdwg.mxu0
  %161 = vmatpush.bf16.msra.mxu0 0
  %162 = vmatpush.bf16.msra.mxu0 0
  %163 = vmatpush.bf16.msra.mxu0 0
  %164 = vmatpush.bf16.msra.mxu0 0
  %165 = vmatpush.bf16.msra.mxu0 0
  %166 = vmatpush.bf16.msra.mxu0 0
  %167 = vmatpush.bf16.msra.mxu0 %v108
  %168 = vmatpush.bf16.msra.mxu0 %v104
  %169 = vmatmul.bf16.gmra.mxu0 %v121
  %v170 = vpop.f32.mrf.mxu0
  %v171 = vadd.f32 %v52, %v170
  %v172 = vpop.f32.mrf.mxu0
  %v173 = vadd.f32 %v52, %v172
  %174 = vmatmul.bf16.gmra.mxu0 %v124
  %v175 = vpop.f32.mrf.mxu0
  %v176 = vadd.f32 %v52, %v175
  %v177 = vpop.f32.mrf.mxu0
  %v178 = vadd.f32 %v52, %v177
  %179 = vmatmul.bf16.gmra.mxu0 %v127
  %v180 = vpop.f32.mrf.mxu0
  %v181 = vadd.f32 %v52, %v180
  %v182 = vpop.f32.mrf.mxu0
  %v183 = vadd.f32 %v52, %v182
  %184 = vmatmul.bf16.gmra.mxu0 %v130
  %v185 = vpop.f32.mrf.mxu0
  %v186 = vadd.f32 %v52, %v185
  %v187 = vpop.f32.mrf.mxu0
  %v188 = vadd.f32 %v52, %v187
  %189 = vdwg.mxu0
  %190 = vmatpush.bf16.msra.mxu0 0
  %191 = vmatpush.bf16.msra.mxu0 0
  %192 = vmatpush.bf16.msra.mxu0 0
  %193 = vmatpush.bf16.msra.mxu0 0
  %194 = vmatpush.bf16.msra.mxu0 0
  %195 = vmatpush.bf16.msra.mxu0 0
  %196 = vmatpush.bf16.msra.mxu0 %v109
  %197 = vmatpush.bf16.msra.mxu0 %v105
  %198 = vmatmul.bf16.gmra.mxu0 %v121
  %v199 = vpop.f32.mrf.mxu0
  %v200 = vadd.f32 %v53, %v199
  %v201 = vpop.f32.mrf.mxu0
  %v202 = vadd.f32 %v53, %v201
  %203 = vmatmul.bf16.gmra.mxu0 %v124
  %v204 = vpop.f32.mrf.mxu0
  %v205 = vadd.f32 %v53, %v204
  %v206 = vpop.f32.mrf.mxu0
  %v207 = vadd.f32 %v53, %v206
  %208 = vmatmul.bf16.gmra.mxu0 %v127
  %v209 = vpop.f32.mrf.mxu0
  %v210 = vadd.f32 %v53, %v209
  %v211 = vpop.f32.mrf.mxu0
  %v212 = vadd.f32 %v53, %v211
  %213 = vmatmul.bf16.gmra.mxu0 %v130
  %v214 = vpop.f32.mrf.mxu0
  %v215 = vadd.f32 %v53, %v214
  %v216 = vpop.f32.mrf.mxu0
  %v217 = vadd.f32 %v53, %v216
  %218 = vdwg.mxu0
  %219 = vmatpush.bf16.msra.mxu0 0
  %220 = vmatpush.bf16.msra.mxu0 0
  %221 = vmatpush.bf16.msra.mxu0 0
  %222 = vmatpush.bf16.msra.mxu0 0
  %223 = vmatpush.bf16.msra.mxu0 0
  %224 = vmatpush.bf16.msra.mxu0 0
  %225 = vmatpush.bf16.msra.mxu0 %v110
  %226 = vmatpush.bf16.msra.mxu0 %v106
  %227 = vmatmul.bf16.gmra.mxu0 %v121
  %v228 = vpop.f32.mrf.mxu0
  %v229 = vadd.f32 %v54, %v228
  %v230 = vpop.f32.mrf.mxu0
  %v231 = vadd.f32 %v54, %v230
  %232 = vmatmul.bf16.gmra.mxu0 %v124
  %v233 = vpop.f32.mrf.mxu0
  %v234 = vadd.f32 %v54, %v233
  %v235 = vpop.f32.mrf.mxu0
  %v236 = vadd.f32 %v54, %v235
  %237 = vmatmul.bf16.gmra.mxu0 %v127
  %v238 = vpop.f32.mrf.mxu0
  %v239 = vadd.f32 %v54, %v238
  %v240 = vpop.f32.mrf.mxu0
  %v241 = vadd.f32 %v54, %v240
  %242 = vmatmul.bf16.gmra.mxu0 %v130
  %v243 = vpop.f32.mrf.mxu0
  %v244 = vadd.f32 %v54, %v243
  %v245 = vpop.f32.mrf.mxu0
  %v246 = vadd.f32 %v54, %v245
  %247 = vdwg.mxu0
  %248 = vst [vmem:[#allocation2] sm:$0xff] %v142
  %249 = vst [vmem:[#allocation2 + $0x8] sm:$0xff] %v171
  %250 = vst [vmem:[#allocation2 + $0x10] sm:$0xff] %v200
  %251 = vst [vmem:[#allocation2 + $0x18] sm:$0xff] %v229
  %252 = vst [vmem:[#allocation2 + $0x20] sm:$0xff] %v144
  %253 = vst [vmem:[#allocation2 + $0x28] sm:$0xff] %v173
  %254 = vst [vmem:[#allocation2 + $0x30] sm:$0xff] %v202
  %255 = vst [vmem:[#allocation2 + $0x38] sm:$0xff] %v231
  %256 = vst [vmem:[#allocation2 + $0x40] sm:$0xff] %v147
  %257 = vst [vmem:[#allocation2 + $0x48] sm:$0xff] %v176
  %258 = vst [vmem:[#allocation2 + $0x50] sm:$0xff] %v205
  %259 = vst [vmem:[#allocation2 + $0x58] sm:$0xff] %v234
  %260 = vst [vmem:[#allocation2 + $0x60] sm:$0xff] %v149
  %261 = vst [vmem:[#allocation2 + $0x68] sm:$0xff] %v178
  %262 = vst [vmem:[#allocation2 + $0x70] sm:$0xff] %v207
  %263 = vst [vmem:[#allocation2 + $0x78] sm:$0xff] %v236
  %264 = vst [vmem:[#allocation2 + $0x80] sm:$0xff] %v152
  %265 = vst [vmem:[#allocation2 + $0x88] sm:$0xff] %v181
  %266 = vst [vmem:[#allocation2 + $0x90] sm:$0xff] %v210
  %267 = vst [vmem:[#allocation2 + $0x98] sm:$0xff] %v239
  %268 = vst [vmem:[#allocation2 + $0xa0] sm:$0xff] %v154
  %269 = vst [vmem:[#allocation2 + $0xa8] sm:$0xff] %v183
  %270 = vst [vmem:[#allocation2 + $0xb0] sm:$0xff] %v212
  %271 = vst [vmem:[#allocation2 + $0xb8] sm:$0xff] %v241
  %272 = vst [vmem:[#allocation2 + $0xc0] sm:$0xff] %v157
  %273 = vst [vmem:[#allocation2 + $0xc8] sm:$0xff] %v186
  %274 = vst [vmem:[#allocation2 + $0xd0] sm:$0xff] %v215
  %275 = vst [vmem:[#allocation2 + $0xd8] sm:$0xff] %v244
  %276 = vst [vmem:[#allocation2 + $0xe0] sm:$0xff] %v159
  %277 = vst [vmem:[#allocation2 + $0xe8] sm:$0xff] %v188
  %278 = vst [vmem:[#allocation2 + $0xf0] sm:$0xff] %v217
  %279 = vst [vmem:[#allocation2 + $0xf8] sm:$0xff] %v246
  %v280 = vld [vmem:[%s2] sm:$0xff]
  %v281 = vld [vmem:[%s2 + $0x8] sm:$0xff]
  %v282 = vld [vmem:[%s2 + $0x10] sm:$0xff]
  %v283 = vld [vmem:[%s2 + $0x18] sm:$0xff]
  %v284 = vld [vmem:[%s2 + $0x20] sm:$0xff]
  %v285 = vld [vmem:[%s2 + $0x28] sm:$0xff]
  %v286 = vld [vmem:[%s2 + $0x30] sm:$0xff]
  %v287 = vld [vmem:[%s2 + $0x38] sm:$0xff]
  %v288 = vld [vmem:[%s2 + $0x40] sm:$0xff]
  %v289 = vld [vmem:[%s2 + $0x48] sm:$0xff]
  %v290 = vld [vmem:[%s2 + $0x50] sm:$0xff]
  %v291 = vld [vmem:[%s2 + $0x58] sm:$0xff]
  %v292 = vld [vmem:[%s2 + $0x60] sm:$0xff]
  %v293 = vld [vmem:[%s2 + $0x68] sm:$0xff]
  %v294 = vld [vmem:[%s2 + $0x70] sm:$0xff]
  %v295 = vld [vmem:[%s2 + $0x78] sm:$0xff]
  %v296 = vld [vmem:[%s2 + $0x80] sm:$0xff]
  %v297 = vld [vmem:[%s2 + $0x88] sm:$0xff]
  %v298 = vld [vmem:[%s2 + $0x90] sm:$0xff]
  %v299 = vld [vmem:[%s2 + $0x98] sm:$0xff]
  %v300 = vld [vmem:[%s2 + $0xa0] sm:$0xff]
  %v301 = vld [vmem:[%s2 + $0xa8] sm:$0xff]
  %v302 = vld [vmem:[%s2 + $0xb0] sm:$0xff]
  %v303 = vld [vmem:[%s2 + $0xb8] sm:$0xff]
  %v304 = vld [vmem:[%s2 + $0xc0] sm:$0xff]
  %v305 = vld [vmem:[%s2 + $0xc8] sm:$0xff]
  %v306 = vld [vmem:[%s2 + $0xd0] sm:$0xff]
  %v307 = vld [vmem:[%s2 + $0xd8] sm:$0xff]
  %v308 = vld [vmem:[%s2 + $0xe0] sm:$0xff]
  %v309 = vld [vmem:[%s2 + $0xe8] sm:$0xff]
  %v310 = vld [vmem:[%s2 + $0xf0] sm:$0xff]
  %v311 = vld [vmem:[%s2 + $0xf8] sm:$0xff]
  %v312 = vld [vmem:[#allocation2] sm:$0xff]
  %v313 = vld [vmem:[#allocation2 + $0x8] sm:$0xff]
  %v314 = vld [vmem:[#allocation2 + $0x10] sm:$0xff]
  %v315 = vld [vmem:[#allocation2 + $0x18] sm:$0xff]
  %v348 = vunpack.c.l.b16 %v280
  %v349 = vunpack.c.h.b16 %v280
  %v350 = vunpack.c.l.b16 %v281
  %v351 = vunpack.c.h.b16 %v281
  %v352 = vunpack.c.l.b16 %v282
  %v353 = vunpack.c.h.b16 %v282
  %v354 = vunpack.c.l.b16 %v283
  %v355 = vunpack.c.h.b16 %v283
  %v356 = vunpack.c.l.b16 %v284
  %v357 = vunpack.c.h.b16 %v284
  %v358 = vunpack.c.l.b16 %v285
  %v359 = vunpack.c.h.b16 %v285
  %v360 = vunpack.c.l.b16 %v286
  %v361 = vunpack.c.h.b16 %v286
  %v362 = vunpack.c.l.b16 %v287
  %v363 = vunpack.c.h.b16 %v287
  %v364 = vunpack.c.l.b16 %v288
  %v365 = vunpack.c.h.b16 %v288
  %v366 = vunpack.c.l.b16 %v289
  %v367 = vunpack.c.h.b16 %v289
  %v368 = vunpack.c.l.b16 %v290
  %v369 = vunpack.c.h.b16 %v290
  %v370 = vunpack.c.l.b16 %v291
  %v371 = vunpack.c.h.b16 %v291
  %v372 = vunpack.c.l.b16 %v292
  %v373 = vunpack.c.h.b16 %v292
  %v374 = vunpack.c.l.b16 %v293
  %v375 = vunpack.c.h.b16 %v293
  %v376 = vunpack.c.l.b16 %v294
  %v377 = vunpack.c.h.b16 %v294
  %v378 = vunpack.c.l.b16 %v295
  %v379 = vunpack.c.h.b16 %v295
  %v380 = vunpack.c.l.b16 %v296
  %v381 = vunpack.c.h.b16 %v296
  %v382 = vunpack.c.l.b16 %v297
  %v383 = vunpack.c.h.b16 %v297
  %v384 = vunpack.c.l.b16 %v298
  %v385 = vunpack.c.h.b16 %v298
  %v386 = vunpack.c.l.b16 %v299
  %v387 = vunpack.c.h.b16 %v299
  %v388 = vunpack.c.l.b16 %v300
  %v389 = vunpack.c.h.b16 %v300
  %v390 = vunpack.c.l.b16 %v301
  %v391 = vunpack.c.h.b16 %v301
  %v392 = vunpack.c.l.b16 %v302
  %v393 = vunpack.c.h.b16 %v302
  %v394 = vunpack.c.l.b16 %v303
  %v395 = vunpack.c.h.b16 %v303
  %v396 = vunpack.c.l.b16 %v304
  %v397 = vunpack.c.h.b16 %v304
  %v398 = vunpack.c.l.b16 %v305
  %v399 = vunpack.c.h.b16 %v305
  %v400 = vunpack.c.l.b16 %v306
  %v401 = vunpack.c.h.b16 %v306
  %v402 = vunpack.c.l.b16 %v307
  %v403 = vunpack.c.h.b16 %v307
  %v404 = vunpack.c.l.b16 %v308
  %v405 = vunpack.c.h.b16 %v308
  %v406 = vunpack.c.l.b16 %v309
  %v407 = vunpack.c.h.b16 %v309
  %v408 = vunpack.c.l.b16 %v310
  %v409 = vunpack.c.h.b16 %v310
  %v410 = vunpack.c.l.b16 %v311
  %v411 = vunpack.c.h.b16 %v311
  %v412 = vpack.c.b16 %v352, %v348
  %v413 = vpack.c.b16 %v353, %v349
  %v414 = vpack.c.b16 %v354, %v350
  %v415 = vpack.c.b16 %v355, %v351
  %v416 = vpack.c.b16 %v360, %v356
  %v417 = vpack.c.b16 %v361, %v357
  %v418 = vpack.c.b16 %v362, %v358
  %v419 = vpack.c.b16 %v363, %v359
  %v420 = vpack.c.b16 %v368, %v364
  %v421 = vpack.c.b16 %v369, %v365
  %v422 = vpack.c.b16 %v370, %v366
  %v423 = vpack.c.b16 %v371, %v367
  %v424 = vpack.c.b16 %v376, %v372
  %v425 = vpack.c.b16 %v377, %v373
  %v426 = vpack.c.b16 %v378, %v374
  %v427 = vpack.c.b16 %v379, %v375
  %v428 = vpack.c.b16 %v384, %v380
  %v429 = vpack.c.b16 %v385, %v381
  %v430 = vpack.c.b16 %v386, %v382
  %v431 = vpack.c.b16 %v387, %v383
  %v432 = vpack.c.b16 %v392, %v388
  %v433 = vpack.c.b16 %v393, %v389
  %v434 = vpack.c.b16 %v394, %v390
  %v435 = vpack.c.b16 %v395, %v391
  %v436 = vpack.c.b16 %v400, %v396
  %v437 = vpack.c.b16 %v401, %v397
  %v438 = vpack.c.b16 %v402, %v398
  %v439 = vpack.c.b16 %v403, %v399
  %v440 = vpack.c.b16 %v408, %v404
  %v441 = vpack.c.b16 %v409, %v405
  %v442 = vpack.c.b16 %v410, %v406
  %v443 = vpack.c.b16 %v411, %v407
  %476 = vmatpush.bf16.msra.mxu0 %v440
  %477 = vmatpush.bf16.msra.mxu0 %v436
  %478 = vmatpush.bf16.msra.mxu0 %v432
  %479 = vmatpush.bf16.msra.mxu0 %v428
  %480 = vmatpush.bf16.msra.mxu0 %v424
  %481 = vmatpush.bf16.msra.mxu0 %v420
  %482 = vmatpush.bf16.msra.mxu0 %v416
  %483 = vmatpush.bf16.msra.mxu0 %v412
  %484 = vmatmul.bf16.gmra.mxu0 0
  %v485 = vpop.f32.mrf.mxu0
  %v486 = vadd.f32 0.0, %v485
  %v487 = vpop.f32.mrf.mxu0
  %488 = vdwg.mxu0
  %489 = vmatpush.bf16.msra.mxu0 %v441
  %490 = vmatpush.bf16.msra.mxu0 %v437
  %491 = vmatpush.bf16.msra.mxu0 %v433
  %492 = vmatpush.bf16.msra.mxu0 %v429
  %493 = vmatpush.bf16.msra.mxu0 %v425
  %494 = vmatpush.bf16.msra.mxu0 %v421
  %495 = vmatpush.bf16.msra.mxu0 %v417
  %496 = vmatpush.bf16.msra.mxu0 %v413
  %497 = vmatmul.bf16.gmra.mxu0 0
  %v498 = vpop.f32.mrf.mxu0
  %v499 = vadd.f32 0.0, %v498
  %v500 = vpop.f32.mrf.mxu0
  %501 = vdwg.mxu0
  %502 = vmatpush.bf16.msra.mxu0 %v442
  %503 = vmatpush.bf16.msra.mxu0 %v438
  %504 = vmatpush.bf16.msra.mxu0 %v434
  %505 = vmatpush.bf16.msra.mxu0 %v430
  %506 = vmatpush.bf16.msra.mxu0 %v426
  %507 = vmatpush.bf16.msra.mxu0 %v422
  %508 = vmatpush.bf16.msra.mxu0 %v418
  %509 = vmatpush.bf16.msra.mxu0 %v414
  %510 = vmatmul.bf16.gmra.mxu0 0
  %v511 = vpop.f32.mrf.mxu0
  %v512 = vadd.f32 0.0, %v511
  %v513 = vpop.f32.mrf.mxu0
  %514 = vdwg.mxu0
  %515 = vmatpush.bf16.msra.mxu0 %v443
  %516 = vmatpush.bf16.msra.mxu0 %v439
  %517 = vmatpush.bf16.msra.mxu0 %v435
  %518 = vmatpush.bf16.msra.mxu0 %v431
  %519 = vmatpush.bf16.msra.mxu0 %v427
  %520 = vmatpush.bf16.msra.mxu0 %v423
  %521 = vmatpush.bf16.msra.mxu0 %v419
  %522 = vmatpush.bf16.msra.mxu0 %v415
  %523 = vmatmul.bf16.gmra.mxu0 0
  %v524 = vpop.f32.mrf.mxu0
  %v525 = vadd.f32 0.0, %v524
  %v526 = vpop.f32.mrf.mxu0
  %527 = vdwg.mxu0
  %v528 = vadd.f32 %v312, %v486
  %v529 = vadd.f32 %v313, %v499
  %v530 = vadd.f32 %v314, %v512
  %v531 = vadd.f32 %v315, %v525
  %v532 = vmul.f32 %v528, 0.5
  %v533 = vtanh.pop %v532
  %v534 = vmul.f32 %v533, 0.5
  %v535 = vadd.f32 %v534, 0.5
  %v536 = vmul.f32 %v529, 0.5
  %v537 = vtanh.pop %v536
  %v538 = vmul.f32 %v537, 0.5
  %v539 = vadd.f32 %v538, 0.5
  %v540 = vtanh.pop %v530
  %v541 = vmul.f32 %v531, 0.5
  %v542 = vtanh.pop %v541
  %v543 = vmul.f32 %v542, 0.5
  %v544 = vadd.f32 %v543, 0.5
  %v545 = vmul.f32 %v539, 0.0
  %v546 = vmul.f32 %v535, %v540
  %v547 = vadd.f32 %v545, %v546
  %v548 = vtanh.pop %v547
  %v549 = vmul.f32 %v544, %v548
  %v550 = vpack.c.bf16 %v549, %v549
  %551 = vst [vmem:[#allocation3] sm:$0xf] %v550
  %s552 = scalar_lea.vmem [#allocation2], 32
  %v553 = vld [vmem:[%s552] sm:$0xff]
  %v554 = vld [vmem:[%s552 + $0x8] sm:$0xff]
  %v555 = vld [vmem:[%s552 + $0x10] sm:$0xff]
  %v556 = vld [vmem:[%s552 + $0x18] sm:$0xff]
  %557 = vmatpush.bf16.msra.mxu0 %v440
  %558 = vmatpush.bf16.msra.mxu0 %v436
  %559 = vmatpush.bf16.msra.mxu0 %v432
  %560 = vmatpush.bf16.msra.mxu0 %v428
  %561 = vmatpush.bf16.msra.mxu0 %v424
  %562 = vmatpush.bf16.msra.mxu0 %v420
  %563 = vmatpush.bf16.msra.mxu0 %v416
  %564 = vmatpush.bf16.msra.mxu0 %v412
  %565 = vmatmul.bf16.gmra.mxu0 %v550
  %v566 = vpop.f32.mrf.mxu0
  %v567 = vadd.f32 0.0, %v566
  %v568 = vpop.f32.mrf.mxu0
  %569 = vdwg.mxu0
  %570 = vmatpush.bf16.msra.mxu0 %v441
  %571 = vmatpush.bf16.msra.mxu0 %v437
  %572 = vmatpush.bf16.msra.mxu0 %v433
  %573 = vmatpush.bf16.msra.mxu0 %v429
  %574 = vmatpush.bf16.msra.mxu0 %v425
  %575 = vmatpush.bf16.msra.mxu0 %v421
  %576 = vmatpush.bf16.msra.mxu0 %v417
  %577 = vmatpush.bf16.msra.mxu0 %v413
  %578 = vmatmul.bf16.gmra.mxu0 %v550
  %v579 = vpop.f32.mrf.mxu0
  %v580 = vadd.f32 0.0, %v579
  %v581 = vpop.f32.mrf.mxu0
  %582 = vdwg.mxu0
  %583 = vmatpush.bf16.msra.mxu0 %v442
  %584 = vmatpush.bf16.msra.mxu0 %v438
  %585 = vmatpush.bf16.msra.mxu0 %v434
  %586 = vmatpush.bf16.msra.mxu0 %v430
  %587 = vmatpush.bf16.msra.mxu0 %v426
  %588 = vmatpush.bf16.msra.mxu0 %v422
  %589 = vmatpush.bf16.msra.mxu0 %v418
  %590 = vmatpush.bf16.msra.mxu0 %v414
  %591 = vmatmul.bf16.gmra.mxu0 %v550
  %v592 = vpop.f32.mrf.mxu0
  %v593 = vadd.f32 0.0, %v592
  %v594 = vpop.f32.mrf.mxu0
  %595 = vdwg.mxu0
  %596 = vmatpush.bf16.msra.mxu0 %v443
  %597 = vmatpush.bf16.msra.mxu0 %v439
  %598 = vmatpush.bf16.msra.mxu0 %v435
  %599 = vmatpush.bf16.msra.mxu0 %v431
  %600 = vmatpush.bf16.msra.mxu0 %v427
  %601 = vmatpush.bf16.msra.mxu0 %v423
  %602 = vmatpush.bf16.msra.mxu0 %v419
  %603 = vmatpush.bf16.msra.mxu0 %v415
  %604 = vmatmul.bf16.gmra.mxu0 %v550
  %v605 = vpop.f32.mrf.mxu0
  %v606 = vadd.f32 0.0, %v605
  %v607 = vpop.f32.mrf.mxu0
  %608 = vdwg.mxu0
  %v609 = vadd.f32 %v553, %v567
  %v610 = vadd.f32 %v554, %v580
  %v611 = vadd.f32 %v555, %v593
  %v612 = vadd.f32 %v556, %v606
  %v613 = vmul.f32 %v609, 0.5
  %v614 = vtanh.pop %v613
  %v615 = vmul.f32 %v614, 0.5
  %v616 = vadd.f32 %v615, 0.5
  %v617 = vmul.f32 %v610, 0.5
  %v618 = vtanh.pop %v617
  %v619 = vmul.f32 %v618, 0.5
  %v620 = vadd.f32 %v619, 0.5
  %v621 = vtanh.pop %v611
  %v622 = vmul.f32 %v612, 0.5
  %v623 = vtanh.pop %v622
  %v624 = vmul.f32 %v623, 0.5
  %v625 = vadd.f32 %v624, 0.5
  %v626 = vmul.f32 %v620, %v547
  %v627 = vmul.f32 %v616, %v621
  %v628 = vadd.f32 %v626, %v627
  %v629 = vtanh.pop %v628
  %v630 = vmul.f32 %v625, %v629
  %v631 = vpack.c.bf16 %v630, %v630
  %s632 = scalar_lea.vmem [#allocation3], 4
  %633 = vst [vmem:[%s632] sm:$0xf] %v631
  %s634 = scalar_lea.vmem [#allocation2], 64
  %v635 = vld [vmem:[%s634] sm:$0xff]
  %v636 = vld [vmem:[%s634 + $0x8] sm:$0xff]
  %v637 = vld [vmem:[%s634 + $0x10] sm:$0xff]
  %v638 = vld [vmem:[%s634 + $0x18] sm:$0xff]
  %639 = vmatpush.bf16.msra.mxu0 %v440
  %640 = vmatpush.bf16.msra.mxu0 %v436
  %641 = vmatpush.bf16.msra.mxu0 %v432
  %642 = vmatpush.bf16.msra.mxu0 %v428
  %643 = vmatpush.bf16.msra.mxu0 %v424
  %644 = vmatpush.bf16.msra.mxu0 %v420
  %645 = vmatpush.bf16.msra.mxu0 %v416
  %646 = vmatpush.bf16.msra.mxu0 %v412
  %647 = vmatmul.bf16.gmra.mxu0 %v631
  %v648 = vpop.f32.mrf.mxu0
  %v649 = vadd.f32 0.0, %v648
  %v650 = vpop.f32.mrf.mxu0
  %651 = vdwg.mxu0
  %652 = vmatpush.bf16.msra.mxu0 %v441
  %653 = vmatpush.bf16.msra.mxu0 %v437
  %654 = vmatpush.bf16.msra.mxu0 %v433
  %655 = vmatpush.bf16.msra.mxu0 %v429
  %656 = vmatpush.bf16.msra.mxu0 %v425
  %657 = vmatpush.bf16.msra.mxu0 %v421
  %658 = vmatpush.bf16.msra.mxu0 %v417
  %659 = vmatpush.bf16.msra.mxu0 %v413
  %660 = vmatmul.bf16.gmra.mxu0 %v631
  %v661 = vpop.f32.mrf.mxu0
  %v662 = vadd.f32 0.0, %v661
  %v663 = vpop.f32.mrf.mxu0
  %664 = vdwg.mxu0
  %665 = vmatpush.bf16.msra.mxu0 %v442
  %666 = vmatpush.bf16.msra.mxu0 %v438
  %667 = vmatpush.bf16.msra.mxu0 %v434
  %668 = vmatpush.bf16.msra.mxu0 %v430
  %669 = vmatpush.bf16.msra.mxu0 %v426
  %670 = vmatpush.bf16.msra.mxu0 %v422
  %671 = vmatpush.bf16.msra.mxu0 %v418
  %672 = vmatpush.bf16.msra.mxu0 %v414
  %673 = vmatmul.bf16.gmra.mxu0 %v631
  %v674 = vpop.f32.mrf.mxu0
  %v675 = vadd.f32 0.0, %v674
  %v676 = vpop.f32.mrf.mxu0
  %677 = vdwg.mxu0
  %678 = vmatpush.bf16.msra.mxu0 %v443
  %679 = vmatpush.bf16.msra.mxu0 %v439
  %680 = vmatpush.bf16.msra.mxu0 %v435
  %681 = vmatpush.bf16.msra.mxu0 %v431
  %682 = vmatpush.bf16.msra.mxu0 %v427
  %683 = vmatpush.bf16.msra.mxu0 %v423
  %684 = vmatpush.bf16.msra.mxu0 %v419
  %685 = vmatpush.bf16.msra.mxu0 %v415
  %686 = vmatmul.bf16.gmra.mxu0 %v631
  %v687 = vpop.f32.mrf.mxu0
  %v688 = vadd.f32 0.0, %v687
  %v689 = vpop.f32.mrf.mxu0
  %690 = vdwg.mxu0
  %v691 = vadd.f32 %v635, %v649
  %v692 = vadd.f32 %v636, %v662
  %v693 = vadd.f32 %v637, %v675
  %v694 = vadd.f32 %v638, %v688
  %v695 = vmul.f32 %v691, 0.5
  %v696 = vtanh.pop %v695
  %v697 = vmul.f32 %v696, 0.5
  %v698 = vadd.f32 %v697, 0.5
  %v699 = vmul.f32 %v692, 0.5
  %v700 = vtanh.pop %v699
  %v701 = vmul.f32 %v700, 0.5
  %v702 = vadd.f32 %v701, 0.5
  %v703 = vtanh.pop %v693
  %v704 = vmul.f32 %v694, 0.5
  %v705 = vtanh.pop %v704
  %v706 = vmul.f32 %v705, 0.5
  %v707 = vadd.f32 %v706, 0.5
  %v708 = vmul.f32 %v702, %v628
  %v709 = vmul.f32 %v698, %v703
  %v710 = vadd.f32 %v708, %v709
  %v711 = vtanh.pop %v710
  %v712 = vmul.f32 %v707, %v711
  %v713 = vpack.c.bf16 %v712, %v712
  %s714 = scalar_lea.vmem [#allocation3], 8
  %715 = vst [vmem:[%s714] sm:$0xf] %v713
  %s716 = scalar_lea.vmem [#allocation2], 96
  %v717 = vld [vmem:[%s716] sm:$0xff]
  %v718 = vld [vmem:[%s716 + $0x8] sm:$0xff]
  %v719 = vld [vmem:[%s716 + $0x10] sm:$0xff]
  %v720 = vld [vmem:[%s716 + $0x18] sm:$0xff]
  %721 = vmatpush.bf16.msra.mxu0 %v440
  %722 = vmatpush.bf16.msra.mxu0 %v436
  %723 = vmatpush.bf16.msra.mxu0 %v432
  %724 = vmatpush.bf16.msra.mxu0 %v428
  %725 = vmatpush.bf16.msra.mxu0 %v424
  %726 = vmatpush.bf16.msra.mxu0 %v420
  %727 = vmatpush.bf16.msra.mxu0 %v416
  %728 = vmatpush.bf16.msra.mxu0 %v412
  %729 = vmatmul.bf16.gmra.mxu0 %v713
  %v730 = vpop.f32.mrf.mxu0
  %v731 = vadd.f32 0.0, %v730
  %v732 = vpop.f32.mrf.mxu0
  %733 = vdwg.mxu0
  %734 = vmatpush.bf16.msra.mxu0 %v441
  %735 = vmatpush.bf16.msra.mxu0 %v437
  %736 = vmatpush.bf16.msra.mxu0 %v433
  %737 = vmatpush.bf16.msra.mxu0 %v429
  %738 = vmatpush.bf16.msra.mxu0 %v425
  %739 = vmatpush.bf16.msra.mxu0 %v421
  %740 = vmatpush.bf16.msra.mxu0 %v417
  %741 = vmatpush.bf16.msra.mxu0 %v413
  %742 = vmatmul.bf16.gmra.mxu0 %v713
  %v743 = vpop.f32.mrf.mxu0
  %v744 = vadd.f32 0.0, %v743
  %v745 = vpop.f32.mrf.mxu0
  %746 = vdwg.mxu0
  %747 = vmatpush.bf16.msra.mxu0 %v442
  %748 = vmatpush.bf16.msra.mxu0 %v438
  %749 = vmatpush.bf16.msra.mxu0 %v434
  %750 = vmatpush.bf16.msra.mxu0 %v430
  %751 = vmatpush.bf16.msra.mxu0 %v426
  %752 = vmatpush.bf16.msra.mxu0 %v422
  %753 = vmatpush.bf16.msra.mxu0 %v418
  %754 = vmatpush.bf16.msra.mxu0 %v414
  %755 = vmatmul.bf16.gmra.mxu0 %v713
  %v756 = vpop.f32.mrf.mxu0
  %v757 = vadd.f32 0.0, %v756
  %v758 = vpop.f32.mrf.mxu0
  %759 = vdwg.mxu0
  %760 = vmatpush.bf16.msra.mxu0 %v443
  %761 = vmatpush.bf16.msra.mxu0 %v439
  %762 = vmatpush.bf16.msra.mxu0 %v435
  %763 = vmatpush.bf16.msra.mxu0 %v431
  %764 = vmatpush.bf16.msra.mxu0 %v427
  %765 = vmatpush.bf16.msra.mxu0 %v423
  %766 = vmatpush.bf16.msra.mxu0 %v419
  %767 = vmatpush.bf16.msra.mxu0 %v415
  %768 = vmatmul.bf16.gmra.mxu0 %v713
  %v769 = vpop.f32.mrf.mxu0
  %v770 = vadd.f32 0.0, %v769
  %v771 = vpop.f32.mrf.mxu0
  %772 = vdwg.mxu0
  %v773 = vadd.f32 %v717, %v731
  %v774 = vadd.f32 %v718, %v744
  %v775 = vadd.f32 %v719, %v757
  %v776 = vadd.f32 %v720, %v770
  %v777 = vmul.f32 %v773, 0.5
  %v778 = vtanh.pop %v777
  %v779 = vmul.f32 %v778, 0.5
  %v780 = vadd.f32 %v779, 0.5
  %v781 = vmul.f32 %v774, 0.5
  %v782 = vtanh.pop %v781
  %v783 = vmul.f32 %v782, 0.5
  %v784 = vadd.f32 %v783, 0.5
  %v785 = vtanh.pop %v775
  %v786 = vmul.f32 %v776, 0.5
  %v787 = vtanh.pop %v786
  %v788 = vmul.f32 %v787, 0.5
  %v789 = vadd.f32 %v788, 0.5
  %v790 = vmul.f32 %v784, %v710
  %v791 = vmul.f32 %v780, %v785
  %v792 = vadd.f32 %v790, %v791
  %v793 = vtanh.pop %v792
  %v794 = vmul.f32 %v789, %v793
  %v795 = vpack.c.bf16 %v794, %v794
  %s796 = scalar_lea.vmem [#allocation3], 12
  %797 = vst [vmem:[%s796] sm:$0xf] %v795
  %s798 = scalar_lea.vmem [#allocation2], 128
  %v799 = vld [vmem:[%s798] sm:$0xff]
  %v800 = vld [vmem:[%s798 + $0x8] sm:$0xff]
  %v801 = vld [vmem:[%s798 + $0x10] sm:$0xff]
  %v802 = vld [vmem:[%s798 + $0x18] sm:$0xff]
  %803 = vmatpush.bf16.msra.mxu0 %v440
  %804 = vmatpush.bf16.msra.mxu0 %v436
  %805 = vmatpush.bf16.msra.mxu0 %v432
  %806 = vmatpush.bf16.msra.mxu0 %v428
  %807 = vmatpush.bf16.msra.mxu0 %v424
  %808 = vmatpush.bf16.msra.mxu0 %v420
  %809 = vmatpush.bf16.msra.mxu0 %v416
  %810 = vmatpush.bf16.msra.mxu0 %v412
  %811 = vmatmul.bf16.gmra.mxu0 %v795
  %v812 = vpop.f32.mrf.mxu0
  %v813 = vadd.f32 0.0, %v812
  %v814 = vpop.f32.mrf.mxu0
  %815 = vdwg.mxu0
  %816 = vmatpush.bf16.msra.mxu0 %v441
  %817 = vmatpush.bf16.msra.mxu0 %v437
  %818 = vmatpush.bf16.msra.mxu0 %v433
  %819 = vmatpush.bf16.msra.mxu0 %v429
  %820 = vmatpush.bf16.msra.mxu0 %v425
  %821 = vmatpush.bf16.msra.mxu0 %v421
  %822 = vmatpush.bf16.msra.mxu0 %v417
  %823 = vmatpush.bf16.msra.mxu0 %v413
  %824 = vmatmul.bf16.gmra.mxu0 %v795
  %v825 = vpop.f32.mrf.mxu0
  %v826 = vadd.f32 0.0, %v825
  %v827 = vpop.f32.mrf.mxu0
  %828 = vdwg.mxu0
  %829 = vmatpush.bf16.msra.mxu0 %v442
  %830 = vmatpush.bf16.msra.mxu0 %v438
  %831 = vmatpush.bf16.msra.mxu0 %v434
  %832 = vmatpush.bf16.msra.mxu0 %v430
  %833 = vmatpush.bf16.msra.mxu0 %v426
  %834 = vmatpush.bf16.msra.mxu0 %v422
  %835 = vmatpush.bf16.msra.mxu0 %v418
  %836 = vmatpush.bf16.msra.mxu0 %v414
  %837 = vmatmul.bf16.gmra.mxu0 %v795
  %v838 = vpop.f32.mrf.mxu0
  %v839 = vadd.f32 0.0, %v838
  %v840 = vpop.f32.mrf.mxu0
  %841 = vdwg.mxu0
  %842 = vmatpush.bf16.msra.mxu0 %v443
  %843 = vmatpush.bf16.msra.mxu0 %v439
  %844 = vmatpush.bf16.msra.mxu0 %v435
  %845 = vmatpush.bf16.msra.mxu0 %v431
  %846 = vmatpush.bf16.msra.mxu0 %v427
  %847 = vmatpush.bf16.msra.mxu0 %v423
  %848 = vmatpush.bf16.msra.mxu0 %v419
  %849 = vmatpush.bf16.msra.mxu0 %v415
  %850 = vmatmul.bf16.gmra.mxu0 %v795
  %v851 = vpop.f32.mrf.mxu0
  %v852 = vadd.f32 0.0, %v851
  %v853 = vpop.f32.mrf.mxu0
  %854 = vdwg.mxu0
  %v855 = vadd.f32 %v799, %v813
  %v856 = vadd.f32 %v800, %v826
  %v857 = vadd.f32 %v801, %v839
  %v858 = vadd.f32 %v802, %v852
  %v859 = vmul.f32 %v855, 0.5
  %v860 = vtanh.pop %v859
  %v861 = vmul.f32 %v860, 0.5
  %v862 = vadd.f32 %v861, 0.5
  %v863 = vmul.f32 %v856, 0.5
  %v864 = vtanh.pop %v863
  %v865 = vmul.f32 %v864, 0.5
  %v866 = vadd.f32 %v865, 0.5
  %v867 = vtanh.pop %v857
  %v868 = vmul.f32 %v858, 0.5
  %v869 = vtanh.pop %v868
  %v870 = vmul.f32 %v869, 0.5
  %v871 = vadd.f32 %v870, 0.5
  %v872 = vmul.f32 %v866, %v792
  %v873 = vmul.f32 %v862, %v867
  %v874 = vadd.f32 %v872, %v873
  %v875 = vtanh.pop %v874
  %v876 = vmul.f32 %v871, %v875
  %v877 = vpack.c.bf16 %v876, %v876
  %s878 = scalar_lea.vmem [#allocation3], 16
  %879 = vst [vmem:[%s878] sm:$0xf] %v877
  %s880 = scalar_lea.vmem [#allocation2], 160
  %v881 = vld [vmem:[%s880] sm:$0xff]
  %v882 = vld [vmem:[%s880 + $0x8] sm:$0xff]
  %v883 = vld [vmem:[%s880 + $0x10] sm:$0xff]
  %v884 = vld [vmem:[%s880 + $0x18] sm:$0xff]
  %885 = vmatpush.bf16.msra.mxu0 %v440
  %886 = vmatpush.bf16.msra.mxu0 %v436
  %887 = vmatpush.bf16.msra.mxu0 %v432
  %888 = vmatpush.bf16.msra.mxu0 %v428
  %889 = vmatpush.bf16.msra.mxu0 %v424
  %890 = vmatpush.bf16.msra.mxu0 %v420
  %891 = vmatpush.bf16.msra.mxu0 %v416
  %892 = vmatpush.bf16.msra.mxu0 %v412
  %893 = vmatmul.bf16.gmra.mxu0 %v877
  %v894 = vpop.f32.mrf.mxu0
  %v895 = vadd.f32 0.0, %v894
  %v896 = vpop.f32.mrf.mxu0
  %897 = vdwg.mxu0
  %898 = vmatpush.bf16.msra.mxu0 %v441
  %899 = vmatpush.bf16.msra.mxu0 %v437
  %900 = vmatpush.bf16.msra.mxu0 %v433
  %901 = vmatpush.bf16.msra.mxu0 %v429
  %902 = vmatpush.bf16.msra.mxu0 %v425
  %903 = vmatpush.bf16.msra.mxu0 %v421
  %904 = vmatpush.bf16.msra.mxu0 %v417
  %905 = vmatpush.bf16.msra.mxu0 %v413
  %906 = vmatmul.bf16.gmra.mxu0 %v877
  %v907 = vpop.f32.mrf.mxu0
  %v908 = vadd.f32 0.0, %v907
  %v909 = vpop.f32.mrf.mxu0
  %910 = vdwg.mxu0
  %911 = vmatpush.bf16.msra.mxu0 %v442
  %912 = vmatpush.bf16.msra.mxu0 %v438
  %913 = vmatpush.bf16.msra.mxu0 %v434
  %914 = vmatpush.bf16.msra.mxu0 %v430
  %915 = vmatpush.bf16.msra.mxu0 %v426
  %916 = vmatpush.bf16.msra.mxu0 %v422
  %917 = vmatpush.bf16.msra.mxu0 %v418
  %918 = vmatpush.bf16.msra.mxu0 %v414
  %919 = vmatmul.bf16.gmra.mxu0 %v877
  %v920 = vpop.f32.mrf.mxu0
  %v921 = vadd.f32 0.0, %v920
  %v922 = vpop.f32.mrf.mxu0
  %923 = vdwg.mxu0
  %924 = vmatpush.bf16.msra.mxu0 %v443
  %925 = vmatpush.bf16.msra.mxu0 %v439
  %926 = vmatpush.bf16.msra.mxu0 %v435
  %927 = vmatpush.bf16.msra.mxu0 %v431
  %928 = vmatpush.bf16.msra.mxu0 %v427
  %929 = vmatpush.bf16.msra.mxu0 %v423
  %930 = vmatpush.bf16.msra.mxu0 %v419
  %931 = vmatpush.bf16.msra.mxu0 %v415
  %932 = vmatmul.bf16.gmra.mxu0 %v877
  %v933 = vpop.f32.mrf.mxu0
  %v934 = vadd.f32 0.0, %v933
  %v935 = vpop.f32.mrf.mxu0
  %936 = vdwg.mxu0
  %v937 = vadd.f32 %v881, %v895
  %v938 = vadd.f32 %v882, %v908
  %v939 = vadd.f32 %v883, %v921
  %v940 = vadd.f32 %v884, %v934
  %v941 = vmul.f32 %v937, 0.5
  %v942 = vtanh.pop %v941
  %v943 = vmul.f32 %v942, 0.5
  %v944 = vadd.f32 %v943, 0.5
  %v945 = vmul.f32 %v938, 0.5
  %v946 = vtanh.pop %v945
  %v947 = vmul.f32 %v946, 0.5
  %v948 = vadd.f32 %v947, 0.5
  %v949 = vtanh.pop %v939
  %v950 = vmul.f32 %v940, 0.5
  %v951 = vtanh.pop %v950
  %v952 = vmul.f32 %v951, 0.5
  %v953 = vadd.f32 %v952, 0.5
  %v954 = vmul.f32 %v948, %v874
  %v955 = vmul.f32 %v944, %v949
  %v956 = vadd.f32 %v954, %v955
  %v957 = vtanh.pop %v956
  %v958 = vmul.f32 %v953, %v957
  %v959 = vpack.c.bf16 %v958, %v958
  %s960 = scalar_lea.vmem [#allocation3], 20
  %961 = vst [vmem:[%s960] sm:$0xf] %v959
  %s962 = scalar_lea.vmem [#allocation2], 192
  %v963 = vld [vmem:[%s962] sm:$0xff]
  %v964 = vld [vmem:[%s962 + $0x8] sm:$0xff]
  %v965 = vld [vmem:[%s962 + $0x10] sm:$0xff]
  %v966 = vld [vmem:[%s962 + $0x18] sm:$0xff]
  %967 = vmatpush.bf16.msra.mxu0 %v440
  %968 = vmatpush.bf16.msra.mxu0 %v436
  %969 = vmatpush.bf16.msra.mxu0 %v432
  %970 = vmatpush.bf16.msra.mxu0 %v428
  %971 = vmatpush.bf16.msra.mxu0 %v424
  %972 = vmatpush.bf16.msra.mxu0 %v420
  %973 = vmatpush.bf16.msra.mxu0 %v416
  %974 = vmatpush.bf16.msra.mxu0 %v412
  %975 = vmatmul.bf16.gmra.mxu0 %v959
  %v976 = vpop.f32.mrf.mxu0
  %v977 = vadd.f32 0.0, %v976
  %v978 = vpop.f32.mrf.mxu0
  %979 = vdwg.mxu0
  %980 = vmatpush.bf16.msra.mxu0 %v441
  %981 = vmatpush.bf16.msra.mxu0 %v437
  %982 = vmatpush.bf16.msra.mxu0 %v433
  %983 = vmatpush.bf16.msra.mxu0 %v429
  %984 = vmatpush.bf16.msra.mxu0 %v425
  %985 = vmatpush.bf16.msra.mxu0 %v421
  %986 = vmatpush.bf16.msra.mxu0 %v417
  %987 = vmatpush.bf16.msra.mxu0 %v413
  %988 = vmatmul.bf16.gmra.mxu0 %v959
  %v989 = vpop.f32.mrf.mxu0
  %v990 = vadd.f32 0.0, %v989
  %v991 = vpop.f32.mrf.mxu0
  %992 = vdwg.mxu0
  %993 = vmatpush.bf16.msra.mxu0 %v442
  %994 = vmatpush.bf16.msra.mxu0 %v438
  %995 = vmatpush.bf16.msra.mxu0 %v434
  %996 = vmatpush.bf16.msra.mxu0 %v430
  %997 = vmatpush.bf16.msra.mxu0 %v426
  %998 = vmatpush.bf16.msra.mxu0 %v422
  %999 = vmatpush.bf16.msra.mxu0 %v418
  %1000 = vmatpush.bf16.msra.mxu0 %v414
  %1001 = vmatmul.bf16.gmra.mxu0 %v959
  %v1002 = vpop.f32.mrf.mxu0
  %v1003 = vadd.f32 0.0, %v1002
  %v1004 = vpop.f32.mrf.mxu0
  %1005 = vdwg.mxu0
  %1006 = vmatpush.bf16.msra.mxu0 %v443
  %1007 = vmatpush.bf16.msra.mxu0 %v439
  %1008 = vmatpush.bf16.msra.mxu0 %v435
  %1009 = vmatpush.bf16.msra.mxu0 %v431
  %1010 = vmatpush.bf16.msra.mxu0 %v427
  %1011 = vmatpush.bf16.msra.mxu0 %v423
  %1012 = vmatpush.bf16.msra.mxu0 %v419
  %1013 = vmatpush.bf16.msra.mxu0 %v415
  %1014 = vmatmul.bf16.gmra.mxu0 %v959
  %v1015 = vpop.f32.mrf.mxu0
  %v1016 = vadd.f32 0.0, %v1015
  %v1017 = vpop.f32.mrf.mxu0
  %1018 = vdwg.mxu0
  %v1019 = vadd.f32 %v963, %v977
  %v1020 = vadd.f32 %v964, %v990
  %v1021 = vadd.f32 %v965, %v1003
  %v1022 = vadd.f32 %v966, %v1016
  %v1023 = vmul.f32 %v1019, 0.5
  %v1024 = vtanh.pop %v1023
  %v1025 = vmul.f32 %v1024, 0.5
  %v1026 = vadd.f32 %v1025, 0.5
  %v1027 = vmul.f32 %v1020, 0.5
  %v1028 = vtanh.pop %v1027
  %v1029 = vmul.f32 %v1028, 0.5
  %v1030 = vadd.f32 %v1029, 0.5
  %v1031 = vtanh.pop %v1021
  %v1032 = vmul.f32 %v1022, 0.5
  %v1033 = vtanh.pop %v1032
  %v1034 = vmul.f32 %v1033, 0.5
  %v1035 = vadd.f32 %v1034, 0.5
  %v1036 = vmul.f32 %v1030, %v956
  %v1037 = vmul.f32 %v1026, %v1031
  %v1038 = vadd.f32 %v1036, %v1037
  %v1039 = vtanh.pop %v1038
  %v1040 = vmul.f32 %v1035, %v1039
  %v1041 = vpack.c.bf16 %v1040, %v1040
  %s1042 = scalar_lea.vmem [#allocation3], 24
  %1043 = vst [vmem:[%s1042] sm:$0xf] %v1041
  %s1044 = scalar_lea.vmem [#allocation2], 224
  %v1045 = vld [vmem:[%s1044] sm:$0xff]
  %v1046 = vld [vmem:[%s1044 + $0x8] sm:$0xff]
  %v1047 = vld [vmem:[%s1044 + $0x10] sm:$0xff]
  %v1048 = vld [vmem:[%s1044 + $0x18] sm:$0xff]
  %1049 = vmatpush.bf16.msra.mxu0 %v440
  %1050 = vmatpush.bf16.msra.mxu0 %v436
  %1051 = vmatpush.bf16.msra.mxu0 %v432
  %1052 = vmatpush.bf16.msra.mxu0 %v428
  %1053 = vmatpush.bf16.msra.mxu0 %v424
  %1054 = vmatpush.bf16.msra.mxu0 %v420
  %1055 = vmatpush.bf16.msra.mxu0 %v416
  %1056 = vmatpush.bf16.msra.mxu0 %v412
  %1057 = vmatmul.bf16.gmra.mxu0 %v1041
  %v1058 = vpop.f32.mrf.mxu0
  %v1059 = vadd.f32 0.0, %v1058
  %v1060 = vpop.f32.mrf.mxu0
  %1061 = vdwg.mxu0
  %1062 = vmatpush.bf16.msra.mxu0 %v441
  %1063 = vmatpush.bf16.msra.mxu0 %v437
  %1064 = vmatpush.bf16.msra.mxu0 %v433
  %1065 = vmatpush.bf16.msra.mxu0 %v429
  %1066 = vmatpush.bf16.msra.mxu0 %v425
  %1067 = vmatpush.bf16.msra.mxu0 %v421
  %1068 = vmatpush.bf16.msra.mxu0 %v417
  %1069 = vmatpush.bf16.msra.mxu0 %v413
  %1070 = vmatmul.bf16.gmra.mxu0 %v1041
  %v1071 = vpop.f32.mrf.mxu0
  %v1072 = vadd.f32 0.0, %v1071
  %v1073 = vpop.f32.mrf.mxu0
  %1074 = vdwg.mxu0
  %1075 = vmatpush.bf16.msra.mxu0 %v442
  %1076 = vmatpush.bf16.msra.mxu0 %v438
  %1077 = vmatpush.bf16.msra.mxu0 %v434
  %1078 = vmatpush.bf16.msra.mxu0 %v430
  %1079 = vmatpush.bf16.msra.mxu0 %v426
  %1080 = vmatpush.bf16.msra.mxu0 %v422
  %1081 = vmatpush.bf16.msra.mxu0 %v418
  %1082 = vmatpush.bf16.msra.mxu0 %v414
  %1083 = vmatmul.bf16.gmra.mxu0 %v1041
  %v1084 = vpop.f32.mrf.mxu0
  %v1085 = vadd.f32 0.0, %v1084
  %v1086 = vpop.f32.mrf.mxu0
  %1087 = vdwg.mxu0
  %1088 = vmatpush.bf16.msra.mxu0 %v443
  %1089 = vmatpush.bf16.msra.mxu0 %v439
  %1090 = vmatpush.bf16.msra.mxu0 %v435
  %1091 = vmatpush.bf16.msra.mxu0 %v431
  %1092 = vmatpush.bf16.msra.mxu0 %v427
  %1093 = vmatpush.bf16.msra.mxu0 %v423
  %1094 = vmatpush.bf16.msra.mxu0 %v419
  %1095 = vmatpush.bf16.msra.mxu0 %v415
  %1096 = vmatmul.bf16.gmra.mxu0 %v1041
  %v1097 = vpop.f32.mrf.mxu0
  %v1098 = vadd.f32 0.0, %v1097
  %v1099 = vpop.f32.mrf.mxu0
  %1100 = vdwg.mxu0
  %v1101 = vadd.f32 %v1045, %v1059
  %v1102 = vadd.f32 %v1046, %v1072
  %v1103 = vadd.f32 %v1047, %v1085
  %v1104 = vadd.f32 %v1048, %v1098
  %v1105 = vmul.f32 %v1101, 0.5
  %v1106 = vtanh.pop %v1105
  %v1107 = vmul.f32 %v1106, 0.5
  %v1108 = vadd.f32 %v1107, 0.5
  %v1109 = vmul.f32 %v1102, 0.5
  %v1110 = vtanh.pop %v1109
  %v1111 = vmul.f32 %v1110, 0.5
  %v1112 = vadd.f32 %v1111, 0.5
  %v1113 = vtanh.pop %v1103
  %v1114 = vmul.f32 %v1104, 0.5
  %v1115 = vtanh.pop %v1114
  %v1116 = vmul.f32 %v1115, 0.5
  %v1117 = vadd.f32 %v1116, 0.5
  %v1118 = vmul.f32 %v1112, %v1038
  %v1119 = vmul.f32 %v1108, %v1113
  %v1120 = vadd.f32 %v1118, %v1119
  %v1121 = vtanh.pop %v1120
  %v1122 = vmul.f32 %v1117, %v1121
  %v1123 = vpack.c.bf16 %v1122, %v1122
  %s1124 = scalar_lea.vmem [#allocation3], 28
  %1125 = vst [vmem:[%s1124] sm:$0xf] %v1123
  %v1126 = vld [vmem:[#allocation3] sm:$0xf]
  %v1127 = vld [vmem:[#allocation3 + $0x4] sm:$0xf]
  %v1128 = vld [vmem:[#allocation3 + $0x8] sm:$0xf]
  %v1129 = vld [vmem:[#allocation3 + $0xc] sm:$0xf]
  %v1130 = vld [vmem:[#allocation3 + $0x10] sm:$0xf]
  %v1131 = vld [vmem:[#allocation3 + $0x14] sm:$0xf]
  %v1132 = vld [vmem:[#allocation3 + $0x18] sm:$0xf]
  %v1133 = vld [vmem:[#allocation3 + $0x1c] sm:$0xf]
  %v1134 = vld [vmem:[%s4] sm:$0xff]
  %v1135 = vld [vmem:[%s4 + $0x8] sm:$0xff]
  %v1136 = vld [vmem:[%s4 + $0x10] sm:$0xff]
  %v1137 = vld [vmem:[%s4 + $0x18] sm:$0xff]
  %v1138 = vld [vmem:[%s4 + $0x20] sm:$0xff]
  %v1139 = vld [vmem:[%s4 + $0x28] sm:$0xff]
  %v1140 = vld [vmem:[%s4 + $0x30] sm:$0xff]
  %v1141 = vld [vmem:[%s4 + $0x38] sm:$0xff]
  %v1142 = vld [vmem:[%s4 + $0x40] sm:$0xff]
  %v1143 = vld [vmem:[%s4 + $0x48] sm:$0xff]
  %v1144 = vld [vmem:[%s4 + $0x50] sm:$0xff]
  %v1145 = vld [vmem:[%s4 + $0x58] sm:$0xff]
  %v1146 = vld [vmem:[%s4 + $0x60] sm:$0xff]
  %v1147 = vld [vmem:[%s4 + $0x68] sm:$0xff]
  %v1148 = vld [vmem:[%s4 + $0x70] sm:$0xff]
  %v1149 = vld [vmem:[%s4 + $0x78] sm:$0xff]
  %v1150 = vld [vmem:[%s4 + $0x80] sm:$0xff]
  %v1151 = vld [vmem:[%s4 + $0x88] sm:$0xff]
  %v1152 = vld [vmem:[%s4 + $0x90] sm:$0xff]
  %v1153 = vld [vmem:[%s4 + $0x98] sm:$0xff]
  %v1154 = vld [vmem:[%s4 + $0xa0] sm:$0xff]
  %v1155 = vld [vmem:[%s4 + $0xa8] sm:$0xff]
  %v1156 = vld [vmem:[%s4 + $0xb0] sm:$0xff]
  %v1157 = vld [vmem:[%s4 + $0xb8] sm:$0xff]
  %v1158 = vld [vmem:[%s4 + $0xc0] sm:$0xff]
  %v1159 = vld [vmem:[%s4 + $0xc8] sm:$0xff]
  %v1160 = vld [vmem:[%s4 + $0xd0] sm:$0xff]
  %v1161 = vld [vmem:[%s4 + $0xd8] sm:$0xff]
  %v1162 = vld [vmem:[%s4 + $0xe0] sm:$0xff]
  %v1163 = vld [vmem:[%s4 + $0xe8] sm:$0xff]
  %v1164 = vld [vmem:[%s4 + $0xf0] sm:$0xff]
  %v1165 = vld [vmem:[%s4 + $0xf8] sm:$0xff]
  %v1166 = vld [vmem:[%s6] sm:$0xf]
  %v1168 = vperm.slane %v1166, 0
  %v1169 = vperm.slane %v1166, 1
  %v1170 = vperm.slane %v1166, 2
  %v1171 = vperm.slane %v1166, 3
  %v1184 = vunpack.c.l.b16 %v1126
  %v1185 = vunpack.c.l.b16 %v1127
  %v1186 = vunpack.c.l.b16 %v1128
  %v1187 = vunpack.c.l.b16 %v1129
  %v1188 = vunpack.c.l.b16 %v1130
  %v1189 = vunpack.c.l.b16 %v1131
  %v1190 = vunpack.c.l.b16 %v1132
  %v1191 = vunpack.c.l.b16 %v1133
  %v1192 = vpack.c.b16 %v1185, %v1184
  %v1193 = vpack.c.b16 %v1187, %v1186
  %v1194 = vpack.c.b16 %v1189, %v1188
  %v1195 = vpack.c.b16 %v1191, %v1190
  %v1232 = vunpack.c.l.b16 %v1134
  %v1233 = vunpack.c.h.b16 %v1134
  %v1234 = vunpack.c.l.b16 %v1135
  %v1235 = vunpack.c.h.b16 %v1135
  %v1236 = vunpack.c.l.b16 %v1136
  %v1237 = vunpack.c.h.b16 %v1136
  %v1238 = vunpack.c.l.b16 %v1137
  %v1239 = vunpack.c.h.b16 %v1137
  %v1240 = vunpack.c.l.b16 %v1138
  %v1241 = vunpack.c.h.b16 %v1138
  %v1242 = vunpack.c.l.b16 %v1139
  %v1243 = vunpack.c.h.b16 %v1139
  %v1244 = vunpack.c.l.b16 %v1140
  %v1245 = vunpack.c.h.b16 %v1140
  %v1246 = vunpack.c.l.b16 %v1141
  %v1247 = vunpack.c.h.b16 %v1141
  %v1248 = vunpack.c.l.b16 %v1142
  %v1249 = vunpack.c.h.b16 %v1142
  %v1250 = vunpack.c.l.b16 %v1143
  %v1251 = vunpack.c.h.b16 %v1143
  %v1252 = vunpack.c.l.b16 %v1144
  %v1253 = vunpack.c.h.b16 %v1144
  %v1254 = vunpack.c.l.b16 %v1145
  %v1255 = vunpack.c.h.b16 %v1145
  %v1256 = vunpack.c.l.b16 %v1146
  %v1257 = vunpack.c.h.b16 %v1146
  %v1258 = vunpack.c.l.b16 %v1147
  %v1259 = vunpack.c.h.b16 %v1147
  %v1260 = vunpack.c.l.b16 %v1148
  %v1261 = vunpack.c.h.b16 %v1148
  %v1262 = vunpack.c.l.b16 %v1149
  %v1263 = vunpack.c.h.b16 %v1149
  %v1264 = vunpack.c.l.b16 %v1150
  %v1265 = vunpack.c.h.b16 %v1150
  %v1266 = vunpack.c.l.b16 %v1151
  %v1267 = vunpack.c.h.b16 %v1151
  %v1268 = vunpack.c.l.b16 %v1152
  %v1269 = vunpack.c.h.b16 %v1152
  %v1270 = vunpack.c.l.b16 %v1153
  %v1271 = vunpack.c.h.b16 %v1153
  %v1272 = vunpack.c.l.b16 %v1154
  %v1273 = vunpack.c.h.b16 %v1154
  %v1274 = vunpack.c.l.b16 %v1155
  %v1275 = vunpack.c.h.b16 %v1155
  %v1276 = vunpack.c.l.b16 %v1156
  %v1277 = vunpack.c.h.b16 %v1156
  %v1278 = vunpack.c.l.b16 %v1157
  %v1279 = vunpack.c.h.b16 %v1157
  %v1280 = vunpack.c.l.b16 %v1158
  %v1281 = vunpack.c.h.b16 %v1158
  %v1282 = vunpack.c.l.b16 %v1159
  %v1283 = vunpack.c.h.b16 %v1159
  %v1284 = vunpack.c.l.b16 %v1160
  %v1285 = vunpack.c.h.b16 %v1160
  %v1286 = vunpack.c.l.b16 %v1161
  %v1287 = vunpack.c.h.b16 %v1161
  %v1288 = vunpack.c.l.b16 %v1162
  %v1289 = vunpack.c.h.b16 %v1162
  %v1290 = vunpack.c.l.b16 %v1163
  %v1291 = vunpack.c.h.b16 %v1163
  %v1292 = vunpack.c.l.b16 %v1164
  %v1293 = vunpack.c.h.b16 %v1164
  %v1294 = vunpack.c.l.b16 %v1165
  %v1295 = vunpack.c.h.b16 %v1165
  %v1296 = vpack.c.b16 %v1236, %v1232
  %v1297 = vpack.c.b16 %v1237, %v1233
  %v1298 = vpack.c.b16 %v1238, %v1234
  %v1299 = vpack.c.b16 %v1239, %v1235
  %v1300 = vpack.c.b16 %v1244, %v1240
  %v1301 = vpack.c.b16 %v1245, %v1241
  %v1302 = vpack.c.b16 %v1246, %v1242
  %v1303 = vpack.c.b16 %v1247, %v1243
  %v1304 = vpack.c.b16 %v1252, %v1248
  %v1305 = vpack.c.b16 %v1253, %v1249
  %v1306 = vpack.c.b16 %v1254, %v1250
  %v1307 = vpack.c.b16 %v1255, %v1251
  %v1308 = vpack.c.b16 %v1260, %v1256
  %v1309 = vpack.c.b16 %v1261, %v1257
  %v1310 = vpack.c.b16 %v1262, %v1258
  %v1311 = vpack.c.b16 %v1263, %v1259
  %v1312 = vpack.c.b16 %v1268, %v1264
  %v1313 = vpack.c.b16 %v1269, %v1265
  %v1314 = vpack.c.b16 %v1270, %v1266
  %v1315 = vpack.c.b16 %v1271, %v1267
  %v1316 = vpack.c.b16 %v1276, %v1272
  %v1317 = vpack.c.b16 %v1277, %v1273
  %v1318 = vpack.c.b16 %v1278, %v1274
  %v1319 = vpack.c.b16 %v1279, %v1275
  %v1320 = vpack.c.b16 %v1284, %v1280
  %v1321 = vpack.c.b16 %v1285, %v1281
  %v1322 = vpack.c.b16 %v1286, %v1282
  %v1323 = vpack.c.b16 %v1287, %v1283
  %v1324 = vpack.c.b16 %v1292, %v1288
  %v1325 = vpack.c.b16 %v1293, %v1289
  %v1326 = vpack.c.b16 %v1294, %v1290
  %v1327 = vpack.c.b16 %v1295, %v1291
  %1360 = vmatpush.bf16.msra.mxu0 %v1324
  %1361 = vmatpush.bf16.msra.mxu0 %v1320
  %1362 = vmatpush.bf16.msra.mxu0 %v1316
  %1363 = vmatpush.bf16.msra.mxu0 %v1312
  %1364 = vmatpush.bf16.msra.mxu0 %v1308
  %1365 = vmatpush.bf16.msra.mxu0 %v1304
  %1366 = vmatpush.bf16.msra.mxu0 %v1300
  %1367 = vmatpush.bf16.msra.mxu0 %v1296
  %1368 = vmatmul.bf16.gmra.mxu0 %v1192
  %v1369 = vpop.f32.mrf.mxu0
  %v1370 = vadd.f32 %v1168, %v1369
  %v1371 = vpop.f32.mrf.mxu0
  %v1372 = vadd.f32 %v1168, %v1371
  %1373 = vmatmul.bf16.gmra.mxu0 %v1193
  %v1374 = vpop.f32.mrf.mxu0
  %v1375 = vadd.f32 %v1168, %v1374
  %v1376 = vpop.f32.mrf.mxu0
  %v1377 = vadd.f32 %v1168, %v1376
  %1378 = vmatmul.bf16.gmra.mxu0 %v1194
  %v1379 = vpop.f32.mrf.mxu0
  %v1380 = vadd.f32 %v1168, %v1379
  %v1381 = vpop.f32.mrf.mxu0
  %v1382 = vadd.f32 %v1168, %v1381
  %1383 = vmatmul.bf16.gmra.mxu0 %v1195
  %v1384 = vpop.f32.mrf.mxu0
  %v1385 = vadd.f32 %v1168, %v1384
  %v1386 = vpop.f32.mrf.mxu0
  %v1387 = vadd.f32 %v1168, %v1386
  %1388 = vdwg.mxu0
  %1389 = vmatpush.bf16.msra.mxu0 %v1325
  %1390 = vmatpush.bf16.msra.mxu0 %v1321
  %1391 = vmatpush.bf16.msra.mxu0 %v1317
  %1392 = vmatpush.bf16.msra.mxu0 %v1313
  %1393 = vmatpush.bf16.msra.mxu0 %v1309
  %1394 = vmatpush.bf16.msra.mxu0 %v1305
  %1395 = vmatpush.bf16.msra.mxu0 %v1301
  %1396 = vmatpush.bf16.msra.mxu0 %v1297
  %1397 = vmatmul.bf16.gmra.mxu0 %v1192
  %v1398 = vpop.f32.mrf.mxu0
  %v1399 = vadd.f32 %v1169, %v1398
  %v1400 = vpop.f32.mrf.mxu0
  %v1401 = vadd.f32 %v1169, %v1400
  %1402 = vmatmul.bf16.gmra.mxu0 %v1193
  %v1403 = vpop.f32.mrf.mxu0
  %v1404 = vadd.f32 %v1169, %v1403
  %v1405 = vpop.f32.mrf.mxu0
  %v1406 = vadd.f32 %v1169, %v1405
  %1407 = vmatmul.bf16.gmra.mxu0 %v1194
  %v1408 = vpop.f32.mrf.mxu0
  %v1409 = vadd.f32 %v1169, %v1408
  %v1410 = vpop.f32.mrf.mxu0
  %v1411 = vadd.f32 %v1169, %v1410
  %1412 = vmatmul.bf16.gmra.mxu0 %v1195
  %v1413 = vpop.f32.mrf.mxu0
  %v1414 = vadd.f32 %v1169, %v1413
  %v1415 = vpop.f32.mrf.mxu0
  %v1416 = vadd.f32 %v1169, %v1415
  %1417 = vdwg.mxu0
  %1418 = vmatpush.bf16.msra.mxu0 %v1326
  %1419 = vmatpush.bf16.msra.mxu0 %v1322
  %1420 = vmatpush.bf16.msra.mxu0 %v1318
  %1421 = vmatpush.bf16.msra.mxu0 %v1314
  %1422 = vmatpush.bf16.msra.mxu0 %v1310
  %1423 = vmatpush.bf16.msra.mxu0 %v1306
  %1424 = vmatpush.bf16.msra.mxu0 %v1302
  %1425 = vmatpush.bf16.msra.mxu0 %v1298
  %1426 = vmatmul.bf16.gmra.mxu0 %v1192
  %v1427 = vpop.f32.mrf.mxu0
  %v1428 = vadd.f32 %v1170, %v1427
  %v1429 = vpop.f32.mrf.mxu0
  %v1430 = vadd.f32 %v1170, %v1429
  %1431 = vmatmul.bf16.gmra.mxu0 %v1193
  %v1432 = vpop.f32.mrf.mxu0
  %v1433 = vadd.f32 %v1170, %v1432
  %v1434 = vpop.f32.mrf.mxu0
  %v1435 = vadd.f32 %v1170, %v1434
  %1436 = vmatmul.bf16.gmra.mxu0 %v1194
  %v1437 = vpop.f32.mrf.mxu0
  %v1438 = vadd.f32 %v1170, %v1437
  %v1439 = vpop.f32.mrf.mxu0
  %v1440 = vadd.f32 %v1170, %v1439
  %1441 = vmatmul.bf16.gmra.mxu0 %v1195
  %v1442 = vpop.f32.mrf.mxu0
  %v1443 = vadd.f32 %v1170, %v1442
  %v1444 = vpop.f32.mrf.mxu0
  %v1445 = vadd.f32 %v1170, %v1444
  %1446 = vdwg.mxu0
  %1447 = vmatpush.bf16.msra.mxu0 %v1327
  %1448 = vmatpush.bf16.msra.mxu0 %v1323
  %1449 = vmatpush.bf16.msra.mxu0 %v1319
  %1450 = vmatpush.bf16.msra.mxu0 %v1315
  %1451 = vmatpush.bf16.msra.mxu0 %v1311
  %1452 = vmatpush.bf16.msra.mxu0 %v1307
  %1453 = vmatpush.bf16.msra.mxu0 %v1303
  %1454 = vmatpush.bf16.msra.mxu0 %v1299
  %1455 = vmatmul.bf16.gmra.mxu0 %v1192
  %v1456 = vpop.f32.mrf.mxu0
  %v1457 = vadd.f32 %v1171, %v1456
  %v1458 = vpop.f32.mrf.mxu0
  %v1459 = vadd.f32 %v1171, %v1458
  %1460 = vmatmul.bf16.gmra.mxu0 %v1193
  %v1461 = vpop.f32.mrf.mxu0
  %v1462 = vadd.f32 %v1171, %v1461
  %v1463 = vpop.f32.mrf.mxu0
  %v1464 = vadd.f32 %v1171, %v1463
  %1465 = vmatmul.bf16.gmra.mxu0 %v1194
  %v1466 = vpop.f32.mrf.mxu0
  %v1467 = vadd.f32 %v1171, %v1466
  %v1468 = vpop.f32.mrf.mxu0
  %v1469 = vadd.f32 %v1171, %v1468
  %1470 = vmatmul.bf16.gmra.mxu0 %v1195
  %v1471 = vpop.f32.mrf.mxu0
  %v1472 = vadd.f32 %v1171, %v1471
  %v1473 = vpop.f32.mrf.mxu0
  %v1474 = vadd.f32 %v1171, %v1473
  %1475 = vdwg.mxu0
  %1476 = vst [vmem:[#allocation2] sm:$0xff] %v1370
  %1477 = vst [vmem:[#allocation2 + $0x8] sm:$0xff] %v1399
  %1478 = vst [vmem:[#allocation2 + $0x10] sm:$0xff] %v1428
  %1479 = vst [vmem:[#allocation2 + $0x18] sm:$0xff] %v1457
  %1480 = vst [vmem:[#allocation2 + $0x20] sm:$0xff] %v1372
  %1481 = vst [vmem:[#allocation2 + $0x28] sm:$0xff] %v1401
  %1482 = vst [vmem:[#allocation2 + $0x30] sm:$0xff] %v1430
  %1483 = vst [vmem:[#allocation2 + $0x38] sm:$0xff] %v1459
  %1484 = vst [vmem:[#allocation2 + $0x40] sm:$0xff] %v1375
  %1485 = vst [vmem:[#allocation2 + $0x48] sm:$0xff] %v1404
  %1486 = vst [vmem:[#allocation2 + $0x50] sm:$0xff] %v1433
  %1487 = vst [vmem:[#allocation2 + $0x58] sm:$0xff] %v1462
  %1488 = vst [vmem:[#allocation2 + $0x60] sm:$0xff] %v1377
  %1489 = vst [vmem:[#allocation2 + $0x68] sm:$0xff] %v1406
  %1490 = vst [vmem:[#allocation2 + $0x70] sm:$0xff] %v1435
  %1491 = vst [vmem:[#allocation2 + $0x78] sm:$0xff] %v1464
  %1492 = vst [vmem:[#allocation2 + $0x80] sm:$0xff] %v1380
  %1493 = vst [vmem:[#allocation2 + $0x88] sm:$0xff] %v1409
  %1494 = vst [vmem:[#allocation2 + $0x90] sm:$0xff] %v1438
  %1495 = vst [vmem:[#allocation2 + $0x98] sm:$0xff] %v1467
  %1496 = vst [vmem:[#allocation2 + $0xa0] sm:$0xff] %v1382
  %1497 = vst [vmem:[#allocation2 + $0xa8] sm:$0xff] %v1411
  %1498 = vst [vmem:[#allocation2 + $0xb0] sm:$0xff] %v1440
  %1499 = vst [vmem:[#allocation2 + $0xb8] sm:$0xff] %v1469
  %1500 = vst [vmem:[#allocation2 + $0xc0] sm:$0xff] %v1385
  %1501 = vst [vmem:[#allocation2 + $0xc8] sm:$0xff] %v1414
  %1502 = vst [vmem:[#allocation2 + $0xd0] sm:$0xff] %v1443
  %1503 = vst [vmem:[#allocation2 + $0xd8] sm:$0xff] %v1472
  %1504 = vst [vmem:[#allocation2 + $0xe0] sm:$0xff] %v1387
  %1505 = vst [vmem:[#allocation2 + $0xe8] sm:$0xff] %v1416
  %1506 = vst [vmem:[#allocation2 + $0xf0] sm:$0xff] %v1445
  %1507 = vst [vmem:[#allocation2 + $0xf8] sm:$0xff] %v1474
  %v1508 = vld [vmem:[%s5] sm:$0xff]
  %v1509 = vld [vmem:[%s5 + $0x8] sm:$0xff]
  %v1510 = vld [vmem:[%s5 + $0x10] sm:$0xff]
  %v1511 = vld [vmem:[%s5 + $0x18] sm:$0xff]
  %v1512 = vld [vmem:[%s5 + $0x20] sm:$0xff]
  %v1513 = vld [vmem:[%s5 + $0x28] sm:$0xff]
  %v1514 = vld [vmem:[%s5 + $0x30] sm:$0xff]
  %v1515 = vld [vmem:[%s5 + $0x38] sm:$0xff]
  %v1516 = vld [vmem:[%s5 + $0x40] sm:$0xff]
  %v1517 = vld [vmem:[%s5 + $0x48] sm:$0xff]
  %v1518 = vld [vmem:[%s5 + $0x50] sm:$0xff]
  %v1519 = vld [vmem:[%s5 + $0x58] sm:$0xff]
  %v1520 = vld [vmem:[%s5 + $0x60] sm:$0xff]
  %v1521 = vld [vmem:[%s5 + $0x68] sm:$0xff]
  %v1522 = vld [vmem:[%s5 + $0x70] sm:$0xff]
  %v1523 = vld [vmem:[%s5 + $0x78] sm:$0xff]
  %v1524 = vld [vmem:[%s5 + $0x80] sm:$0xff]
  %v1525 = vld [vmem:[%s5 + $0x88] sm:$0xff]
  %v1526 = vld [vmem:[%s5 + $0x90] sm:$0xff]
  %v1527 = vld [vmem:[%s5 + $0x98] sm:$0xff]
  %v1528 = vld [vmem:[%s5 + $0xa0] sm:$0xff]
  %v1529 = vld [vmem:[%s5 + $0xa8] sm:$0xff]
  %v1530 = vld [vmem:[%s5 + $0xb0] sm:$0xff]
  %v1531 = vld [vmem:[%s5 + $0xb8] sm:$0xff]
  %v1532 = vld [vmem:[%s5 + $0xc0] sm:$0xff]
  %v1533 = vld [vmem:[%s5 + $0xc8] sm:$0xff]
  %v1534 = vld [vmem:[%s5 + $0xd0] sm:$0xff]
  %v1535 = vld [vmem:[%s5 + $0xd8] sm:$0xff]
  %v1536 = vld [vmem:[%s5 + $0xe0] sm:$0xff]
  %v1537 = vld [vmem:[%s5 + $0xe8] sm:$0xff]
  %v1538 = vld [vmem:[%s5 + $0xf0] sm:$0xff]
  %v1539 = vld [vmem:[%s5 + $0xf8] sm:$0xff]
  %v1540 = vld [vmem:[#allocation2] sm:$0xff]
  %v1541 = vld [vmem:[#allocation2 + $0x8] sm:$0xff]
  %v1542 = vld [vmem:[#allocation2 + $0x10] sm:$0xff]
  %v1543 = vld [vmem:[#allocation2 + $0x18] sm:$0xff]
  %v1576 = vunpack.c.l.b16 %v1508
  %v1577 = vunpack.c.h.b16 %v1508
  %v1578 = vunpack.c.l.b16 %v1509
  %v1579 = vunpack.c.h.b16 %v1509
  %v1580 = vunpack.c.l.b16 %v1510
  %v1581 = vunpack.c.h.b16 %v1510
  %v1582 = vunpack.c.l.b16 %v1511
  %v1583 = vunpack.c.h.b16 %v1511
  %v1584 = vunpack.c.l.b16 %v1512
  %v1585 = vunpack.c.h.b16 %v1512
  %v1586 = vunpack.c.l.b16 %v1513
  %v1587 = vunpack.c.h.b16 %v1513
  %v1588 = vunpack.c.l.b16 %v1514
  %v1589 = vunpack.c.h.b16 %v1514
  %v1590 = vunpack.c.l.b16 %v1515
  %v1591 = vunpack.c.h.b16 %v1515
  %v1592 = vunpack.c.l.b16 %v1516
  %v1593 = vunpack.c.h.b16 %v1516
  %v1594 = vunpack.c.l.b16 %v1517
  %v1595 = vunpack.c.h.b16 %v1517
  %v1596 = vunpack.c.l.b16 %v1518
  %v1597 = vunpack.c.h.b16 %v1518
  %v1598 = vunpack.c.l.b16 %v1519
  %v1599 = vunpack.c.h.b16 %v1519
  %v1600 = vunpack.c.l.b16 %v1520
  %v1601 = vunpack.c.h.b16 %v1520
  %v1602 = vunpack.c.l.b16 %v1521
  %v1603 = vunpack.c.h.b16 %v1521
  %v1604 = vunpack.c.l.b16 %v1522
  %v1605 = vunpack.c.h.b16 %v1522
  %v1606 = vunpack.c.l.b16 %v1523
  %v1607 = vunpack.c.h.b16 %v1523
  %v1608 = vunpack.c.l.b16 %v1524
  %v1609 = vunpack.c.h.b16 %v1524
  %v1610 = vunpack.c.l.b16 %v1525
  %v1611 = vunpack.c.h.b16 %v1525
  %v1612 = vunpack.c.l.b16 %v1526
  %v1613 = vunpack.c.h.b16 %v1526
  %v1614 = vunpack.c.l.b16 %v1527
  %v1615 = vunpack.c.h.b16 %v1527
  %v1616 = vunpack.c.l.b16 %v1528
  %v1617 = vunpack.c.h.b16 %v1528
  %v1618 = vunpack.c.l.b16 %v1529
  %v1619 = vunpack.c.h.b16 %v1529
  %v1620 = vunpack.c.l.b16 %v1530
  %v1621 = vunpack.c.h.b16 %v1530
  %v1622 = vunpack.c.l.b16 %v1531
  %v1623 = vunpack.c.h.b16 %v1531
  %v1624 = vunpack.c.l.b16 %v1532
  %v1625 = vunpack.c.h.b16 %v1532
  %v1626 = vunpack.c.l.b16 %v1533
  %v1627 = vunpack.c.h.b16 %v1533
  %v1628 = vunpack.c.l.b16 %v1534
  %v1629 = vunpack.c.h.b16 %v1534
  %v1630 = vunpack.c.l.b16 %v1535
  %v1631 = vunpack.c.h.b16 %v1535
  %v1632 = vunpack.c.l.b16 %v1536
  %v1633 = vunpack.c.h.b16 %v1536
  %v1634 = vunpack.c.l.b16 %v1537
  %v1635 = vunpack.c.h.b16 %v1537
  %v1636 = vunpack.c.l.b16 %v1538
  %v1637 = vunpack.c.h.b16 %v1538
  %v1638 = vunpack.c.l.b16 %v1539
  %v1639 = vunpack.c.h.b16 %v1539
  %v1640 = vpack.c.b16 %v1580, %v1576
  %v1641 = vpack.c.b16 %v1581, %v1577
  %v1642 = vpack.c.b16 %v1582, %v1578
  %v1643 = vpack.c.b16 %v1583, %v1579
  %v1644 = vpack.c.b16 %v1588, %v1584
  %v1645 = vpack.c.b16 %v1589, %v1585
  %v1646 = vpack.c.b16 %v1590, %v1586
  %v1647 = vpack.c.b16 %v1591, %v1587
  %v1648 = vpack.c.b16 %v1596, %v1592
  %v1649 = vpack.c.b16 %v1597, %v1593
  %v1650 = vpack.c.b16 %v1598, %v1594
  %v1651 = vpack.c.b16 %v1599, %v1595
  %v1652 = vpack.c.b16 %v1604, %v1600
  %v1653 = vpack.c.b16 %v1605, %v1601
  %v1654 = vpack.c.b16 %v1606, %v1602
  %v1655 = vpack.c.b16 %v1607, %v1603
  %v1656 = vpack.c.b16 %v1612, %v1608
  %v1657 = vpack.c.b16 %v1613, %v1609
  %v1658 = vpack.c.b16 %v1614, %v1610
  %v1659 = vpack.c.b16 %v1615, %v1611
  %v1660 = vpack.c.b16 %v1620, %v1616
  %v1661 = vpack.c.b16 %v1621, %v1617
  %v1662 = vpack.c.b16 %v1622, %v1618
  %v1663 = vpack.c.b16 %v1623, %v1619
  %v1664 = vpack.c.b16 %v1628, %v1624
  %v1665 = vpack.c.b16 %v1629, %v1625
  %v1666 = vpack.c.b16 %v1630, %v1626
  %v1667 = vpack.c.b16 %v1631, %v1627
  %v1668 = vpack.c.b16 %v1636, %v1632
  %v1669 = vpack.c.b16 %v1637, %v1633
  %v1670 = vpack.c.b16 %v1638, %v1634
  %v1671 = vpack.c.b16 %v1639, %v1635
  %1704 = vmatpush.bf16.msra.mxu0 %v1668
  %1705 = vmatpush.bf16.msra.mxu0 %v1664
  %1706 = vmatpush.bf16.msra.mxu0 %v1660
  %1707 = vmatpush.bf16.msra.mxu0 %v1656
  %1708 = vmatpush.bf16.msra.mxu0 %v1652
  %1709 = vmatpush.bf16.msra.mxu0 %v1648
  %1710 = vmatpush.bf16.msra.mxu0 %v1644
  %1711 = vmatpush.bf16.msra.mxu0 %v1640
  %1712 = vmatmul.bf16.gmra.mxu0 0
  %v1713 = vpop.f32.mrf.mxu0
  %v1714 = vadd.f32 0.0, %v1713
  %v1715 = vpop.f32.mrf.mxu0
  %1716 = vdwg.mxu0
  %1717 = vmatpush.bf16.msra.mxu0 %v1669
  %1718 = vmatpush.bf16.msra.mxu0 %v1665
  %1719 = vmatpush.bf16.msra.mxu0 %v1661
  %1720 = vmatpush.bf16.msra.mxu0 %v1657
  %1721 = vmatpush.bf16.msra.mxu0 %v1653
  %1722 = vmatpush.bf16.msra.mxu0 %v1649
  %1723 = vmatpush.bf16.msra.mxu0 %v1645
  %1724 = vmatpush.bf16.msra.mxu0 %v1641
  %1725 = vmatmul.bf16.gmra.mxu0 0
  %v1726 = vpop.f32.mrf.mxu0
  %v1727 = vadd.f32 0.0, %v1726
  %v1728 = vpop.f32.mrf.mxu0
  %1729 = vdwg.mxu0
  %1730 = vmatpush.bf16.msra.mxu0 %v1670
  %1731 = vmatpush.bf16.msra.mxu0 %v1666
  %1732 = vmatpush.bf16.msra.mxu0 %v1662
  %1733 = vmatpush.bf16.msra.mxu0 %v1658
  %1734 = vmatpush.bf16.msra.mxu0 %v1654
  %1735 = vmatpush.bf16.msra.mxu0 %v1650
  %1736 = vmatpush.bf16.msra.mxu0 %v1646
  %1737 = vmatpush.bf16.msra.mxu0 %v1642
  %1738 = vmatmul.bf16.gmra.mxu0 0
  %v1739 = vpop.f32.mrf.mxu0
  %v1740 = vadd.f32 0.0, %v1739
  %v1741 = vpop.f32.mrf.mxu0
  %1742 = vdwg.mxu0
  %1743 = vmatpush.bf16.msra.mxu0 %v1671
  %1744 = vmatpush.bf16.msra.mxu0 %v1667
  %1745 = vmatpush.bf16.msra.mxu0 %v1663
  %1746 = vmatpush.bf16.msra.mxu0 %v1659
  %1747 = vmatpush.bf16.msra.mxu0 %v1655
  %1748 = vmatpush.bf16.msra.mxu0 %v1651
  %1749 = vmatpush.bf16.msra.mxu0 %v1647
  %1750 = vmatpush.bf16.msra.mxu0 %v1643
  %1751 = vmatmul.bf16.gmra.mxu0 0
  %v1752 = vpop.f32.mrf.mxu0
  %v1753 = vadd.f32 0.0, %v1752
  %v1754 = vpop.f32.mrf.mxu0
  %1755 = vdwg.mxu0
  %v1756 = vadd.f32 %v1540, %v1714
  %v1757 = vadd.f32 %v1541, %v1727
  %v1758 = vadd.f32 %v1542, %v1740
  %v1759 = vadd.f32 %v1543, %v1753
  %v1760 = vmul.f32 %v1756, 0.5
  %v1761 = vtanh.pop %v1760
  %v1762 = vmul.f32 %v1761, 0.5
  %v1763 = vadd.f32 %v1762, 0.5
  %v1764 = vmul.f32 %v1757, 0.5
  %v1765 = vtanh.pop %v1764
  %v1766 = vmul.f32 %v1765, 0.5
  %v1767 = vadd.f32 %v1766, 0.5
  %v1768 = vtanh.pop %v1758
  %v1769 = vmul.f32 %v1759, 0.5
  %v1770 = vtanh.pop %v1769
  %v1771 = vmul.f32 %v1770, 0.5
  %v1772 = vadd.f32 %v1771, 0.5
  %v1773 = vmul.f32 %v1767, 0.0
  %v1774 = vmul.f32 %v1763, %v1768
  %v1775 = vadd.f32 %v1773, %v1774
  %v1776 = vtanh.pop %v1775
  %v1777 = vmul.f32 %v1772, %v1776
  %v1778 = vpack.c.bf16 %v1777, %v1777
  %1779 = vst [vmem:[#allocation3] sm:$0xf] %v1778
  %v1780 = vld [vmem:[%s552] sm:$0xff]
  %v1781 = vld [vmem:[%s552 + $0x8] sm:$0xff]
  %v1782 = vld [vmem:[%s552 + $0x10] sm:$0xff]
  %v1783 = vld [vmem:[%s552 + $0x18] sm:$0xff]
  %1784 = vmatpush.bf16.msra.mxu0 %v1668
  %1785 = vmatpush.bf16.msra.mxu0 %v1664
  %1786 = vmatpush.bf16.msra.mxu0 %v1660
  %1787 = vmatpush.bf16.msra.mxu0 %v1656
  %1788 = vmatpush.bf16.msra.mxu0 %v1652
  %1789 = vmatpush.bf16.msra.mxu0 %v1648
  %1790 = vmatpush.bf16.msra.mxu0 %v1644
  %1791 = vmatpush.bf16.msra.mxu0 %v1640
  %1792 = vmatmul.bf16.gmra.mxu0 %v1778
  %v1793 = vpop.f32.mrf.mxu0
  %v1794 = vadd.f32 0.0, %v1793
  %v1795 = vpop.f32.mrf.mxu0
  %1796 = vdwg.mxu0
  %1797 = vmatpush.bf16.msra.mxu0 %v1669
  %1798 = vmatpush.bf16.msra.mxu0 %v1665
  %1799 = vmatpush.bf16.msra.mxu0 %v1661
  %1800 = vmatpush.bf16.msra.mxu0 %v1657
  %1801 = vmatpush.bf16.msra.mxu0 %v1653
  %1802 = vmatpush.bf16.msra.mxu0 %v1649
  %1803 = vmatpush.bf16.msra.mxu0 %v1645
  %1804 = vmatpush.bf16.msra.mxu0 %v1641
  %1805 = vmatmul.bf16.gmra.mxu0 %v1778
  %v1806 = vpop.f32.mrf.mxu0
  %v1807 = vadd.f32 0.0, %v1806
  %v1808 = vpop.f32.mrf.mxu0
  %1809 = vdwg.mxu0
  %1810 = vmatpush.bf16.msra.mxu0 %v1670
  %1811 = vmatpush.bf16.msra.mxu0 %v1666
  %1812 = vmatpush.bf16.msra.mxu0 %v1662
  %1813 = vmatpush.bf16.msra.mxu0 %v1658
  %1814 = vmatpush.bf16.msra.mxu0 %v1654
  %1815 = vmatpush.bf16.msra.mxu0 %v1650
  %1816 = vmatpush.bf16.msra.mxu0 %v1646
  %1817 = vmatpush.bf16.msra.mxu0 %v1642
  %1818 = vmatmul.bf16.gmra.mxu0 %v1778
  %v1819 = vpop.f32.mrf.mxu0
  %v1820 = vadd.f32 0.0, %v1819
  %v1821 = vpop.f32.mrf.mxu0
  %1822 = vdwg.mxu0
  %1823 = vmatpush.bf16.msra.mxu0 %v1671
  %1824 = vmatpush.bf16.msra.mxu0 %v1667
  %1825 = vmatpush.bf16.msra.mxu0 %v1663
  %1826 = vmatpush.bf16.msra.mxu0 %v1659
  %1827 = vmatpush.bf16.msra.mxu0 %v1655
  %1828 = vmatpush.bf16.msra.mxu0 %v1651
  %1829 = vmatpush.bf16.msra.mxu0 %v1647
  %1830 = vmatpush.bf16.msra.mxu0 %v1643
  %1831 = vmatmul.bf16.gmra.mxu0 %v1778
  %v1832 = vpop.f32.mrf.mxu0
  %v1833 = vadd.f32 0.0, %v1832
  %v1834 = vpop.f32.mrf.mxu0
  %1835 = vdwg.mxu0
  %v1836 = vadd.f32 %v1780, %v1794
  %v1837 = vadd.f32 %v1781, %v1807
  %v1838 = vadd.f32 %v1782, %v1820
  %v1839 = vadd.f32 %v1783, %v1833
  %v1840 = vmul.f32 %v1836, 0.5
  %v1841 = vtanh.pop %v1840
  %v1842 = vmul.f32 %v1841, 0.5
  %v1843 = vadd.f32 %v1842, 0.5
  %v1844 = vmul.f32 %v1837, 0.5
  %v1845 = vtanh.pop %v1844
  %v1846 = vmul.f32 %v1845, 0.5
  %v1847 = vadd.f32 %v1846, 0.5
  %v1848 = vtanh.pop %v1838
  %v1849 = vmul.f32 %v1839, 0.5
  %v1850 = vtanh.pop %v1849
  %v1851 = vmul.f32 %v1850, 0.5
  %v1852 = vadd.f32 %v1851, 0.5
  %v1853 = vmul.f32 %v1847, %v1775
  %v1854 = vmul.f32 %v1843, %v1848
  %v1855 = vadd.f32 %v1853, %v1854
  %v1856 = vtanh.pop %v1855
  %v1857 = vmul.f32 %v1852, %v1856
  %v1858 = vpack.c.bf16 %v1857, %v1857
  %1859 = vst [vmem:[%s632] sm:$0xf] %v1858
  %v1860 = vld [vmem:[%s634] sm:$0xff]
  %v1861 = vld [vmem:[%s634 + $0x8] sm:$0xff]
  %v1862 = vld [vmem:[%s634 + $0x10] sm:$0xff]
  %v1863 = vld [vmem:[%s634 + $0x18] sm:$0xff]
  %1864 = vmatpush.bf16.msra.mxu0 %v1668
  %1865 = vmatpush.bf16.msra.mxu0 %v1664
  %1866 = vmatpush.bf16.msra.mxu0 %v1660
  %1867 = vmatpush.bf16.msra.mxu0 %v1656
  %1868 = vmatpush.bf16.msra.mxu0 %v1652
  %1869 = vmatpush.bf16.msra.mxu0 %v1648
  %1870 = vmatpush.bf16.msra.mxu0 %v1644
  %1871 = vmatpush.bf16.msra.mxu0 %v1640
  %1872 = vmatmul.bf16.gmra.mxu0 %v1858
  %v1873 = vpop.f32.mrf.mxu0
  %v1874 = vadd.f32 0.0, %v1873
  %v1875 = vpop.f32.mrf.mxu0
  %1876 = vdwg.mxu0
  %1877 = vmatpush.bf16.msra.mxu0 %v1669
  %1878 = vmatpush.bf16.msra.mxu0 %v1665
  %1879 = vmatpush.bf16.msra.mxu0 %v1661
  %1880 = vmatpush.bf16.msra.mxu0 %v1657
  %1881 = vmatpush.bf16.msra.mxu0 %v1653
  %1882 = vmatpush.bf16.msra.mxu0 %v1649
  %1883 = vmatpush.bf16.msra.mxu0 %v1645
  %1884 = vmatpush.bf16.msra.mxu0 %v1641
  %1885 = vmatmul.bf16.gmra.mxu0 %v1858
  %v1886 = vpop.f32.mrf.mxu0
  %v1887 = vadd.f32 0.0, %v1886
  %v1888 = vpop.f32.mrf.mxu0
  %1889 = vdwg.mxu0
  %1890 = vmatpush.bf16.msra.mxu0 %v1670
  %1891 = vmatpush.bf16.msra.mxu0 %v1666
  %1892 = vmatpush.bf16.msra.mxu0 %v1662
  %1893 = vmatpush.bf16.msra.mxu0 %v1658
  %1894 = vmatpush.bf16.msra.mxu0 %v1654
  %1895 = vmatpush.bf16.msra.mxu0 %v1650
  %1896 = vmatpush.bf16.msra.mxu0 %v1646
  %1897 = vmatpush.bf16.msra.mxu0 %v1642
  %1898 = vmatmul.bf16.gmra.mxu0 %v1858
  %v1899 = vpop.f32.mrf.mxu0
  %v1900 = vadd.f32 0.0, %v1899
  %v1901 = vpop.f32.mrf.mxu0
  %1902 = vdwg.mxu0
  %1903 = vmatpush.bf16.msra.mxu0 %v1671
  %1904 = vmatpush.bf16.msra.mxu0 %v1667
  %1905 = vmatpush.bf16.msra.mxu0 %v1663
  %1906 = vmatpush.bf16.msra.mxu0 %v1659
  %1907 = vmatpush.bf16.msra.mxu0 %v1655
  %1908 = vmatpush.bf16.msra.mxu0 %v1651
  %1909 = vmatpush.bf16.msra.mxu0 %v1647
  %1910 = vmatpush.bf16.msra.mxu0 %v1643
  %1911 = vmatmul.bf16.gmra.mxu0 %v1858
  %v1912 = vpop.f32.mrf.mxu0
  %v1913 = vadd.f32 0.0, %v1912
  %v1914 = vpop.f32.mrf.mxu0
  %1915 = vdwg.mxu0
  %v1916 = vadd.f32 %v1860, %v1874
  %v1917 = vadd.f32 %v1861, %v1887
  %v1918 = vadd.f32 %v1862, %v1900
  %v1919 = vadd.f32 %v1863, %v1913
  %v1920 = vmul.f32 %v1916, 0.5
  %v1921 = vtanh.pop %v1920
  %v1922 = vmul.f32 %v1921, 0.5
  %v1923 = vadd.f32 %v1922, 0.5
  %v1924 = vmul.f32 %v1917, 0.5
  %v1925 = vtanh.pop %v1924
  %v1926 = vmul.f32 %v1925, 0.5
  %v1927 = vadd.f32 %v1926, 0.5
  %v1928 = vtanh.pop %v1918
  %v1929 = vmul.f32 %v1919, 0.5
  %v1930 = vtanh.pop %v1929
  %v1931 = vmul.f32 %v1930, 0.5
  %v1932 = vadd.f32 %v1931, 0.5
  %v1933 = vmul.f32 %v1927, %v1855
  %v1934 = vmul.f32 %v1923, %v1928
  %v1935 = vadd.f32 %v1933, %v1934
  %v1936 = vtanh.pop %v1935
  %v1937 = vmul.f32 %v1932, %v1936
  %v1938 = vpack.c.bf16 %v1937, %v1937
  %1939 = vst [vmem:[%s714] sm:$0xf] %v1938
  %v1940 = vld [vmem:[%s716] sm:$0xff]
  %v1941 = vld [vmem:[%s716 + $0x8] sm:$0xff]
  %v1942 = vld [vmem:[%s716 + $0x10] sm:$0xff]
  %v1943 = vld [vmem:[%s716 + $0x18] sm:$0xff]
  %1944 = vmatpush.bf16.msra.mxu0 %v1668
  %1945 = vmatpush.bf16.msra.mxu0 %v1664
  %1946 = vmatpush.bf16.msra.mxu0 %v1660
  %1947 = vmatpush.bf16.msra.mxu0 %v1656
  %1948 = vmatpush.bf16.msra.mxu0 %v1652
  %1949 = vmatpush.bf16.msra.mxu0 %v1648
  %1950 = vmatpush.bf16.msra.mxu0 %v1644
  %1951 = vmatpush.bf16.msra.mxu0 %v1640
  %1952 = vmatmul.bf16.gmra.mxu0 %v1938
  %v1953 = vpop.f32.mrf.mxu0
  %v1954 = vadd.f32 0.0, %v1953
  %v1955 = vpop.f32.mrf.mxu0
  %1956 = vdwg.mxu0
  %1957 = vmatpush.bf16.msra.mxu0 %v1669
  %1958 = vmatpush.bf16.msra.mxu0 %v1665
  %1959 = vmatpush.bf16.msra.mxu0 %v1661
  %1960 = vmatpush.bf16.msra.mxu0 %v1657
  %1961 = vmatpush.bf16.msra.mxu0 %v1653
  %1962 = vmatpush.bf16.msra.mxu0 %v1649
  %1963 = vmatpush.bf16.msra.mxu0 %v1645
  %1964 = vmatpush.bf16.msra.mxu0 %v1641
  %1965 = vmatmul.bf16.gmra.mxu0 %v1938
  %v1966 = vpop.f32.mrf.mxu0
  %v1967 = vadd.f32 0.0, %v1966
  %v1968 = vpop.f32.mrf.mxu0
  %1969 = vdwg.mxu0
  %1970 = vmatpush.bf16.msra.mxu0 %v1670
  %1971 = vmatpush.bf16.msra.mxu0 %v1666
  %1972 = vmatpush.bf16.msra.mxu0 %v1662
  %1973 = vmatpush.bf16.msra.mxu0 %v1658
  %1974 = vmatpush.bf16.msra.mxu0 %v1654
  %1975 = vmatpush.bf16.msra.mxu0 %v1650
  %1976 = vmatpush.bf16.msra.mxu0 %v1646
  %1977 = vmatpush.bf16.msra.mxu0 %v1642
  %1978 = vmatmul.bf16.gmra.mxu0 %v1938
  %v1979 = vpop.f32.mrf.mxu0
  %v1980 = vadd.f32 0.0, %v1979
  %v1981 = vpop.f32.mrf.mxu0
  %1982 = vdwg.mxu0
  %1983 = vmatpush.bf16.msra.mxu0 %v1671
  %1984 = vmatpush.bf16.msra.mxu0 %v1667
  %1985 = vmatpush.bf16.msra.mxu0 %v1663
  %1986 = vmatpush.bf16.msra.mxu0 %v1659
  %1987 = vmatpush.bf16.msra.mxu0 %v1655
  %1988 = vmatpush.bf16.msra.mxu0 %v1651
  %1989 = vmatpush.bf16.msra.mxu0 %v1647
  %1990 = vmatpush.bf16.msra.mxu0 %v1643
  %1991 = vmatmul.bf16.gmra.mxu0 %v1938
  %v1992 = vpop.f32.mrf.mxu0
  %v1993 = vadd.f32 0.0, %v1992
  %v1994 = vpop.f32.mrf.mxu0
  %1995 = vdwg.mxu0
  %v1996 = vadd.f32 %v1940, %v1954
  %v1997 = vadd.f32 %v1941, %v1967
  %v1998 = vadd.f32 %v1942, %v1980
  %v1999 = vadd.f32 %v1943, %v1993
  %v2000 = vmul.f32 %v1996, 0.5
  %v2001 = vtanh.pop %v2000
  %v2002 = vmul.f32 %v2001, 0.5
  %v2003 = vadd.f32 %v2002, 0.5
  %v2004 = vmul.f32 %v1997, 0.5
  %v2005 = vtanh.pop %v2004
  %v2006 = vmul.f32 %v2005, 0.5
  %v2007 = vadd.f32 %v2006, 0.5
  %v2008 = vtanh.pop %v1998
  %v2009 = vmul.f32 %v1999, 0.5
  %v2010 = vtanh.pop %v2009
  %v2011 = vmul.f32 %v2010, 0.5
  %v2012 = vadd.f32 %v2011, 0.5
  %v2013 = vmul.f32 %v2007, %v1935
  %v2014 = vmul.f32 %v2003, %v2008
  %v2015 = vadd.f32 %v2013, %v2014
  %v2016 = vtanh.pop %v2015
  %v2017 = vmul.f32 %v2012, %v2016
  %v2018 = vpack.c.bf16 %v2017, %v2017
  %2019 = vst [vmem:[%s796] sm:$0xf] %v2018
  %v2020 = vld [vmem:[%s798] sm:$0xff]
  %v2021 = vld [vmem:[%s798 + $0x8] sm:$0xff]
  %v2022 = vld [vmem:[%s798 + $0x10] sm:$0xff]
  %v2023 = vld [vmem:[%s798 + $0x18] sm:$0xff]
  %2024 = vmatpush.bf16.msra.mxu0 %v1668
  %2025 = vmatpush.bf16.msra.mxu0 %v1664
  %2026 = vmatpush.bf16.msra.mxu0 %v1660
  %2027 = vmatpush.bf16.msra.mxu0 %v1656
  %2028 = vmatpush.bf16.msra.mxu0 %v1652
  %2029 = vmatpush.bf16.msra.mxu0 %v1648
  %2030 = vmatpush.bf16.msra.mxu0 %v1644
  %2031 = vmatpush.bf16.msra.mxu0 %v1640
  %2032 = vmatmul.bf16.gmra.mxu0 %v2018
  %v2033 = vpop.f32.mrf.mxu0
  %v2034 = vadd.f32 0.0, %v2033
  %v2035 = vpop.f32.mrf.mxu0
  %2036 = vdwg.mxu0
  %2037 = vmatpush.bf16.msra.mxu0 %v1669
  %2038 = vmatpush.bf16.msra.mxu0 %v1665
  %2039 = vmatpush.bf16.msra.mxu0 %v1661
  %2040 = vmatpush.bf16.msra.mxu0 %v1657
  %2041 = vmatpush.bf16.msra.mxu0 %v1653
  %2042 = vmatpush.bf16.msra.mxu0 %v1649
  %2043 = vmatpush.bf16.msra.mxu0 %v1645
  %2044 = vmatpush.bf16.msra.mxu0 %v1641
  %2045 = vmatmul.bf16.gmra.mxu0 %v2018
  %v2046 = vpop.f32.mrf.mxu0
  %v2047 = vadd.f32 0.0, %v2046
  %v2048 = vpop.f32.mrf.mxu0
  %2049 = vdwg.mxu0
  %2050 = vmatpush.bf16.msra.mxu0 %v1670
  %2051 = vmatpush.bf16.msra.mxu0 %v1666
  %2052 = vmatpush.bf16.msra.mxu0 %v1662
  %2053 = vmatpush.bf16.msra.mxu0 %v1658
  %2054 = vmatpush.bf16.msra.mxu0 %v1654
  %2055 = vmatpush.bf16.msra.mxu0 %v1650
  %2056 = vmatpush.bf16.msra.mxu0 %v1646
  %2057 = vmatpush.bf16.msra.mxu0 %v1642
  %2058 = vmatmul.bf16.gmra.mxu0 %v2018
  %v2059 = vpop.f32.mrf.mxu0
  %v2060 = vadd.f32 0.0, %v2059
  %v2061 = vpop.f32.mrf.mxu0
  %2062 = vdwg.mxu0
  %2063 = vmatpush.bf16.msra.mxu0 %v1671
  %2064 = vmatpush.bf16.msra.mxu0 %v1667
  %2065 = vmatpush.bf16.msra.mxu0 %v1663
  %2066 = vmatpush.bf16.msra.mxu0 %v1659
  %2067 = vmatpush.bf16.msra.mxu0 %v1655
  %2068 = vmatpush.bf16.msra.mxu0 %v1651
  %2069 = vmatpush.bf16.msra.mxu0 %v1647
  %2070 = vmatpush.bf16.msra.mxu0 %v1643
  %2071 = vmatmul.bf16.gmra.mxu0 %v2018
  %v2072 = vpop.f32.mrf.mxu0
  %v2073 = vadd.f32 0.0, %v2072
  %v2074 = vpop.f32.mrf.mxu0
  %2075 = vdwg.mxu0
  %v2076 = vadd.f32 %v2020, %v2034
  %v2077 = vadd.f32 %v2021, %v2047
  %v2078 = vadd.f32 %v2022, %v2060
  %v2079 = vadd.f32 %v2023, %v2073
  %v2080 = vmul.f32 %v2076, 0.5
  %v2081 = vtanh.pop %v2080
  %v2082 = vmul.f32 %v2081, 0.5
  %v2083 = vadd.f32 %v2082, 0.5
  %v2084 = vmul.f32 %v2077, 0.5
  %v2085 = vtanh.pop %v2084
  %v2086 = vmul.f32 %v2085, 0.5
  %v2087 = vadd.f32 %v2086, 0.5
  %v2088 = vtanh.pop %v2078
  %v2089 = vmul.f32 %v2079, 0.5
  %v2090 = vtanh.pop %v2089
  %v2091 = vmul.f32 %v2090, 0.5
  %v2092 = vadd.f32 %v2091, 0.5
  %v2093 = vmul.f32 %v2087, %v2015
  %v2094 = vmul.f32 %v2083, %v2088
  %v2095 = vadd.f32 %v2093, %v2094
  %v2096 = vtanh.pop %v2095
  %v2097 = vmul.f32 %v2092, %v2096
  %v2098 = vpack.c.bf16 %v2097, %v2097
  %2099 = vst [vmem:[%s878] sm:$0xf] %v2098
  %v2100 = vld [vmem:[%s880] sm:$0xff]
  %v2101 = vld [vmem:[%s880 + $0x8] sm:$0xff]
  %v2102 = vld [vmem:[%s880 + $0x10] sm:$0xff]
  %v2103 = vld [vmem:[%s880 + $0x18] sm:$0xff]
  %2104 = vmatpush.bf16.msra.mxu0 %v1668
  %2105 = vmatpush.bf16.msra.mxu0 %v1664
  %2106 = vmatpush.bf16.msra.mxu0 %v1660
  %2107 = vmatpush.bf16.msra.mxu0 %v1656
  %2108 = vmatpush.bf16.msra.mxu0 %v1652
  %2109 = vmatpush.bf16.msra.mxu0 %v1648
  %2110 = vmatpush.bf16.msra.mxu0 %v1644
  %2111 = vmatpush.bf16.msra.mxu0 %v1640
  %2112 = vmatmul.bf16.gmra.mxu0 %v2098
  %v2113 = vpop.f32.mrf.mxu0
  %v2114 = vadd.f32 0.0, %v2113
  %v2115 = vpop.f32.mrf.mxu0
  %2116 = vdwg.mxu0
  %2117 = vmatpush.bf16.msra.mxu0 %v1669
  %2118 = vmatpush.bf16.msra.mxu0 %v1665
  %2119 = vmatpush.bf16.msra.mxu0 %v1661
  %2120 = vmatpush.bf16.msra.mxu0 %v1657
  %2121 = vmatpush.bf16.msra.mxu0 %v1653
  %2122 = vmatpush.bf16.msra.mxu0 %v1649
  %2123 = vmatpush.bf16.msra.mxu0 %v1645
  %2124 = vmatpush.bf16.msra.mxu0 %v1641
  %2125 = vmatmul.bf16.gmra.mxu0 %v2098
  %v2126 = vpop.f32.mrf.mxu0
  %v2127 = vadd.f32 0.0, %v2126
  %v2128 = vpop.f32.mrf.mxu0
  %2129 = vdwg.mxu0
  %2130 = vmatpush.bf16.msra.mxu0 %v1670
  %2131 = vmatpush.bf16.msra.mxu0 %v1666
  %2132 = vmatpush.bf16.msra.mxu0 %v1662
  %2133 = vmatpush.bf16.msra.mxu0 %v1658
  %2134 = vmatpush.bf16.msra.mxu0 %v1654
  %2135 = vmatpush.bf16.msra.mxu0 %v1650
  %2136 = vmatpush.bf16.msra.mxu0 %v1646
  %2137 = vmatpush.bf16.msra.mxu0 %v1642
  %2138 = vmatmul.bf16.gmra.mxu0 %v2098
  %v2139 = vpop.f32.mrf.mxu0
  %v2140 = vadd.f32 0.0, %v2139
  %v2141 = vpop.f32.mrf.mxu0
  %2142 = vdwg.mxu0
  %2143 = vmatpush.bf16.msra.mxu0 %v1671
  %2144 = vmatpush.bf16.msra.mxu0 %v1667
  %2145 = vmatpush.bf16.msra.mxu0 %v1663
  %2146 = vmatpush.bf16.msra.mxu0 %v1659
  %2147 = vmatpush.bf16.msra.mxu0 %v1655
  %2148 = vmatpush.bf16.msra.mxu0 %v1651
  %2149 = vmatpush.bf16.msra.mxu0 %v1647
  %2150 = vmatpush.bf16.msra.mxu0 %v1643
  %2151 = vmatmul.bf16.gmra.mxu0 %v2098
  %v2152 = vpop.f32.mrf.mxu0
  %v2153 = vadd.f32 0.0, %v2152
  %v2154 = vpop.f32.mrf.mxu0
  %2155 = vdwg.mxu0
  %v2156 = vadd.f32 %v2100, %v2114
  %v2157 = vadd.f32 %v2101, %v2127
  %v2158 = vadd.f32 %v2102, %v2140
  %v2159 = vadd.f32 %v2103, %v2153
  %v2160 = vmul.f32 %v2156, 0.5
  %v2161 = vtanh.pop %v2160
  %v2162 = vmul.f32 %v2161, 0.5
  %v2163 = vadd.f32 %v2162, 0.5
  %v2164 = vmul.f32 %v2157, 0.5
  %v2165 = vtanh.pop %v2164
  %v2166 = vmul.f32 %v2165, 0.5
  %v2167 = vadd.f32 %v2166, 0.5
  %v2168 = vtanh.pop %v2158
  %v2169 = vmul.f32 %v2159, 0.5
  %v2170 = vtanh.pop %v2169
  %v2171 = vmul.f32 %v2170, 0.5
  %v2172 = vadd.f32 %v2171, 0.5
  %v2173 = vmul.f32 %v2167, %v2095
  %v2174 = vmul.f32 %v2163, %v2168
  %v2175 = vadd.f32 %v2173, %v2174
  %v2176 = vtanh.pop %v2175
  %v2177 = vmul.f32 %v2172, %v2176
  %v2178 = vpack.c.bf16 %v2177, %v2177
  %2179 = vst [vmem:[%s960] sm:$0xf] %v2178
  %v2180 = vld [vmem:[%s962] sm:$0xff]
  %v2181 = vld [vmem:[%s962 + $0x8] sm:$0xff]
  %v2182 = vld [vmem:[%s962 + $0x10] sm:$0xff]
  %v2183 = vld [vmem:[%s962 + $0x18] sm:$0xff]
  %2184 = vmatpush.bf16.msra.mxu0 %v1668
  %2185 = vmatpush.bf16.msra.mxu0 %v1664
  %2186 = vmatpush.bf16.msra.mxu0 %v1660
  %2187 = vmatpush.bf16.msra.mxu0 %v1656
  %2188 = vmatpush.bf16.msra.mxu0 %v1652
  %2189 = vmatpush.bf16.msra.mxu0 %v1648
  %2190 = vmatpush.bf16.msra.mxu0 %v1644
  %2191 = vmatpush.bf16.msra.mxu0 %v1640
  %2192 = vmatmul.bf16.gmra.mxu0 %v2178
  %v2193 = vpop.f32.mrf.mxu0
  %v2194 = vadd.f32 0.0, %v2193
  %v2195 = vpop.f32.mrf.mxu0
  %2196 = vdwg.mxu0
  %2197 = vmatpush.bf16.msra.mxu0 %v1669
  %2198 = vmatpush.bf16.msra.mxu0 %v1665
  %2199 = vmatpush.bf16.msra.mxu0 %v1661
  %2200 = vmatpush.bf16.msra.mxu0 %v1657
  %2201 = vmatpush.bf16.msra.mxu0 %v1653
  %2202 = vmatpush.bf16.msra.mxu0 %v1649
  %2203 = vmatpush.bf16.msra.mxu0 %v1645
  %2204 = vmatpush.bf16.msra.mxu0 %v1641
  %2205 = vmatmul.bf16.gmra.mxu0 %v2178
  %v2206 = vpop.f32.mrf.mxu0
  %v2207 = vadd.f32 0.0, %v2206
  %v2208 = vpop.f32.mrf.mxu0
  %2209 = vdwg.mxu0
  %2210 = vmatpush.bf16.msra.mxu0 %v1670
  %2211 = vmatpush.bf16.msra.mxu0 %v1666
  %2212 = vmatpush.bf16.msra.mxu0 %v1662
  %2213 = vmatpush.bf16.msra.mxu0 %v1658
  %2214 = vmatpush.bf16.msra.mxu0 %v1654
  %2215 = vmatpush.bf16.msra.mxu0 %v1650
  %2216 = vmatpush.bf16.msra.mxu0 %v1646
  %2217 = vmatpush.bf16.msra.mxu0 %v1642
  %2218 = vmatmul.bf16.gmra.mxu0 %v2178
  %v2219 = vpop.f32.mrf.mxu0
  %v2220 = vadd.f32 0.0, %v2219
  %v2221 = vpop.f32.mrf.mxu0
  %2222 = vdwg.mxu0
  %2223 = vmatpush.bf16.msra.mxu0 %v1671
  %2224 = vmatpush.bf16.msra.mxu0 %v1667
  %2225 = vmatpush.bf16.msra.mxu0 %v1663
  %2226 = vmatpush.bf16.msra.mxu0 %v1659
  %2227 = vmatpush.bf16.msra.mxu0 %v1655
  %2228 = vmatpush.bf16.msra.mxu0 %v1651
  %2229 = vmatpush.bf16.msra.mxu0 %v1647
  %2230 = vmatpush.bf16.msra.mxu0 %v1643
  %2231 = vmatmul.bf16.gmra.mxu0 %v2178
  %v2232 = vpop.f32.mrf.mxu0
  %v2233 = vadd.f32 0.0, %v2232
  %v2234 = vpop.f32.mrf.mxu0
  %2235 = vdwg.mxu0
  %v2236 = vadd.f32 %v2180, %v2194
  %v2237 = vadd.f32 %v2181, %v2207
  %v2238 = vadd.f32 %v2182, %v2220
  %v2239 = vadd.f32 %v2183, %v2233
  %v2240 = vmul.f32 %v2236, 0.5
  %v2241 = vtanh.pop %v2240
  %v2242 = vmul.f32 %v2241, 0.5
  %v2243 = vadd.f32 %v2242, 0.5
  %v2244 = vmul.f32 %v2237, 0.5
  %v2245 = vtanh.pop %v2244
  %v2246 = vmul.f32 %v2245, 0.5
  %v2247 = vadd.f32 %v2246, 0.5
  %v2248 = vtanh.pop %v2238
  %v2249 = vmul.f32 %v2239, 0.5
  %v2250 = vtanh.pop %v2249
  %v2251 = vmul.f32 %v2250, 0.5
  %v2252 = vadd.f32 %v2251, 0.5
  %v2253 = vmul.f32 %v2247, %v2175
  %v2254 = vmul.f32 %v2243, %v2248
  %v2255 = vadd.f32 %v2253, %v2254
  %v2256 = vtanh.pop %v2255
  %v2257 = vmul.f32 %v2252, %v2256
  %v2258 = vpack.c.bf16 %v2257, %v2257
  %2259 = vst [vmem:[%s1042] sm:$0xf] %v2258
  %v2260 = vld [vmem:[%s1044] sm:$0xff]
  %v2261 = vld [vmem:[%s1044 + $0x8] sm:$0xff]
  %v2262 = vld [vmem:[%s1044 + $0x10] sm:$0xff]
  %v2263 = vld [vmem:[%s1044 + $0x18] sm:$0xff]
  %2264 = vmatpush.bf16.msra.mxu0 %v1668
  %2265 = vmatpush.bf16.msra.mxu0 %v1664
  %2266 = vmatpush.bf16.msra.mxu0 %v1660
  %2267 = vmatpush.bf16.msra.mxu0 %v1656
  %2268 = vmatpush.bf16.msra.mxu0 %v1652
  %2269 = vmatpush.bf16.msra.mxu0 %v1648
  %2270 = vmatpush.bf16.msra.mxu0 %v1644
  %2271 = vmatpush.bf16.msra.mxu0 %v1640
  %2272 = vmatmul.bf16.gmra.mxu0 %v2258
  %v2273 = vpop.f32.mrf.mxu0
  %v2274 = vadd.f32 0.0, %v2273
  %v2275 = vpop.f32.mrf.mxu0
  %2276 = vdwg.mxu0
  %2277 = vmatpush.bf16.msra.mxu0 %v1669
  %2278 = vmatpush.bf16.msra.mxu0 %v1665
  %2279 = vmatpush.bf16.msra.mxu0 %v1661
  %2280 = vmatpush.bf16.msra.mxu0 %v1657
  %2281 = vmatpush.bf16.msra.mxu0 %v1653
  %2282 = vmatpush.bf16.msra.mxu0 %v1649
  %2283 = vmatpush.bf16.msra.mxu0 %v1645
  %2284 = vmatpush.bf16.msra.mxu0 %v1641
  %2285 = vmatmul.bf16.gmra.mxu0 %v2258
  %v2286 = vpop.f32.mrf.mxu0
  %v2287 = vadd.f32 0.0, %v2286
  %v2288 = vpop.f32.mrf.mxu0
  %2289 = vdwg.mxu0
  %2290 = vmatpush.bf16.msra.mxu0 %v1670
  %2291 = vmatpush.bf16.msra.mxu0 %v1666
  %2292 = vmatpush.bf16.msra.mxu0 %v1662
  %2293 = vmatpush.bf16.msra.mxu0 %v1658
  %2294 = vmatpush.bf16.msra.mxu0 %v1654
  %2295 = vmatpush.bf16.msra.mxu0 %v1650
  %2296 = vmatpush.bf16.msra.mxu0 %v1646
  %2297 = vmatpush.bf16.msra.mxu0 %v1642
  %2298 = vmatmul.bf16.gmra.mxu0 %v2258
  %v2299 = vpop.f32.mrf.mxu0
  %v2300 = vadd.f32 0.0, %v2299
  %v2301 = vpop.f32.mrf.mxu0
  %2302 = vdwg.mxu0
  %2303 = vmatpush.bf16.msra.mxu0 %v1671
  %2304 = vmatpush.bf16.msra.mxu0 %v1667
  %2305 = vmatpush.bf16.msra.mxu0 %v1663
  %2306 = vmatpush.bf16.msra.mxu0 %v1659
  %2307 = vmatpush.bf16.msra.mxu0 %v1655
  %2308 = vmatpush.bf16.msra.mxu0 %v1651
  %2309 = vmatpush.bf16.msra.mxu0 %v1647
  %2310 = vmatpush.bf16.msra.mxu0 %v1643
  %2311 = vmatmul.bf16.gmra.mxu0 %v2258
  %v2312 = vpop.f32.mrf.mxu0
  %v2313 = vadd.f32 0.0, %v2312
  %v2314 = vpop.f32.mrf.mxu0
  %2315 = vdwg.mxu0
  %v2316 = vadd.f32 %v2260, %v2274
  %v2317 = vadd.f32 %v2261, %v2287
  %v2318 = vadd.f32 %v2262, %v2300
  %v2319 = vadd.f32 %v2263, %v2313
  %v2320 = vmul.f32 %v2316, 0.5
  %v2321 = vtanh.pop %v2320
  %v2322 = vmul.f32 %v2321, 0.5
  %v2323 = vadd.f32 %v2322, 0.5
  %v2324 = vmul.f32 %v2317, 0.5
  %v2325 = vtanh.pop %v2324
  %v2326 = vmul.f32 %v2325, 0.5
  %v2327 = vadd.f32 %v2326, 0.5
  %v2328 = vtanh.pop %v2318
  %v2329 = vmul.f32 %v2319, 0.5
  %v2330 = vtanh.pop %v2329
  %v2331 = vmul.f32 %v2330, 0.5
  %v2332 = vadd.f32 %v2331, 0.5
  %v2333 = vmul.f32 %v2327, %v2255
  %v2334 = vmul.f32 %v2323, %v2328
  %v2335 = vadd.f32 %v2333, %v2334
  %v2336 = vtanh.pop %v2335
  %v2337 = vmul.f32 %v2332, %v2336
  %v2338 = vpack.c.bf16 %v2337, %v2337
  %2339 = vst [vmem:[%s1124] sm:$0xf] %v2338
  %v2340 = vld [vmem:[#allocation3] sm:$0xf]
  %v2341 = vld [vmem:[#allocation3 + $0x4] sm:$0xf]
  %v2342 = vld [vmem:[#allocation3 + $0x8] sm:$0xf]
  %v2343 = vld [vmem:[#allocation3 + $0xc] sm:$0xf]
  %v2344 = vld [vmem:[#allocation3 + $0x10] sm:$0xf]
  %v2345 = vld [vmem:[#allocation3 + $0x14] sm:$0xf]
  %v2346 = vld [vmem:[#allocation3 + $0x18] sm:$0xf]
  %v2347 = vld [vmem:[#allocation3 + $0x1c] sm:$0xf]
  %v2348 = vld [vmem:[%s7] sm:$0xf]
  %v2349 = vld [vmem:[%s7 + $0x4] sm:$0xf]
  %v2350 = vld [vmem:[%s7 + $0x8] sm:$0xf]
  %v2351 = vld [vmem:[%s7 + $0xc] sm:$0xf]
  %v2352 = vld [vmem:[%s7 + $0x10] sm:$0xf]
  %v2353 = vld [vmem:[%s7 + $0x14] sm:$0xf]
  %v2354 = vld [vmem:[%s7 + $0x18] sm:$0xf]
  %v2355 = vld [vmem:[%s7 + $0x1c] sm:$0xf]
  %v2356 = vld [vmem:[%s7 + $0x20] sm:$0xf]
  %v2357 = vld [vmem:[%s7 + $0x24] sm:$0xf]
  %v2358 = vld [vmem:[%s7 + $0x28] sm:$0xf]
  %v2359 = vld [vmem:[%s7 + $0x2c] sm:$0xf]
  %v2360 = vld [vmem:[%s7 + $0x30] sm:$0xf]
  %v2361 = vld [vmem:[%s7 + $0x34] sm:$0xf]
  %v2362 = vld [vmem:[%s7 + $0x38] sm:$0xf]
  %v2363 = vld [vmem:[%s7 + $0x3c] sm:$0xf]
  %v2364 = vld [vmem:[%s8] sm:$0x1]
  %v2366 = vperm.slane %v2364, 0
  %v2376 = vunpack.c.l.b16 %v2340
  %v2377 = vunpack.c.l.b16 %v2341
  %v2378 = vunpack.c.l.b16 %v2342
  %v2379 = vunpack.c.l.b16 %v2343
  %v2380 = vunpack.c.l.b16 %v2344
  %v2381 = vunpack.c.l.b16 %v2345
  %v2382 = vunpack.c.l.b16 %v2346
  %v2383 = vunpack.c.l.b16 %v2347
  %v2384 = vpack.c.b16 %v2377, %v2376
  %v2385 = vpack.c.b16 %v2379, %v2378
  %v2386 = vpack.c.b16 %v2381, %v2380
  %v2387 = vpack.c.b16 %v2383, %v2382
  %v2408 = vunpack.c.l.b16 %v2348
  %v2409 = vunpack.c.l.b16 %v2349
  %v2410 = vunpack.c.l.b16 %v2350
  %v2411 = vunpack.c.l.b16 %v2351
  %v2412 = vunpack.c.l.b16 %v2352
  %v2413 = vunpack.c.l.b16 %v2353
  %v2414 = vunpack.c.l.b16 %v2354
  %v2415 = vunpack.c.l.b16 %v2355
  %v2416 = vunpack.c.l.b16 %v2356
  %v2417 = vunpack.c.l.b16 %v2357
  %v2418 = vunpack.c.l.b16 %v2358
  %v2419 = vunpack.c.l.b16 %v2359
  %v2420 = vunpack.c.l.b16 %v2360
  %v2421 = vunpack.c.l.b16 %v2361
  %v2422 = vunpack.c.l.b16 %v2362
  %v2423 = vunpack.c.l.b16 %v2363
  %v2424 = vpack.c.b16 %v2409, %v2408
  %v2425 = vpack.c.b16 %v2411, %v2410
  %v2426 = vpack.c.b16 %v2413, %v2412
  %v2427 = vpack.c.b16 %v2415, %v2414
  %v2428 = vpack.c.b16 %v2417, %v2416
  %v2429 = vpack.c.b16 %v2419, %v2418
  %v2430 = vpack.c.b16 %v2421, %v2420
  %v2431 = vpack.c.b16 %v2423, %v2422
  %2440 = vmatpush.bf16.msra.mxu0 %v2431
  %2441 = vmatpush.bf16.msra.mxu0 %v2430
  %2442 = vmatpush.bf16.msra.mxu0 %v2429
  %2443 = vmatpush.bf16.msra.mxu0 %v2428
  %2444 = vmatpush.bf16.msra.mxu0 %v2427
  %2445 = vmatpush.bf16.msra.mxu0 %v2426
  %2446 = vmatpush.bf16.msra.mxu0 %v2425
  %2447 = vmatpush.bf16.msra.mxu0 %v2424
  %2448 = vmatmul.bf16.gmra.mxu0 %v2384
  %v2449 = vpop.f32.mrf.mxu0
  %v2450 = vadd.f32 %v2366, %v2449
  %v2451 = vpop.f32.mrf.mxu0
  %v2452 = vadd.f32 %v2366, %v2451
  %2453 = vmatmul.bf16.gmra.mxu0 %v2385
  %v2454 = vpop.f32.mrf.mxu0
  %v2455 = vadd.f32 %v2366, %v2454
  %v2456 = vpop.f32.mrf.mxu0
  %v2457 = vadd.f32 %v2366, %v2456
  %2458 = vmatmul.bf16.gmra.mxu0 %v2386
  %v2459 = vpop.f32.mrf.mxu0
  %v2460 = vadd.f32 %v2366, %v2459
  %v2461 = vpop.f32.mrf.mxu0
  %v2462 = vadd.f32 %v2366, %v2461
  %2463 = vmatmul.bf16.gmra.mxu0 %v2387
  %v2464 = vpop.f32.mrf.mxu0
  %v2465 = vadd.f32 %v2366, %v2464
  %v2466 = vpop.f32.mrf.mxu0
  %v2467 = vadd.f32 %v2366, %v2466
  %2468 = vdwg.mxu0
  %2469 = vst [vmem:[%s9] sm:$0xff] %v2450
  %2470 = vst [vmem:[%s9 + $0x8] sm:$0xff] %v2452
  %2471 = vst [vmem:[%s9 + $0x10] sm:$0xff] %v2455
  %2472 = vst [vmem:[%s9 + $0x18] sm:$0xff] %v2457
  %2473 = vst [vmem:[%s9 + $0x20] sm:$0xff] %v2460
  %2474 = vst [vmem:[%s9 + $0x28] sm:$0xff] %v2462
  %2475 = vst [vmem:[%s9 + $0x30] sm:$0xff] %v2465
  %2476 = vst [vmem:[%s9 + $0x38] sm:$0xff] %v2467
  // Predicated region
  $region38: #{joke_model_pallas.1} parent=0 // pred_check
    _
  $region39: #{joke_model_pallas.1} parent=0 // pred_check_branch
    %2478 = sbr.rel (0) target = $region41
  $region40: #{joke_model_pallas.1} parent=0 // pred_region
    _
  $region41: #{joke_model_pallas.1} parent=0 // pred_fallthru
    _
  // Predicated region
  $region42: #{joke_model_pallas.1} parent=0 // pred_check
    _
  $region43: #{joke_model_pallas.1} parent=0 // pred_check_branch
    %2480 = sbr.rel (0) target = $region45
  $region44: #{joke_model_pallas.1} parent=0 // pred_region
    _
  $region45: #{joke_model_pallas.1} parent=0 // pred_fallthru
    _

</llo_original>
